<compile_context>
chip_gen: v7x
topology: tpu7x:2x2x1
jax: 0.10.0
libtpu: 0.0.40
codegen_flags: <defaults>
</compile_context>

<pallas_src>
import functools

import jax
import jax.numpy as jnp
from jax.experimental import pallas as pl
from jax.experimental.pallas import tpu as pltpu

BN_EPS = 1e-5
LANE = 128
SUBLANE = 8
TM_CAP = 256
# VMEM budget (bytes) for the double-buffered bf16 A + W operand tiles; leaves
# ample headroom under the default scoped VMEM (16 MiB v5e / 32 MiB v6e,v7x).
_TILE_BYTES_BUDGET = 8 * 1024 * 1024


# ----------------------------- Pallas kernels ------------------------------ #

def _mm_single_kernel(a_ref, w_ref, b_ref, o_ref, *, relu):
    """Single K step: out = act(A @ W + bias), no accumulator scratch."""
    out = jnp.dot(a_ref[...], w_ref[...],
                  preferred_element_type=jnp.float32) + b_ref[...]
    if relu:
        out = jnp.maximum(out, 0.0)
    o_ref[...] = out.astype(o_ref.dtype)


def _mm_single_res_kernel(a_ref, w_ref, b_ref, r_ref, o_ref, *, relu):
    """Single K step with fused residual add before the activation."""
    out = (jnp.dot(a_ref[...], w_ref[...], preferred_element_type=jnp.float32)
           + b_ref[...] + r_ref[...].astype(jnp.float32))
    if relu:
        out = jnp.maximum(out, 0.0)
    o_ref[...] = out.astype(o_ref.dtype)


def _mm_multi_kernel(a_ref, w_ref, b_ref, o_ref, acc_ref, *, relu):
    """acc += A @ W over the K grid axis; out = act(acc + bias) at k == last."""
    @pl.when(pl.program_id(2) == 0)
    def _():
        acc_ref[...] = jnp.zeros_like(acc_ref)

    acc_ref[...] += jnp.dot(a_ref[...], w_ref[...],
                            preferred_element_type=jnp.float32)

    @pl.when(pl.program_id(2) == pl.num_programs(2) - 1)
    def _():
        out = acc_ref[...] + b_ref[...]
        if relu:
            out = jnp.maximum(out, 0.0)
        o_ref[...] = out.astype(o_ref.dtype)


def _mm_multi_res_kernel(a_ref, w_ref, b_ref, r_ref, o_ref, acc_ref, *, relu):
    """Same as above, plus a fused residual add before the activation."""
    @pl.when(pl.program_id(2) == 0)
    def _():
        acc_ref[...] = jnp.zeros_like(acc_ref)

    acc_ref[...] += jnp.dot(a_ref[...], w_ref[...],
                            preferred_element_type=jnp.float32)

    @pl.when(pl.program_id(2) == pl.num_programs(2) - 1)
    def _():
        out = acc_ref[...] + b_ref[...] + r_ref[...].astype(jnp.float32)
        if relu:
            out = jnp.maximum(out, 0.0)
        o_ref[...] = out.astype(o_ref.dtype)


# ------------------------------ tiling helpers ------------------------------ #

def _round_up(x, m):
    return (x + m - 1) // m * m


def _pad2(x, shape):
    pads = [(0, t - s) for s, t in zip(x.shape, shape)]
    if all(p == (0, 0) for p in pads):
        return x
    return jnp.pad(x, pads)


def _num_tensorcores():
    """2 on dual-TC chips (v7x), else 1. Never raises."""
    try:
        kind = jax.devices()[0].device_kind.lower()
    except Exception:
        return 1
    if "v7" in kind or "tpu7" in kind:
        return 2
    return 1


_NUM_TC = _num_tensorcores()


def _pick_tn(cp):
    return 256 if (cp >= 256 and cp % 256 == 0) else 128


def _pick_tm(m, n_tiles, dual_tc):
    """TM = round_up(M, 8) capped at 256.

    On dual-TC chips only, keep splitting M until M_tiles * N_tiles >= 2 so
    both TensorCores get work; on single-TC chips never split (pure overhead).
    """
    tm = min(TM_CAP, _round_up(m, SUBLANE))
    if dual_tc:
        while n_tiles * pl.cdiv(m, tm) < 2 and tm > SUBLANE:
            tm = max(SUBLANE, _round_up(tm // 2, SUBLANE))
    return tm


def _pick_tk(kp, tm, tn):
    """Full padded K when the double-buffered bf16 A+W tiles fit the budget,
    otherwise the largest 128-multiple divisor of kp that does."""
    def tiles_bytes(tk):
        return 2 * 2 * (tm * tk + tk * tn)   # 2 buffers, 2 bytes/elem (bf16)

    if tiles_bytes(kp) <= _TILE_BYTES_BUDGET:
        return kp
    best = LANE
    cand = LANE
    while cand <= kp:
        if kp % cand == 0 and tiles_bytes(cand) <= _TILE_BYTES_BUDGET:
            best = cand
        cand += LANE
    return best


# ------------------------------ Pallas driver ------------------------------- #

def matmul_bias_act(a, w, bias, residual=None, *, relu, out_dtype=jnp.float32):
    """out = act(A @ W + bias [+ residual]); A:(M,K), W:(K,Cout), bias:(Cout,)."""
    m, k = a.shape
    _, cout = w.shape

    kp = _round_up(k, LANE)
    cp = _round_up(cout, LANE)            # lane-dense output stores
    tn = _pick_tn(cp)
    n_tiles = cp // tn
    tm = _pick_tm(m, n_tiles, _NUM_TC >= 2)
    mp = _round_up(m, tm)
    tk = _pick_tk(kp, tm, tn)
    k_steps = kp // tk

    a_p = _pad2(a.astype(jnp.bfloat16), (mp, kp))          # bf16 MXU operands
    w_p = _pad2(w.astype(jnp.bfloat16), (kp, cp))
    b_p = _pad2(bias.astype(jnp.float32).reshape(1, cout), (1, cp))
    r_p = None
    if residual is not None:
        r_p = _pad2(residual.astype(jnp.bfloat16), (mp, cp))

    out_bytes = jnp.dtype(out_dtype).itemsize
    cost = pl.CostEstimate(
        flops=2 * mp * kp * cp,
        transcendentals=0,
        bytes_accessed=(mp * kp * 2 + kp * cp * 2 + mp * cp * out_bytes
                        + (mp * cp * 2 if residual is not None else 0)))

    if k_steps == 1:
        grid = (mp // tm, n_tiles)
        a_spec = pl.BlockSpec((tm, kp), lambda i, j: (i, 0))
        w_spec = pl.BlockSpec((kp, tn), lambda i, j: (0, j))
        b_spec = pl.BlockSpec((1, tn), lambda i, j: (0, j))
        o_spec = pl.BlockSpec((tm, tn), lambda i, j: (i, j))
        sem = ("parallel", "parallel")
        scratch = []
        if residual is None:
            kern = functools.partial(_mm_single_kernel, relu=relu)
            in_specs = [a_spec, w_spec, b_spec]
            args = (a_p, w_p, b_p)
        else:
            r_spec = pl.BlockSpec((tm, tn), lambda i, j: (i, j))
            kern = functools.partial(_mm_single_res_kernel, relu=relu)
            in_specs = [a_spec, w_spec, b_spec, r_spec]
            args = (a_p, w_p, b_p, r_p)
    else:
        grid = (mp // tm, n_tiles, k_steps)                 # K last (reduction)
        a_spec = pl.BlockSpec((tm, tk), lambda i, j, kk: (i, kk))
        w_spec = pl.BlockSpec((tk, tn), lambda i, j, kk: (kk, j))
        b_spec = pl.BlockSpec((1, tn), lambda i, j, kk: (0, j))
        o_spec = pl.BlockSpec((tm, tn), lambda i, j, kk: (i, j))
        sem = ("parallel", "parallel", "arbitrary")
        scratch = [pltpu.VMEM((tm, tn), jnp.float32)]
        if residual is None:
            kern = functools.partial(_mm_multi_kernel, relu=relu)
            in_specs = [a_spec, w_spec, b_spec]
            args = (a_p, w_p, b_p)
        else:
            r_spec = pl.BlockSpec((tm, tn), lambda i, j, kk: (i, j))
            kern = functools.partial(_mm_multi_res_kernel, relu=relu)
            in_specs = [a_spec, w_spec, b_spec, r_spec]
            args = (a_p, w_p, b_p, r_p)

    out = pl.pallas_call(
        kern,
        out_shape=jax.ShapeDtypeStruct((mp, cp), out_dtype),
        grid=grid,
        in_specs=in_specs,
        out_specs=o_spec,
        scratch_shapes=scratch,
        compiler_params=pltpu.CompilerParams(dimension_semantics=sem),
        cost_estimate=cost,
    )(*args)

    if mp == m and cp == cout:       # avoid slice + re-pad round trip
        return out
    return out[:m, :cout]


# --------------------------------- glue ------------------------------------- #

def im2col(x, kh, kw, stride, padding):
    """x: (N, H, W, C) NHWC (bf16) -> ((N*Ho*Wo, kh*kw*C), Ho, Wo)."""
    n, h, w, c = x.shape
    xp = jnp.pad(x, ((0, 0), (padding, padding), (padding, padding), (0, 0)))
    ho = (h + 2 * padding - kh) // stride + 1
    wo = (w + 2 * padding - kw) // stride + 1
    cols = []
    for i in range(kh):
        for j in range(kw):
            cols.append(xp[:, i:i + stride * ho:stride,
                           j:j + stride * wo:stride, :])
    patches = jnp.stack(cols, axis=3)                 # (N, Ho, Wo, kh*kw, C)
    return patches.reshape(n * ho * wo, kh * kw * c), ho, wo


def conv_bn(x, w, bn, *, stride, padding, relu, residual=None,
            out_dtype=jnp.float32):
    """Conv2d(no bias) + eval-mode BatchNorm (+ residual) (+ ReLU), NHWC."""
    n = x.shape[0]
    cout, cin, kh, kw = w.shape
    # bf16 BEFORE im2col: the 9x patches matrix is materialized in bf16.
    patches, ho, wo = im2col(x.astype(jnp.bfloat16), kh, kw, stride, padding)
    wm = jnp.transpose(w, (2, 3, 1, 0)).reshape(kh * kw * cin, cout)

    # Fold BN scale into the weight columns (in f32); keep only a bias vector.
    scale = bn["gamma"] * jax.lax.rsqrt(bn["var"] + BN_EPS)
    bias = bn["beta"] - bn["mean"] * scale
    wm = wm * scale[None, :]

    res = residual.reshape(n * ho * wo, cout) if residual is not None else None
    out = matmul_bias_act(patches, wm, bias, res, relu=relu, out_dtype=out_dtype)
    return out.reshape(n, ho, wo, cout)


# ------------------------------- BasicBlock --------------------------------- #

def basic_block_forward(x_nchw, params, *, stride):
    """torchvision BasicBlock: conv3x3-bn-relu, conv3x3-bn, (+downsample), +id, relu."""
    x = jnp.transpose(x_nchw, (0, 2, 3, 1)).astype(jnp.bfloat16)   # NCHW -> NHWC
    out = conv_bn(x, params["conv1_w"], params["bn1"],
                  stride=stride, padding=1, relu=True, out_dtype=jnp.bfloat16)
    if params.get("down_w") is not None:
        identity = conv_bn(x, params["down_w"], params["down_bn"],
                           stride=stride, padding=0, relu=False,
                           out_dtype=jnp.bfloat16)
    else:
        identity = x
    out = conv_bn(out, params["conv2_w"], params["bn2"],
                  stride=1, padding=1, relu=True, residual=identity,
                  out_dtype=jnp.float32)
    return jnp.transpose(out, (0, 3, 1, 2))                        # NHWC -> NCHW


# ------------------------------ parameters ---------------------------------- #

def _kaiming(key, cout, cin, kh, kw):
    # kaiming_normal_ mode='fan_out', nonlinearity='relu': std = sqrt(2/fan_out)
    std = (2.0 / (cout * kh * kw)) ** 0.5
    return jax.random.normal(key, (cout, cin, kh, kw), jnp.float32) * std


def _bn_params(c):
    return {"gamma": jnp.ones((c,), jnp.float32),
            "beta": jnp.zeros((c,), jnp.float32),
            "mean": jnp.zeros((c,), jnp.float32),
            "var": jnp.ones((c,), jnp.float32)}


def init_basic_block(key, inplanes, planes, stride):
    k1, k2, k3 = jax.random.split(key, 3)
    p = {"conv1_w": _kaiming(k1, planes, inplanes, 3, 3), "bn1": _bn_params(planes),
         "conv2_w": _kaiming(k2, planes, planes, 3, 3), "bn2": _bn_params(planes)}
    if stride != 1 or inplanes != planes:   # BasicBlock.expansion == 1
        p["down_w"] = _kaiming(k3, planes, inplanes, 1, 1)
        p["down_bn"] = _bn_params(planes)
    else:
        p["down_w"] = None
        p["down_bn"] = None
    return p


# ------------------------------- reference ---------------------------------- #

def _reference_forward(x_nchw, params, *, stride):
    """Plain-XLA reference (f32 conv + eval BN + residual + relu), NCHW in/out."""
    x = jnp.transpose(x_nchw, (0, 2, 3, 1)).astype(jnp.float32)

    def conv(z, w, s, p):
        return jax.lax.conv_general_dilated(
            z, jnp.transpose(w, (2, 3, 1, 0)), (s, s), [(p, p), (p, p)],
            dimension_numbers=("NHWC", "HWIO", "NHWC"))

    def bn(z, b):
        return (z - b["mean"]) * jax.lax.rsqrt(b["var"] + BN_EPS) * b["gamma"] + b["beta"]

    out = jax.nn.relu(bn(conv(x, params["conv1_w"], stride, 1), params["bn1"]))
    out = bn(conv(out, params["conv2_w"], 1, 1), params["bn2"])
    if params.get("down_w") is not None:
        identity = bn(conv(x, params["down_w"], stride, 0), params["down_bn"])
    else:
        identity = x
    out = jax.nn.relu(out + identity)
    return jnp.transpose(out, (0, 3, 1, 2))


# --------------------------------- main -------------------------------------- #

if __name__ == "__main__":
    key = jax.random.PRNGKey(0)
    kp1, kp2, kx = jax.random.split(key, 3)

    x = jax.random.normal(kx, (2, 64, 16, 16), jnp.float32)   # NCHW like PyTorch

    # Case 1: identity shortcut (inplanes == planes, stride=1) — ResNet layer1.
    p1 = init_basic_block(kp1, 64, 64, 1)
    fwd1 = jax.jit(functools.partial(basic_block_forward, stride=1))
    y1 = fwd1(x, p1)
    jax.block_until_ready(y1)
    assert y1.shape == (2, 64, 16, 16), y1.shape

    # Case 2: downsample shortcut (64 -> 128, stride=2) — ResNet layer2 block 0.
    p2 = init_basic_block(kp2, 64, 128, 2)
    fwd2 = jax.jit(functools.partial(basic_block_forward, stride=2))
    y2 = fwd2(x, p2)
    jax.block_until_ready(y2)
    assert y2.shape == (2, 128, 8, 8), y2.shape

    # Numerical check vs plain-XLA f32 reference (bf16 MXU operands and bf16
    # intermediate activations -> loose tolerance).
    r1 = _reference_forward(x, p1, stride=1)
    r2 = _reference_forward(x, p2, stride=2)
    err1 = float(jnp.max(jnp.abs(y1 - r1)))
    err2 = float(jnp.max(jnp.abs(y2 - r2)))
    assert err1 < 3e-1 and err2 < 3e-1, (err1, err2)

    print("KERNEL_OK")
</pallas_src>

<mosaic_0001>
module attributes {stable_mosaic.version = 11 : i64} {
  func.func @_mm_single_kernel(%arg0: i32, %arg1: i32, %arg2: memref<256x640xbf16, #tpu.memory_space<vmem>>, %arg3: memref<640x128xbf16, #tpu.memory_space<vmem>>, %arg4: memref<1x128xf32, #tpu.memory_space<vmem>>, %arg5: memref<256x128xbf16, #tpu.memory_space<vmem>>) attributes {dimension_semantics = [#tpu.dimension_semantics<parallel>, #tpu.dimension_semantics<parallel>], iteration_bounds = array<i64: 2, 1>, scalar_prefetch = 0 : i64, scratch_operands = 0 : i64, tpu.core_type = #tpu.core_type<tc>, window_params = [{transform_indices = @transform_0, window_bounds = array<i64: 256, 640>}, {transform_indices = @transform_1, window_bounds = array<i64: 640, 128>}, {transform_indices = @transform_2, window_bounds = array<i64: 1, 128>}, {transform_indices = @transform_3, window_bounds = array<i64: 256, 128>}]} {
    %c0 = arith.constant 0 : index
    %c0_0 = arith.constant 0 : index
    %0 = vector.load %arg2[%c0, %c0_0] : memref<256x640xbf16, #tpu.memory_space<vmem>>, vector<256x640xbf16>
    %c0_1 = arith.constant 0 : index
    %c0_2 = arith.constant 0 : index
    %1 = vector.load %arg3[%c0_1, %c0_2] : memref<640x128xbf16, #tpu.memory_space<vmem>>, vector<640x128xbf16>
    %cst = arith.constant dense<0.000000e+00> : vector<256x128xf32>
    %2 = tpu.matmul %0, %1, %cst {dimension_numbers = #tpu.dot_dimension_numbers<[1], [0], [0], [1], [0, 0, 1, 1], [], []>} : vector<256x640xbf16>, vector<640x128xbf16>, vector<256x128xf32> -> vector<256x128xf32>
    %c0_3 = arith.constant 0 : index
    %c0_4 = arith.constant 0 : index
    %3 = vector.load %arg4[%c0_3, %c0_4] : memref<1x128xf32, #tpu.memory_space<vmem>>, vector<1x128xf32>
    %4 = vector.broadcast %3 : vector<1x128xf32> to vector<256x128xf32>
    %5 = arith.addf %2, %4 : vector<256x128xf32>
    %cst_5 = arith.constant 0.000000e+00 : f32
    %6 = vector.broadcast %cst_5 : f32 to vector<256x128xf32>
    %7 = arith.maximumf %5, %6 : vector<256x128xf32>
    %8 = arith.truncf %7 : vector<256x128xf32> to vector<256x128xbf16>
    %c0_6 = arith.constant 0 : index
    %c0_7 = arith.constant 0 : index
    %9 = vector.load %arg5[%c0_6, %c0_7] : memref<256x128xbf16, #tpu.memory_space<vmem>>, vector<256x128xbf16>
    tpu.vector_store %arg5[%c0_6, %c0_7], %8 {strides = array<i32>} : memref<256x128xbf16, #tpu.memory_space<vmem>>, vector<256x128xbf16>,
    return
  }
  func.func @transform_0(%arg0: i32, %arg1: i32) -> (i32, i32) {
    %c0_i32 = arith.constant 0 : i32
    %c0_i32_0 = arith.constant 0 : i32
    return %arg0, %c0_i32 : i32, i32
  }
  func.func @transform_1(%arg0: i32, %arg1: i32) -> (i32, i32) {
    %c0_i32 = arith.constant 0 : i32
    %c0_i32_0 = arith.constant 0 : i32
    return %c0_i32, %arg1 : i32, i32
  }
  func.func @transform_2(%arg0: i32, %arg1: i32) -> (i32, i32) {
    %c0_i32 = arith.constant 0 : i32
    %c0_i32_0 = arith.constant 0 : i32
    return %c0_i32, %arg1 : i32, i32
  }
  func.func @transform_3(%arg0: i32, %arg1: i32) -> (i32, i32) {
    %c0_i32 = arith.constant 0 : i32
    return %arg0, %arg1 : i32, i32
  }
}

module attributes {stable_mosaic.version = 11 : i64} {
  func.func @_mm_single_res_kernel(%arg0: i32, %arg1: i32, %arg2: memref<256x640xbf16, #tpu.memory_space<vmem>>, %arg3: memref<640x128xbf16, #tpu.memory_space<vmem>>, %arg4: memref<1x128xf32, #tpu.memory_space<vmem>>, %arg5: memref<256x128xbf16, #tpu.memory_space<vmem>>, %arg6: memref<256x128xf32, #tpu.memory_space<vmem>>) attributes {dimension_semantics = [#tpu.dimension_semantics<parallel>, #tpu.dimension_semantics<parallel>], iteration_bounds = array<i64: 2, 1>, scalar_prefetch = 0 : i64, scratch_operands = 0 : i64, tpu.core_type = #tpu.core_type<tc>, window_params = [{transform_indices = @transform_0, window_bounds = array<i64: 256, 640>}, {transform_indices = @transform_1, window_bounds = array<i64: 640, 128>}, {transform_indices = @transform_2, window_bounds = array<i64: 1, 128>}, {transform_indices = @transform_3, window_bounds = array<i64: 256, 128>}, {transform_indices = @transform_4, window_bounds = array<i64: 256, 128>}]} {
    %c0 = arith.constant 0 : index
    %c0_0 = arith.constant 0 : index
    %0 = vector.load %arg2[%c0, %c0_0] : memref<256x640xbf16, #tpu.memory_space<vmem>>, vector<256x640xbf16>
    %c0_1 = arith.constant 0 : index
    %c0_2 = arith.constant 0 : index
    %1 = vector.load %arg3[%c0_1, %c0_2] : memref<640x128xbf16, #tpu.memory_space<vmem>>, vector<640x128xbf16>
    %cst = arith.constant dense<0.000000e+00> : vector<256x128xf32>
    %2 = tpu.matmul %0, %1, %cst {dimension_numbers = #tpu.dot_dimension_numbers<[1], [0], [0], [1], [0, 0, 1, 1], [], []>} : vector<256x640xbf16>, vector<640x128xbf16>, vector<256x128xf32> -> vector<256x128xf32>
    %c0_3 = arith.constant 0 : index
    %c0_4 = arith.constant 0 : index
    %3 = vector.load %arg4[%c0_3, %c0_4] : memref<1x128xf32, #tpu.memory_space<vmem>>, vector<1x128xf32>
    %4 = vector.broadcast %3 : vector<1x128xf32> to vector<256x128xf32>
    %5 = arith.addf %2, %4 : vector<256x128xf32>
    %c0_5 = arith.constant 0 : index
    %c0_6 = arith.constant 0 : index
    %6 = vector.load %arg5[%c0_5, %c0_6] : memref<256x128xbf16, #tpu.memory_space<vmem>>, vector<256x128xbf16>
    %7 = arith.extf %6 : vector<256x128xbf16> to vector<256x128xf32>
    %8 = arith.addf %5, %7 : vector<256x128xf32>
    %cst_7 = arith.constant 0.000000e+00 : f32
    %9 = vector.broadcast %cst_7 : f32 to vector<256x128xf32>
    %10 = arith.maximumf %8, %9 : vector<256x128xf32>
    %c0_8 = arith.constant 0 : index
    %c0_9 = arith.constant 0 : index
    %11 = vector.load %arg6[%c0_8, %c0_9] : memref<256x128xf32, #tpu.memory_space<vmem>>, vector<256x128xf32>
    tpu.vector_store %arg6[%c0_8, %c0_9], %10 {strides = array<i32>} : memref<256x128xf32, #tpu.memory_space<vmem>>, vector<256x128xf32>,
    return
  }
  func.func @transform_0(%arg0: i32, %arg1: i32) -> (i32, i32) {
    %c0_i32 = arith.constant 0 : i32
    %c0_i32_0 = arith.constant 0 : i32
    return %arg0, %c0_i32 : i32, i32
  }
  func.func @transform_1(%arg0: i32, %arg1: i32) -> (i32, i32) {
    %c0_i32 = arith.constant 0 : i32
    %c0_i32_0 = arith.constant 0 : i32
    return %c0_i32, %arg1 : i32, i32
  }
  func.func @transform_2(%arg0: i32, %arg1: i32) -> (i32, i32) {
    %c0_i32 = arith.constant 0 : i32
    %c0_i32_0 = arith.constant 0 : i32
    return %c0_i32, %arg1 : i32, i32
  }
  func.func @transform_3(%arg0: i32, %arg1: i32) -> (i32, i32) {
    %c0_i32 = arith.constant 0 : i32
    return %arg0, %arg1 : i32, i32
  }
  func.func @transform_4(%arg0: i32, %arg1: i32) -> (i32, i32) {
    %c0_i32 = arith.constant 0 : i32
    return %arg0, %arg1 : i32, i32
  }
}

</mosaic_0001>

<llo_original>
// kernel: basic_block_forward.2
$region0: #{basic_block_forward.2}
  #allocation0 [shape = 'u32[]', space=smem, size = 0x4, offset = 0x4, fixed_abs, tag = 'smem constant byte address 0x4 - core index']
  #allocation1 [shape = 'u32[144,128]{1,0:T(1,128)}', space=vmem, size = 0x12000, scoped, tag = 'internal scratch']
  %s0 = inlined_call_operand.vmem [shape: bf16[512,640], index: 0, kind: input, shape index: {}]
  %s1 = inlined_call_operand.vmem [shape: bf16[640,128], index: 1, kind: input, shape index: {}]
  %s2 = inlined_call_operand.vmem [shape: f32[1,128], index: 2, kind: input, shape index: {}]
  %s3 = inlined_call_operand.vmem [shape: bf16[512,128], index: 3, kind: output, shape index: {}]
  %s4 = sld [smem:[#allocation0]]
  $region45: #{basic_block_forward.2} parent=0
    _
  %s6 = ssub.s32 1, %s4
  %s7 = scalar_select 0, %s6, %s4
  loop: start=0, step=1, limit=4
  $region2: #{basic_block_forward.2} parent=0 // loop_pre_header
    _
  $region3: #{basic_block_forward.2} parent=0 // loop_header
    %s9 = sphi 0, %s13
    %p10 = scmp.ge.s32.totalorder %s9, 4
    %s16 = sphi 0, %s28
    %s17 = sphi 0, %s24
    %s18 = sphi 0, %s16
    %s19 = sphi 0, %s17
    %s20 = sphi 0, %s18
    %s21 = sphi 0, %s19
    %s31 = sphi 0, %s33
    %s34 = sphi 0, %s31
    %s35 = sphi 0, %s34
    %s51 = sphi 0, %s35
    %s57 = sphi 0, %s59
    %s60 = sphi 0, %s57
    %s61 = sphi 0, %s60
    %s77 = sphi 0, %s61
    %s83 = sphi 0, %s85
    %s86 = sphi 0, %s83
    %s87 = sphi 0, %s86
    %s103 = sphi 0, %s87
    %s111 = sphi 0, %s113
    %s114 = sphi 0, %s111
    %s115 = sphi 0, %s114
    %s131 = sphi 0, %s115
  $region4: #{basic_block_forward.2} parent=0 // loop_header_branch
    %12 = sbr.rel (%p10) target = $region8
  $region5: #{basic_block_forward.2} parent=0 // loop_body
    %s14 = ssub.s32 %s9, 1
    %s15 = ssub.s32 %s9, 2
    %s22 = sadd.s32 1, %s17
    %p23 = scmp.ge.s32.totalorder %s22, 1
    %s24 = scalar_select %p23, 0, %s22
    %s25 = sadd.s32 1, %s16
    %s26 = scalar_select %p23, %s25, %s16
    %p27 = scmp.ge.s32.totalorder %s26, 2
    %s28 = scalar_select %p27, 0, %s26
    %s29 = ssub.s32 %s16, %s28
    %p30 = scmp.eq.s32.totalorder %s29, 0
    %s32 = sadd.s32 %s31, 1
    %s33 = scalar_select %p30, %s31, %s32
    %p36 = pneg %p30
    %p37 = scmp.eq.s32.totalorder %s9, 1
    %p38 = por %p36, %p37
    %p39 = scmp.ne.s32.totalorder %s31, %s34
    %p40 = scmp.eq.s32.totalorder %s9, 0
    %p41 = por %p39, %p40
    %p42 = scmp.ne.s32.totalorder %s31, %s34
    %p43 = scmp.eq.s32.totalorder %s14, 1
    %p44 = por %p42, %p43
    %p45 = scmp.ne.s32.totalorder %s34, %s35
    %p46 = scmp.eq.s32.totalorder %s14, 0
    %p47 = por %p45, %p46
    %p48 = scmp.ne.s32.totalorder %s34, %s35
    %p49 = scmp.eq.s32.totalorder %s15, 1
    %p50 = por %p48, %p49
    %p52 = scmp.ne.s32.totalorder %s35, %s51
    %p53 = scmp.eq.s32.totalorder %s15, 0
    %p54 = por %p52, %p53
    %s55 = ssub.s32 %s17, %s24
    %p56 = scmp.eq.s32.totalorder %s55, 0
    %s58 = sadd.s32 %s57, 1
    %s59 = scalar_select %p56, %s57, %s58
    %p62 = pneg %p56
    %p63 = scmp.eq.s32.totalorder %s9, 1
    %p64 = por %p62, %p63
    %p65 = scmp.ne.s32.totalorder %s57, %s60
    %p66 = scmp.eq.s32.totalorder %s9, 0
    %p67 = por %p65, %p66
    %p68 = scmp.ne.s32.totalorder %s57, %s60
    %p69 = scmp.eq.s32.totalorder %s14, 1
    %p70 = por %p68, %p69
    %p71 = scmp.ne.s32.totalorder %s60, %s61
    %p72 = scmp.eq.s32.totalorder %s14, 0
    %p73 = por %p71, %p72
    %p74 = scmp.ne.s32.totalorder %s60, %s61
    %p75 = scmp.eq.s32.totalorder %s15, 1
    %p76 = por %p74, %p75
    %p78 = scmp.ne.s32.totalorder %s61, %s77
    %p79 = scmp.eq.s32.totalorder %s15, 0
    %p80 = por %p78, %p79
    %s81 = ssub.s32 %s17, %s24
    %p82 = scmp.eq.s32.totalorder %s81, 0
    %s84 = sadd.s32 %s83, 1
    %s85 = scalar_select %p82, %s83, %s84
    %p88 = pneg %p82
    %p89 = scmp.eq.s32.totalorder %s9, 1
    %p90 = por %p88, %p89
    %p91 = scmp.ne.s32.totalorder %s83, %s86
    %p92 = scmp.eq.s32.totalorder %s9, 0
    %p93 = por %p91, %p92
    %p94 = scmp.ne.s32.totalorder %s83, %s86
    %p95 = scmp.eq.s32.totalorder %s14, 1
    %p96 = por %p94, %p95
    %p97 = scmp.ne.s32.totalorder %s86, %s87
    %p98 = scmp.eq.s32.totalorder %s14, 0
    %p99 = por %p97, %p98
    %p100 = scmp.ne.s32.totalorder %s86, %s87
    %p101 = scmp.eq.s32.totalorder %s15, 1
    %p102 = por %p100, %p101
    %p104 = scmp.ne.s32.totalorder %s87, %s103
    %p105 = scmp.eq.s32.totalorder %s15, 0
    %p106 = por %p104, %p105
    %s107 = ssub.s32 %s16, %s28
    %s108 = ssub.s32 %s17, %s24
    %s109 = sor.u32 %s107, %s108
    %p110 = scmp.eq.s32.totalorder %s109, 0
    %s112 = sadd.s32 %s111, 1
    %s113 = scalar_select %p110, %s111, %s112
    %p116 = pneg %p110
    %p117 = scmp.eq.s32.totalorder %s9, 1
    %p118 = por %p116, %p117
    %p119 = scmp.ne.s32.totalorder %s111, %s114
    %p120 = scmp.eq.s32.totalorder %s9, 0
    %p121 = por %p119, %p120
    %p122 = scmp.ne.s32.totalorder %s111, %s114
    %p123 = scmp.eq.s32.totalorder %s14, 1
    %p124 = por %p122, %p123
    %p125 = scmp.ne.s32.totalorder %s114, %s115
    %p126 = scmp.eq.s32.totalorder %s14, 0
    %p127 = por %p125, %p126
    %p128 = scmp.ne.s32.totalorder %s114, %s115
    %p129 = scmp.eq.s32.totalorder %s15, 1
    %p130 = por %p128, %p129
    %p132 = scmp.ne.s32.totalorder %s115, %s131
    %p133 = scmp.eq.s32.totalorder %s15, 0
    %p134 = por %p132, %p133
    %p135 = scmp.le.s32.totalorder 1, %s9
    %p136 = scmp.lt.s32.totalorder %s9, 3
    %p137 = pnand %p135, %p136
    %p138 = pneg %p137
    // Predicated region
    $region9: #{basic_block_forward.2} parent=5 // pred_check
      _
    $region10: #{basic_block_forward.2} parent=5 // pred_check_branch
      %140 = sbr.rel (%p137) target = $region12
    $region11: #{basic_block_forward.2} parent=5 // pred_region
      %s141 = ssub.s32 %s9, 1
      // Predicated region
      $region13: #{basic_block_forward.2} parent=11 // pred_check
        %p142 = pneg %p73
      $region14: #{basic_block_forward.2} parent=11 // pred_check_branch
        %144 = sbr.rel (%p142) target = $region16
      $region15: #{basic_block_forward.2} parent=11 // pred_region
        %p145 = scmp.lt.s32.totalorder %s19, 0
        %s146 = scalar_select %p145, %s19, 0
        %s147 = smul.addr %s146, 4
        %s148 = scalar_lea.vmem %s1, %s147
      $region16: #{basic_block_forward.2} parent=11 // pred_fallthru
        _
      // Predicated region
      $region17: #{basic_block_forward.2} parent=11 // pred_check
        %p149 = pneg %p99
      $region18: #{basic_block_forward.2} parent=11 // pred_check_branch
        %151 = sbr.rel (%p149) target = $region20
      $region19: #{basic_block_forward.2} parent=11 // pred_region
        %p152 = scmp.lt.s32.totalorder %s19, 0
        %s153 = scalar_select %p152, %s19, 0
        %s154 = scalar_lea.vmem %s2, %s153
      $region20: #{basic_block_forward.2} parent=11 // pred_fallthru
        _
    $region12: #{basic_block_forward.2} parent=5 // pred_fallthru
      _
    %p155 = scmp.lt.s32.totalorder %s9, 2
    // Predicated region
    $region21: #{basic_block_forward.2} parent=5 // pred_check
      %p156 = pneg %p155
    $region22: #{basic_block_forward.2} parent=5 // pred_check_branch
      %158 = sbr.rel (%p156) target = $region24
    $region23: #{basic_block_forward.2} parent=5 // pred_region
      // Predicated region
      $region25: #{basic_block_forward.2} parent=23 // pred_check
        %p159 = pneg %p41
      $region26: #{basic_block_forward.2} parent=23 // pred_check_branch
        %161 = sbr.rel (%p159) target = $region28
      $region27: #{basic_block_forward.2} parent=23 // pred_region
        %s162 = smul.u32 32, %s16
        %p163 = scmp.lt.s32.totalorder %s162, 63
        %s164 = scalar_select %p163, %s162, 63
        %s165 = smul.addr %s164, 5
        %s166 = smul.addr %s165, 4
        %s167 = scalar_lea.vmem %s0, %s166
        %s168 = smul.u32 32, %s16
      $region28: #{basic_block_forward.2} parent=23 // pred_fallthru
        _
    $region24: #{basic_block_forward.2} parent=5 // pred_fallthru
      _
    %p169 = scmp.le.s32.totalorder 1, %s9
    %p170 = scmp.lt.s32.totalorder %s9, 3
    %p171 = pnand %p169, %p170
    %p172 = pneg %p171
    // Predicated region
    $region29: #{basic_block_forward.2} parent=5 // pred_check
      _
    $region30: #{basic_block_forward.2} parent=5 // pred_check_branch
      %174 = sbr.rel (%p171) target = $region32
    $region31: #{basic_block_forward.2} parent=5 // pred_region
      %s175 = ssub.s32 %s9, 1
      %s176 = smul.u32 32, %s18
      %p177 = scmp.lt.s32.totalorder %s176, 63
      %s178 = scalar_select %p177, %s176, 63
      %s179 = smul.addr %s178, 5
      %s180 = smul.addr %s179, 4
      %s181 = scalar_lea.vmem %s0, %s180
      %p182 = pneg %p47
      %p183 = pneg %p44
      %p184 = scmp.lt.s32.totalorder %s19, 0
      %s185 = scalar_select %p184, %s19, 0
      %s186 = smul.addr %s185, 4
      %s187 = scalar_lea.vmem %s1, %s186
      %p188 = pneg %p73
      %p189 = pneg %p70
      %p190 = scmp.lt.s32.totalorder %s19, 0
      %s191 = scalar_select %p190, %s19, 0
      %s192 = scalar_lea.vmem %s2, %s191
      %p193 = pneg %p99
      %p194 = pneg %p96
      %p195 = pneg %p127
      %p196 = pneg %p124
      %s197 = smul.u32 32, %s18
      %p198 = scmp.lt.s32.totalorder %s197, 63
      %s199 = scalar_select %p198, %s197, 63
      %p200 = scmp.lt.s32.totalorder %s19, 0
      %s201 = scalar_select %p200, %s19, 0
      %s202 = sadd.s32 %s201, %s199
      %s203 = smul.addr %s202, 4
      %s204 = scalar_lea.vmem %s3, %s203
      %s205 = smul.u32 32, %s18
      %p206 = scmp.lt.s32.totalorder %s205, 63
      %s207 = scalar_select %p206, %s205, 63
      %s208 = smul.addr %s207, 5
      %s209 = smul.addr %s208, 4
      %s210 = scalar_lea.vmem %s0, %s209
      %s211 = smul.u32 32, %s18
      %p212 = scmp.lt.s32.totalorder %s19, 0
      %s213 = scalar_select %p212, %s19, 0
      %s214 = smul.addr %s213, 4
      %s215 = scalar_lea.vmem %s1, %s214
      %p216 = scmp.lt.s32.totalorder %s19, 0
      %s217 = scalar_select %p216, %s19, 0
      %s218 = scalar_lea.vmem %s2, %s217
      %s219 = smul.u32 32, %s18
      %p220 = scmp.lt.s32.totalorder %s219, 63
      %s221 = scalar_select %p220, %s219, 63
      %p222 = scmp.lt.s32.totalorder %s19, 0
      %s223 = scalar_select %p222, %s19, 0
      %s224 = sadd.s32 %s223, %s221
      %s225 = smul.addr %s224, 4
      %s226 = scalar_lea.vmem %s3, %s225
      %s227 = smul.u32 32, %s18
      %v229 = vld [vmem:[%s210] sm:$0xff]
      %v230 = vld [vmem:[%s210 + $0x8] sm:$0xff]
      %v231 = vld [vmem:[%s210 + $0x10] sm:$0xf]
      %v232 = vld [vmem:[%s210 + $0x14] sm:$0xff]
      %v233 = vld [vmem:[%s210 + $0x1c] sm:$0xff]
      %v234 = vld [vmem:[%s210 + $0x24] sm:$0xf]
      %v235 = vld [vmem:[%s210 + $0x28] sm:$0xff]
      %v236 = vld [vmem:[%s210 + $0x30] sm:$0xff]
      %v237 = vld [vmem:[%s210 + $0x38] sm:$0xf]
      %v238 = vld [vmem:[%s210 + $0x3c] sm:$0xff]
      %v239 = vld [vmem:[%s210 + $0x44] sm:$0xff]
      %v240 = vld [vmem:[%s210 + $0x4c] sm:$0xf]
      %v241 = vld [vmem:[%s210 + $0x50] sm:$0xff]
      %v242 = vld [vmem:[%s210 + $0x58] sm:$0xff]
      %v243 = vld [vmem:[%s210 + $0x60] sm:$0xf]
      %v244 = vld [vmem:[%s210 + $0x64] sm:$0xff]
      %v245 = vld [vmem:[%s210 + $0x6c] sm:$0xff]
      %v246 = vld [vmem:[%s210 + $0x74] sm:$0xf]
      %v247 = vld [vmem:[%s210 + $0x78] sm:$0xff]
      %v248 = vld [vmem:[%s210 + $0x80] sm:$0xff]
      %v249 = vld [vmem:[%s210 + $0x88] sm:$0xf]
      %v250 = vld [vmem:[%s210 + $0x8c] sm:$0xff]
      %v251 = vld [vmem:[%s210 + $0x94] sm:$0xff]
      %v252 = vld [vmem:[%s210 + $0x9c] sm:$0xf]
      %v253 = vld [vmem:[%s210 + $0xa0] sm:$0xff]
      %v254 = vld [vmem:[%s210 + $0xa8] sm:$0xff]
      %v255 = vld [vmem:[%s210 + $0xb0] sm:$0xf]
      %v256 = vld [vmem:[%s210 + $0xb4] sm:$0xff]
      %v257 = vld [vmem:[%s210 + $0xbc] sm:$0xff]
      %v258 = vld [vmem:[%s210 + $0xc4] sm:$0xf]
      %v259 = vld [vmem:[%s210 + $0xc8] sm:$0xff]
      %v260 = vld [vmem:[%s210 + $0xd0] sm:$0xff]
      %v261 = vld [vmem:[%s210 + $0xd8] sm:$0xf]
      %v262 = vld [vmem:[%s210 + $0xdc] sm:$0xff]
      %v263 = vld [vmem:[%s210 + $0xe4] sm:$0xff]
      %v264 = vld [vmem:[%s210 + $0xec] sm:$0xf]
      %v265 = vld [vmem:[%s210 + $0xf0] sm:$0xff]
      %v266 = vld [vmem:[%s210 + $0xf8] sm:$0xff]
      %v267 = vld [vmem:[%s210 + $0x100] sm:$0xf]
      %v268 = vld [vmem:[%s210 + $0x104] sm:$0xff]
      %v269 = vld [vmem:[%s210 + $0x10c] sm:$0xff]
      %v270 = vld [vmem:[%s210 + $0x114] sm:$0xf]
      %v271 = vld [vmem:[%s210 + $0x118] sm:$0xff]
      %v272 = vld [vmem:[%s210 + $0x120] sm:$0xff]
      %v273 = vld [vmem:[%s210 + $0x128] sm:$0xf]
      %v274 = vld [vmem:[%s210 + $0x12c] sm:$0xff]
      %v275 = vld [vmem:[%s210 + $0x134] sm:$0xff]
      %v276 = vld [vmem:[%s210 + $0x13c] sm:$0xf]
      %v277 = vld [vmem:[%s210 + $0x140] sm:$0xff]
      %v278 = vld [vmem:[%s210 + $0x148] sm:$0xff]
      %v279 = vld [vmem:[%s210 + $0x150] sm:$0xf]
      %v280 = vld [vmem:[%s210 + $0x154] sm:$0xff]
      %v281 = vld [vmem:[%s210 + $0x15c] sm:$0xff]
      %v282 = vld [vmem:[%s210 + $0x164] sm:$0xf]
      %v283 = vld [vmem:[%s210 + $0x168] sm:$0xff]
      %v284 = vld [vmem:[%s210 + $0x170] sm:$0xff]
      %v285 = vld [vmem:[%s210 + $0x178] sm:$0xf]
      %v286 = vld [vmem:[%s210 + $0x17c] sm:$0xff]
      %v287 = vld [vmem:[%s210 + $0x184] sm:$0xff]
      %v288 = vld [vmem:[%s210 + $0x18c] sm:$0xf]
      %v289 = vld [vmem:[%s210 + $0x190] sm:$0xff]
      %v290 = vld [vmem:[%s210 + $0x198] sm:$0xff]
      %v291 = vld [vmem:[%s210 + $0x1a0] sm:$0xf]
      %v292 = vld [vmem:[%s210 + $0x1a4] sm:$0xff]
      %v293 = vld [vmem:[%s210 + $0x1ac] sm:$0xff]
      %v294 = vld [vmem:[%s210 + $0x1b4] sm:$0xf]
      %v295 = vld [vmem:[%s210 + $0x1b8] sm:$0xff]
      %v296 = vld [vmem:[%s210 + $0x1c0] sm:$0xff]
      %v297 = vld [vmem:[%s210 + $0x1c8] sm:$0xf]
      %v298 = vld [vmem:[%s210 + $0x1cc] sm:$0xff]
      %v299 = vld [vmem:[%s210 + $0x1d4] sm:$0xff]
      %v300 = vld [vmem:[%s210 + $0x1dc] sm:$0xf]
      %v301 = vld [vmem:[%s210 + $0x1e0] sm:$0xff]
      %v302 = vld [vmem:[%s210 + $0x1e8] sm:$0xff]
      %v303 = vld [vmem:[%s210 + $0x1f0] sm:$0xf]
      %v304 = vld [vmem:[%s210 + $0x1f4] sm:$0xff]
      %v305 = vld [vmem:[%s210 + $0x1fc] sm:$0xff]
      %v306 = vld [vmem:[%s210 + $0x204] sm:$0xf]
      %v307 = vld [vmem:[%s210 + $0x208] sm:$0xff]
      %v308 = vld [vmem:[%s210 + $0x210] sm:$0xff]
      %v309 = vld [vmem:[%s210 + $0x218] sm:$0xf]
      %v310 = vld [vmem:[%s210 + $0x21c] sm:$0xff]
      %v311 = vld [vmem:[%s210 + $0x224] sm:$0xff]
      %v312 = vld [vmem:[%s210 + $0x22c] sm:$0xf]
      %v313 = vld [vmem:[%s210 + $0x230] sm:$0xff]
      %v314 = vld [vmem:[%s210 + $0x238] sm:$0xff]
      %v315 = vld [vmem:[%s210 + $0x240] sm:$0xf]
      %v316 = vld [vmem:[%s210 + $0x244] sm:$0xff]
      %v317 = vld [vmem:[%s210 + $0x24c] sm:$0xff]
      %v318 = vld [vmem:[%s210 + $0x254] sm:$0xf]
      %v319 = vld [vmem:[%s210 + $0x258] sm:$0xff]
      %v320 = vld [vmem:[%s210 + $0x260] sm:$0xff]
      %v321 = vld [vmem:[%s210 + $0x268] sm:$0xf]
      %v322 = vld [vmem:[%s210 + $0x26c] sm:$0xff]
      %v323 = vld [vmem:[%s210 + $0x274] sm:$0xff]
      %v324 = vld [vmem:[%s210 + $0x27c] sm:$0xf]
      %v325 = vld [vmem:[%s215] sm:$0xf]
      %v326 = vld [vmem:[%s215 + $0x4] sm:$0xf]
      %v327 = vld [vmem:[%s215 + $0x8] sm:$0xf]
      %v328 = vld [vmem:[%s215 + $0xc] sm:$0xf]
      %v329 = vld [vmem:[%s215 + $0x10] sm:$0xf]
      %v330 = vld [vmem:[%s215 + $0x14] sm:$0xf]
      %v331 = vld [vmem:[%s215 + $0x18] sm:$0xf]
      %v332 = vld [vmem:[%s215 + $0x1c] sm:$0xf]
      %v333 = vld [vmem:[%s215 + $0x20] sm:$0xf]
      %v334 = vld [vmem:[%s215 + $0x24] sm:$0xf]
      %v335 = vld [vmem:[%s215 + $0x28] sm:$0xf]
      %v336 = vld [vmem:[%s215 + $0x2c] sm:$0xf]
      %v337 = vld [vmem:[%s215 + $0x30] sm:$0xf]
      %v338 = vld [vmem:[%s215 + $0x34] sm:$0xf]
      %v339 = vld [vmem:[%s215 + $0x38] sm:$0xf]
      %v340 = vld [vmem:[%s215 + $0x3c] sm:$0xf]
      %v341 = vld [vmem:[%s215 + $0x40] sm:$0xf]
      %v342 = vld [vmem:[%s215 + $0x44] sm:$0xf]
      %v343 = vld [vmem:[%s215 + $0x48] sm:$0xf]
      %v344 = vld [vmem:[%s215 + $0x4c] sm:$0xf]
      %v345 = vld [vmem:[%s215 + $0x50] sm:$0xf]
      %v346 = vld [vmem:[%s215 + $0x54] sm:$0xf]
      %v347 = vld [vmem:[%s215 + $0x58] sm:$0xf]
      %v348 = vld [vmem:[%s215 + $0x5c] sm:$0xf]
      %v349 = vld [vmem:[%s215 + $0x60] sm:$0xf]
      %v350 = vld [vmem:[%s215 + $0x64] sm:$0xf]
      %v351 = vld [vmem:[%s215 + $0x68] sm:$0xf]
      %v352 = vld [vmem:[%s215 + $0x6c] sm:$0xf]
      %v353 = vld [vmem:[%s215 + $0x70] sm:$0xf]
      %v354 = vld [vmem:[%s215 + $0x74] sm:$0xf]
      %v355 = vld [vmem:[%s215 + $0x78] sm:$0xf]
      %v356 = vld [vmem:[%s215 + $0x7c] sm:$0xf]
      %v357 = vld [vmem:[%s215 + $0x80] sm:$0xf]
      %v358 = vld [vmem:[%s215 + $0x84] sm:$0xf]
      %v359 = vld [vmem:[%s215 + $0x88] sm:$0xf]
      %v360 = vld [vmem:[%s215 + $0x8c] sm:$0xf]
      %v361 = vld [vmem:[%s215 + $0x90] sm:$0xf]
      %v362 = vld [vmem:[%s215 + $0x94] sm:$0xf]
      %v363 = vld [vmem:[%s215 + $0x98] sm:$0xf]
      %v364 = vld [vmem:[%s215 + $0x9c] sm:$0xf]
      %v365 = vld [vmem:[%s215 + $0xa0] sm:$0xf]
      %v366 = vld [vmem:[%s215 + $0xa4] sm:$0xf]
      %v367 = vld [vmem:[%s215 + $0xa8] sm:$0xf]
      %v368 = vld [vmem:[%s215 + $0xac] sm:$0xf]
      %v369 = vld [vmem:[%s215 + $0xb0] sm:$0xf]
      %v370 = vld [vmem:[%s215 + $0xb4] sm:$0xf]
      %v371 = vld [vmem:[%s215 + $0xb8] sm:$0xf]
      %v372 = vld [vmem:[%s215 + $0xbc] sm:$0xf]
      %v373 = vld [vmem:[%s215 + $0xc0] sm:$0xf]
      %v374 = vld [vmem:[%s215 + $0xc4] sm:$0xf]
      %v375 = vld [vmem:[%s215 + $0xc8] sm:$0xf]
      %v376 = vld [vmem:[%s215 + $0xcc] sm:$0xf]
      %v377 = vld [vmem:[%s215 + $0xd0] sm:$0xf]
      %v378 = vld [vmem:[%s215 + $0xd4] sm:$0xf]
      %v379 = vld [vmem:[%s215 + $0xd8] sm:$0xf]
      %v380 = vld [vmem:[%s215 + $0xdc] sm:$0xf]
      %v381 = vld [vmem:[%s215 + $0xe0] sm:$0xf]
      %v382 = vld [vmem:[%s215 + $0xe4] sm:$0xf]
      %v383 = vld [vmem:[%s215 + $0xe8] sm:$0xf]
      %v384 = vld [vmem:[%s215 + $0xec] sm:$0xf]
      %v385 = vld [vmem:[%s215 + $0xf0] sm:$0xf]
      %v386 = vld [vmem:[%s215 + $0xf4] sm:$0xf]
      %v387 = vld [vmem:[%s215 + $0xf8] sm:$0xf]
      %v388 = vld [vmem:[%s215 + $0xfc] sm:$0xf]
      %v389 = vld [vmem:[%s215 + $0x100] sm:$0xf]
      %v390 = vld [vmem:[%s215 + $0x104] sm:$0xf]
      %v391 = vld [vmem:[%s215 + $0x108] sm:$0xf]
      %v392 = vld [vmem:[%s215 + $0x10c] sm:$0xf]
      %v393 = vld [vmem:[%s215 + $0x110] sm:$0xf]
      %v394 = vld [vmem:[%s215 + $0x114] sm:$0xf]
      %v395 = vld [vmem:[%s215 + $0x118] sm:$0xf]
      %v396 = vld [vmem:[%s215 + $0x11c] sm:$0xf]
      %v397 = vld [vmem:[%s215 + $0x120] sm:$0xf]
      %v398 = vld [vmem:[%s215 + $0x124] sm:$0xf]
      %v399 = vld [vmem:[%s215 + $0x128] sm:$0xf]
      %v400 = vld [vmem:[%s215 + $0x12c] sm:$0xf]
      %v401 = vld [vmem:[%s215 + $0x130] sm:$0xf]
      %v402 = vld [vmem:[%s215 + $0x134] sm:$0xf]
      %v403 = vld [vmem:[%s215 + $0x138] sm:$0xf]
      %v404 = vld [vmem:[%s215 + $0x13c] sm:$0xf]
      %v405 = vld [vmem:[%s218] sm:$0x1]
      %v407 = vlaneseq
      %v408 = vshrl.u32 %v407, 7
      %v409 = vsub.s32 0, %v408
      %v410 = vrot.slane %v405, %v409
      %v508 = vunpack.c.l.b16 %v229
      %v509 = vunpack.c.h.b16 %v229
      %v510 = vunpack.c.l.b16 %v230
      %v511 = vunpack.c.h.b16 %v230
      %v512 = vunpack.c.l.b16 %v231
      %v513 = vunpack.c.l.b16 %v232
      %v514 = vunpack.c.h.b16 %v232
      %v515 = vunpack.c.l.b16 %v233
      %v516 = vunpack.c.h.b16 %v233
      %v517 = vunpack.c.l.b16 %v234
      %v518 = vunpack.c.l.b16 %v235
      %v519 = vunpack.c.h.b16 %v235
      %v520 = vunpack.c.l.b16 %v236
      %v521 = vunpack.c.h.b16 %v236
      %v522 = vunpack.c.l.b16 %v237
      %v523 = vunpack.c.l.b16 %v238
      %v524 = vunpack.c.h.b16 %v238
      %v525 = vunpack.c.l.b16 %v239
      %v526 = vunpack.c.h.b16 %v239
      %v527 = vunpack.c.l.b16 %v240
      %v528 = vunpack.c.l.b16 %v241
      %v529 = vunpack.c.h.b16 %v241
      %v530 = vunpack.c.l.b16 %v242
      %v531 = vunpack.c.h.b16 %v242
      %v532 = vunpack.c.l.b16 %v243
      %v533 = vunpack.c.l.b16 %v244
      %v534 = vunpack.c.h.b16 %v244
      %v535 = vunpack.c.l.b16 %v245
      %v536 = vunpack.c.h.b16 %v245
      %v537 = vunpack.c.l.b16 %v246
      %v538 = vunpack.c.l.b16 %v247
      %v539 = vunpack.c.h.b16 %v247
      %v540 = vunpack.c.l.b16 %v248
      %v541 = vunpack.c.h.b16 %v248
      %v542 = vunpack.c.l.b16 %v249
      %v543 = vunpack.c.l.b16 %v250
      %v544 = vunpack.c.h.b16 %v250
      %v545 = vunpack.c.l.b16 %v251
      %v546 = vunpack.c.h.b16 %v251
      %v547 = vunpack.c.l.b16 %v252
      %v548 = vunpack.c.l.b16 %v253
      %v549 = vunpack.c.h.b16 %v253
      %v550 = vunpack.c.l.b16 %v254
      %v551 = vunpack.c.h.b16 %v254
      %v552 = vunpack.c.l.b16 %v255
      %v553 = vunpack.c.l.b16 %v256
      %v554 = vunpack.c.h.b16 %v256
      %v555 = vunpack.c.l.b16 %v257
      %v556 = vunpack.c.h.b16 %v257
      %v557 = vunpack.c.l.b16 %v258
      %v558 = vunpack.c.l.b16 %v259
      %v559 = vunpack.c.h.b16 %v259
      %v560 = vunpack.c.l.b16 %v260
      %v561 = vunpack.c.h.b16 %v260
      %v562 = vunpack.c.l.b16 %v261
      %v563 = vunpack.c.l.b16 %v262
      %v564 = vunpack.c.h.b16 %v262
      %v565 = vunpack.c.l.b16 %v263
      %v566 = vunpack.c.h.b16 %v263
      %v567 = vunpack.c.l.b16 %v264
      %v568 = vunpack.c.l.b16 %v265
      %v569 = vunpack.c.h.b16 %v265
      %v570 = vunpack.c.l.b16 %v266
      %v571 = vunpack.c.h.b16 %v266
      %v572 = vunpack.c.l.b16 %v267
      %v573 = vunpack.c.l.b16 %v268
      %v574 = vunpack.c.h.b16 %v268
      %v575 = vunpack.c.l.b16 %v269
      %v576 = vunpack.c.h.b16 %v269
      %v577 = vunpack.c.l.b16 %v270
      %v578 = vunpack.c.l.b16 %v271
      %v579 = vunpack.c.h.b16 %v271
      %v580 = vunpack.c.l.b16 %v272
      %v581 = vunpack.c.h.b16 %v272
      %v582 = vunpack.c.l.b16 %v273
      %v583 = vunpack.c.l.b16 %v274
      %v584 = vunpack.c.h.b16 %v274
      %v585 = vunpack.c.l.b16 %v275
      %v586 = vunpack.c.h.b16 %v275
      %v587 = vunpack.c.l.b16 %v276
      %v588 = vunpack.c.l.b16 %v277
      %v589 = vunpack.c.h.b16 %v277
      %v590 = vunpack.c.l.b16 %v278
      %v591 = vunpack.c.h.b16 %v278
      %v592 = vunpack.c.l.b16 %v279
      %v593 = vunpack.c.l.b16 %v280
      %v594 = vunpack.c.h.b16 %v280
      %v595 = vunpack.c.l.b16 %v281
      %v596 = vunpack.c.h.b16 %v281
      %v597 = vunpack.c.l.b16 %v282
      %v598 = vunpack.c.l.b16 %v283
      %v599 = vunpack.c.h.b16 %v283
      %v600 = vunpack.c.l.b16 %v284
      %v601 = vunpack.c.h.b16 %v284
      %v602 = vunpack.c.l.b16 %v285
      %v603 = vunpack.c.l.b16 %v286
      %v604 = vunpack.c.h.b16 %v286
      %v605 = vunpack.c.l.b16 %v287
      %v606 = vunpack.c.h.b16 %v287
      %v607 = vunpack.c.l.b16 %v288
      %v608 = vunpack.c.l.b16 %v289
      %v609 = vunpack.c.h.b16 %v289
      %v610 = vunpack.c.l.b16 %v290
      %v611 = vunpack.c.h.b16 %v290
      %v612 = vunpack.c.l.b16 %v291
      %v613 = vunpack.c.l.b16 %v292
      %v614 = vunpack.c.h.b16 %v292
      %v615 = vunpack.c.l.b16 %v293
      %v616 = vunpack.c.h.b16 %v293
      %v617 = vunpack.c.l.b16 %v294
      %v618 = vunpack.c.l.b16 %v295
      %v619 = vunpack.c.h.b16 %v295
      %v620 = vunpack.c.l.b16 %v296
      %v621 = vunpack.c.h.b16 %v296
      %v622 = vunpack.c.l.b16 %v297
      %v623 = vunpack.c.l.b16 %v298
      %v624 = vunpack.c.h.b16 %v298
      %v625 = vunpack.c.l.b16 %v299
      %v626 = vunpack.c.h.b16 %v299
      %v627 = vunpack.c.l.b16 %v300
      %v628 = vunpack.c.l.b16 %v301
      %v629 = vunpack.c.h.b16 %v301
      %v630 = vunpack.c.l.b16 %v302
      %v631 = vunpack.c.h.b16 %v302
      %v632 = vunpack.c.l.b16 %v303
      %v633 = vunpack.c.l.b16 %v304
      %v634 = vunpack.c.h.b16 %v304
      %v635 = vunpack.c.l.b16 %v305
      %v636 = vunpack.c.h.b16 %v305
      %v637 = vunpack.c.l.b16 %v306
      %v638 = vunpack.c.l.b16 %v307
      %v639 = vunpack.c.h.b16 %v307
      %v640 = vunpack.c.l.b16 %v308
      %v641 = vunpack.c.h.b16 %v308
      %v642 = vunpack.c.l.b16 %v309
      %v643 = vunpack.c.l.b16 %v310
      %v644 = vunpack.c.h.b16 %v310
      %v645 = vunpack.c.l.b16 %v311
      %v646 = vunpack.c.h.b16 %v311
      %v647 = vunpack.c.l.b16 %v312
      %v648 = vunpack.c.l.b16 %v313
      %v649 = vunpack.c.h.b16 %v313
      %v650 = vunpack.c.l.b16 %v314
      %v651 = vunpack.c.h.b16 %v314
      %v652 = vunpack.c.l.b16 %v315
      %v653 = vunpack.c.l.b16 %v316
      %v654 = vunpack.c.h.b16 %v316
      %v655 = vunpack.c.l.b16 %v317
      %v656 = vunpack.c.h.b16 %v317
      %v657 = vunpack.c.l.b16 %v318
      %v658 = vunpack.c.l.b16 %v319
      %v659 = vunpack.c.h.b16 %v319
      %v660 = vunpack.c.l.b16 %v320
      %v661 = vunpack.c.h.b16 %v320
      %v662 = vunpack.c.l.b16 %v321
      %v663 = vunpack.c.l.b16 %v322
      %v664 = vunpack.c.h.b16 %v322
      %v665 = vunpack.c.l.b16 %v323
      %v666 = vunpack.c.h.b16 %v323
      %v667 = vunpack.c.l.b16 %v324
      %v668 = vpack.c.b16 %v513, %v508
      %v669 = vpack.c.b16 %v514, %v509
      %v670 = vpack.c.b16 %v515, %v510
      %v671 = vpack.c.b16 %v516, %v511
      %v672 = vpack.c.b16 %v517, %v512
      %v673 = vpack.c.b16 %v523, %v518
      %v674 = vpack.c.b16 %v524, %v519
      %v675 = vpack.c.b16 %v525, %v520
      %v676 = vpack.c.b16 %v526, %v521
      %v677 = vpack.c.b16 %v527, %v522
      %v678 = vpack.c.b16 %v533, %v528
      %v679 = vpack.c.b16 %v534, %v529
      %v680 = vpack.c.b16 %v535, %v530
      %v681 = vpack.c.b16 %v536, %v531
      %v682 = vpack.c.b16 %v537, %v532
      %v683 = vpack.c.b16 %v543, %v538
      %v684 = vpack.c.b16 %v544, %v539
      %v685 = vpack.c.b16 %v545, %v540
      %v686 = vpack.c.b16 %v546, %v541
      %v687 = vpack.c.b16 %v547, %v542
      %v688 = vpack.c.b16 %v553, %v548
      %v689 = vpack.c.b16 %v554, %v549
      %v690 = vpack.c.b16 %v555, %v550
      %v691 = vpack.c.b16 %v556, %v551
      %v692 = vpack.c.b16 %v557, %v552
      %v693 = vpack.c.b16 %v563, %v558
      %v694 = vpack.c.b16 %v564, %v559
      %v695 = vpack.c.b16 %v565, %v560
      %v696 = vpack.c.b16 %v566, %v561
      %v697 = vpack.c.b16 %v567, %v562
      %v698 = vpack.c.b16 %v573, %v568
      %v699 = vpack.c.b16 %v574, %v569
      %v700 = vpack.c.b16 %v575, %v570
      %v701 = vpack.c.b16 %v576, %v571
      %v702 = vpack.c.b16 %v577, %v572
      %v703 = vpack.c.b16 %v583, %v578
      %v704 = vpack.c.b16 %v584, %v579
      %v705 = vpack.c.b16 %v585, %v580
      %v706 = vpack.c.b16 %v586, %v581
      %v707 = vpack.c.b16 %v587, %v582
      %v708 = vpack.c.b16 %v593, %v588
      %v709 = vpack.c.b16 %v594, %v589
      %v710 = vpack.c.b16 %v595, %v590
      %v711 = vpack.c.b16 %v596, %v591
      %v712 = vpack.c.b16 %v597, %v592
      %v713 = vpack.c.b16 %v603, %v598
      %v714 = vpack.c.b16 %v604, %v599
      %v715 = vpack.c.b16 %v605, %v600
      %v716 = vpack.c.b16 %v606, %v601
      %v717 = vpack.c.b16 %v607, %v602
      %v718 = vpack.c.b16 %v613, %v608
      %v719 = vpack.c.b16 %v614, %v609
      %v720 = vpack.c.b16 %v615, %v610
      %v721 = vpack.c.b16 %v616, %v611
      %v722 = vpack.c.b16 %v617, %v612
      %v723 = vpack.c.b16 %v623, %v618
      %v724 = vpack.c.b16 %v624, %v619
      %v725 = vpack.c.b16 %v625, %v620
      %v726 = vpack.c.b16 %v626, %v621
      %v727 = vpack.c.b16 %v627, %v622
      %v728 = vpack.c.b16 %v633, %v628
      %v729 = vpack.c.b16 %v634, %v629
      %v730 = vpack.c.b16 %v635, %v630
      %v731 = vpack.c.b16 %v636, %v631
      %v732 = vpack.c.b16 %v637, %v632
      %v733 = vpack.c.b16 %v643, %v638
      %v734 = vpack.c.b16 %v644, %v639
      %v735 = vpack.c.b16 %v645, %v640
      %v736 = vpack.c.b16 %v646, %v641
      %v737 = vpack.c.b16 %v647, %v642
      %v738 = vpack.c.b16 %v653, %v648
      %v739 = vpack.c.b16 %v654, %v649
      %v740 = vpack.c.b16 %v655, %v650
      %v741 = vpack.c.b16 %v656, %v651
      %v742 = vpack.c.b16 %v657, %v652
      %v743 = vpack.c.b16 %v663, %v658
      %v744 = vpack.c.b16 %v664, %v659
      %v745 = vpack.c.b16 %v665, %v660
      %v746 = vpack.c.b16 %v666, %v661
      %v747 = vpack.c.b16 %v667, %v662
      %v908 = vunpack.c.l.b16 %v325
      %v909 = vunpack.c.l.b16 %v326
      %v910 = vunpack.c.l.b16 %v327
      %v911 = vunpack.c.l.b16 %v328
      %v912 = vunpack.c.l.b16 %v329
      %v913 = vunpack.c.l.b16 %v330
      %v914 = vunpack.c.l.b16 %v331
      %v915 = vunpack.c.l.b16 %v332
      %v916 = vunpack.c.l.b16 %v333
      %v917 = vunpack.c.l.b16 %v334
      %v918 = vunpack.c.l.b16 %v335
      %v919 = vunpack.c.l.b16 %v336
      %v920 = vunpack.c.l.b16 %v337
      %v921 = vunpack.c.l.b16 %v338
      %v922 = vunpack.c.l.b16 %v339
      %v923 = vunpack.c.l.b16 %v340
      %v924 = vunpack.c.l.b16 %v341
      %v925 = vunpack.c.l.b16 %v342
      %v926 = vunpack.c.l.b16 %v343
      %v927 = vunpack.c.l.b16 %v344
      %v928 = vunpack.c.l.b16 %v345
      %v929 = vunpack.c.l.b16 %v346
      %v930 = vunpack.c.l.b16 %v347
      %v931 = vunpack.c.l.b16 %v348
      %v932 = vunpack.c.l.b16 %v349
      %v933 = vunpack.c.l.b16 %v350
      %v934 = vunpack.c.l.b16 %v351
      %v935 = vunpack.c.l.b16 %v352
      %v936 = vunpack.c.l.b16 %v353
      %v937 = vunpack.c.l.b16 %v354
      %v938 = vunpack.c.l.b16 %v355
      %v939 = vunpack.c.l.b16 %v356
      %v940 = vunpack.c.l.b16 %v357
      %v941 = vunpack.c.l.b16 %v358
      %v942 = vunpack.c.l.b16 %v359
      %v943 = vunpack.c.l.b16 %v360
      %v944 = vunpack.c.l.b16 %v361
      %v945 = vunpack.c.l.b16 %v362
      %v946 = vunpack.c.l.b16 %v363
      %v947 = vunpack.c.l.b16 %v364
      %v948 = vunpack.c.l.b16 %v365
      %v949 = vunpack.c.l.b16 %v366
      %v950 = vunpack.c.l.b16 %v367
      %v951 = vunpack.c.l.b16 %v368
      %v952 = vunpack.c.l.b16 %v369
      %v953 = vunpack.c.l.b16 %v370
      %v954 = vunpack.c.l.b16 %v371
      %v955 = vunpack.c.l.b16 %v372
      %v956 = vunpack.c.l.b16 %v373
      %v957 = vunpack.c.l.b16 %v374
      %v958 = vunpack.c.l.b16 %v375
      %v959 = vunpack.c.l.b16 %v376
      %v960 = vunpack.c.l.b16 %v377
      %v961 = vunpack.c.l.b16 %v378
      %v962 = vunpack.c.l.b16 %v379
      %v963 = vunpack.c.l.b16 %v380
      %v964 = vunpack.c.l.b16 %v381
      %v965 = vunpack.c.l.b16 %v382
      %v966 = vunpack.c.l.b16 %v383
      %v967 = vunpack.c.l.b16 %v384
      %v968 = vunpack.c.l.b16 %v385
      %v969 = vunpack.c.l.b16 %v386
      %v970 = vunpack.c.l.b16 %v387
      %v971 = vunpack.c.l.b16 %v388
      %v972 = vunpack.c.l.b16 %v389
      %v973 = vunpack.c.l.b16 %v390
      %v974 = vunpack.c.l.b16 %v391
      %v975 = vunpack.c.l.b16 %v392
      %v976 = vunpack.c.l.b16 %v393
      %v977 = vunpack.c.l.b16 %v394
      %v978 = vunpack.c.l.b16 %v395
      %v979 = vunpack.c.l.b16 %v396
      %v980 = vunpack.c.l.b16 %v397
      %v981 = vunpack.c.l.b16 %v398
      %v982 = vunpack.c.l.b16 %v399
      %v983 = vunpack.c.l.b16 %v400
      %v984 = vunpack.c.l.b16 %v401
      %v985 = vunpack.c.l.b16 %v402
      %v986 = vunpack.c.l.b16 %v403
      %v987 = vunpack.c.l.b16 %v404
      %v988 = vpack.c.b16 %v909, %v908
      %v989 = vpack.c.b16 %v911, %v910
      %v990 = vpack.c.b16 %v913, %v912
      %v991 = vpack.c.b16 %v915, %v914
      %v992 = vpack.c.b16 %v917, %v916
      %v993 = vpack.c.b16 %v919, %v918
      %v994 = vpack.c.b16 %v921, %v920
      %v995 = vpack.c.b16 %v923, %v922
      %v996 = vpack.c.b16 %v925, %v924
      %v997 = vpack.c.b16 %v927, %v926
      %v998 = vpack.c.b16 %v929, %v928
      %v999 = vpack.c.b16 %v931, %v930
      %v1000 = vpack.c.b16 %v933, %v932
      %v1001 = vpack.c.b16 %v935, %v934
      %v1002 = vpack.c.b16 %v937, %v936
      %v1003 = vpack.c.b16 %v939, %v938
      %v1004 = vpack.c.b16 %v941, %v940
      %v1005 = vpack.c.b16 %v943, %v942
      %v1006 = vpack.c.b16 %v945, %v944
      %v1007 = vpack.c.b16 %v947, %v946
      %v1008 = vpack.c.b16 %v949, %v948
      %v1009 = vpack.c.b16 %v951, %v950
      %v1010 = vpack.c.b16 %v953, %v952
      %v1011 = vpack.c.b16 %v955, %v954
      %v1012 = vpack.c.b16 %v957, %v956
      %v1013 = vpack.c.b16 %v959, %v958
      %v1014 = vpack.c.b16 %v961, %v960
      %v1015 = vpack.c.b16 %v963, %v962
      %v1016 = vpack.c.b16 %v965, %v964
      %v1017 = vpack.c.b16 %v967, %v966
      %v1018 = vpack.c.b16 %v969, %v968
      %v1019 = vpack.c.b16 %v971, %v970
      %v1020 = vpack.c.b16 %v973, %v972
      %v1021 = vpack.c.b16 %v975, %v974
      %v1022 = vpack.c.b16 %v977, %v976
      %v1023 = vpack.c.b16 %v979, %v978
      %v1024 = vpack.c.b16 %v981, %v980
      %v1025 = vpack.c.b16 %v983, %v982
      %v1026 = vpack.c.b16 %v985, %v984
      %v1027 = vpack.c.b16 %v987, %v986
      %1068 = vmatprep.subr.bf16.mxu0 0
      %1069 = vmatpush1.bf16.msra.mxu0 %v988
      %1070 = vmatprep.subr.bf16.mxu0 0
      %1071 = vmatpush1.bf16.msra.mxu0 %v989
      %1072 = vmatprep.subr.bf16.mxu0 0
      %1073 = vmatpush1.bf16.msra.mxu0 %v990
      %1074 = vmatprep.subr.bf16.mxu0 0
      %1075 = vmatpush1.bf16.msra.mxu0 %v991
      %1076 = vmatprep.subr.bf16.mxu0 0
      %1077 = vmatpush1.bf16.msra.mxu0 %v992
      %1078 = vmatprep.subr.bf16.mxu0 0
      %1079 = vmatpush1.bf16.msra.mxu0 %v993
      %1080 = vmatprep.subr.bf16.mxu0 0
      %1081 = vmatpush1.bf16.msra.mxu0 %v994
      %1082 = vmatprep.subr.bf16.mxu0 0
      %1083 = vmatpush1.bf16.msra.mxu0 %v995
      %1084 = vmatprep.subr.bf16.mxu0 0
      %1085 = vmatpush1.bf16.msra.mxu0 %v996
      %1086 = vmatprep.subr.bf16.mxu0 0
      %1087 = vmatpush1.bf16.msra.mxu0 %v997
      %1088 = vmatprep.subr.bf16.mxu0 0
      %1089 = vmatpush1.bf16.msra.mxu0 %v998
      %1090 = vmatprep.subr.bf16.mxu0 0
      %1091 = vmatpush1.bf16.msra.mxu0 %v999
      %1092 = vmatprep.subr.bf16.mxu0 0
      %1093 = vmatpush1.bf16.msra.mxu0 %v1000
      %1094 = vmatprep.subr.bf16.mxu0 0
      %1095 = vmatpush1.bf16.msra.mxu0 %v1001
      %1096 = vmatprep.subr.bf16.mxu0 0
      %1097 = vmatpush1.bf16.msra.mxu0 %v1002
      %1098 = vmatprep.subr.bf16.mxu0 0
      %1099 = vmatpush1.bf16.msra.mxu0 %v1003
      %1100 = vmatprep.mubr.bf16.mxu0 %v669
      %1101 = vmatmul.mubr.bf16.gmra.mrb[0].mxu0 %v668
      %v1102 = vpop.f32.mrb[0].mxu0
      %v1103 = vadd.f32 %v410, %v1102
      %v1104 = vpop.f32.mrb[0].mxu0
      %v1105 = vpop.f32.mrb[0].mxu0
      %v1106 = vadd.f32 %v410, %v1105
      %v1107 = vpop.f32.mrb[0].mxu0
      %1108 = vmatprep.mubr.bf16.mxu0 %v674
      %1109 = vmatmul.mubr.bf16.gmra.mrb[0].mxu0 %v673
      %v1110 = vpop.f32.mrb[0].mxu0
      %v1111 = vadd.f32 %v410, %v1110
      %v1112 = vpop.f32.mrb[0].mxu0
      %v1113 = vpop.f32.mrb[0].mxu0
      %v1114 = vadd.f32 %v410, %v1113
      %v1115 = vpop.f32.mrb[0].mxu0
      %1116 = vmatprep.mubr.bf16.mxu0 %v679
      %1117 = vmatmul.mubr.bf16.gmra.mrb[0].mxu0 %v678
      %v1118 = vpop.f32.mrb[0].mxu0
      %v1119 = vadd.f32 %v410, %v1118
      %v1120 = vpop.f32.mrb[0].mxu0
      %v1121 = vpop.f32.mrb[0].mxu0
      %v1122 = vadd.f32 %v410, %v1121
      %v1123 = vpop.f32.mrb[0].mxu0
      %1124 = vmatprep.mubr.bf16.mxu0 %v684
      %1125 = vmatmul.mubr.bf16.gmra.mrb[0].mxu0 %v683
      %v1126 = vpop.f32.mrb[0].mxu0
      %v1127 = vadd.f32 %v410, %v1126
      %v1128 = vpop.f32.mrb[0].mxu0
      %v1129 = vpop.f32.mrb[0].mxu0
      %v1130 = vadd.f32 %v410, %v1129
      %v1131 = vpop.f32.mrb[0].mxu0
      %1132 = vmatprep.mubr.bf16.mxu0 %v689
      %1133 = vmatmul.mubr.bf16.gmra.mrb[0].mxu0 %v688
      %v1134 = vpop.f32.mrb[0].mxu0
      %v1135 = vadd.f32 %v410, %v1134
      %v1136 = vpop.f32.mrb[0].mxu0
      %v1137 = vpop.f32.mrb[0].mxu0
      %v1138 = vadd.f32 %v410, %v1137
      %v1139 = vpop.f32.mrb[0].mxu0
      %1140 = vmatprep.mubr.bf16.mxu0 %v694
      %1141 = vmatmul.mubr.bf16.gmra.mrb[0].mxu0 %v693
      %v1142 = vpop.f32.mrb[0].mxu0
      %v1143 = vadd.f32 %v410, %v1142
      %v1144 = vpop.f32.mrb[0].mxu0
      %v1145 = vpop.f32.mrb[0].mxu0
      %v1146 = vadd.f32 %v410, %v1145
      %v1147 = vpop.f32.mrb[0].mxu0
      %1148 = vmatprep.mubr.bf16.mxu0 %v699
      %1149 = vmatmul.mubr.bf16.gmra.mrb[0].mxu0 %v698
      %v1150 = vpop.f32.mrb[0].mxu0
      %v1151 = vadd.f32 %v410, %v1150
      %v1152 = vpop.f32.mrb[0].mxu0
      %v1153 = vpop.f32.mrb[0].mxu0
      %v1154 = vadd.f32 %v410, %v1153
      %v1155 = vpop.f32.mrb[0].mxu0
      %1156 = vmatprep.mubr.bf16.mxu0 %v704
      %1157 = vmatmul.mubr.bf16.gmra.mrb[0].mxu0 %v703
      %v1158 = vpop.f32.mrb[0].mxu0
      %v1159 = vadd.f32 %v410, %v1158
      %v1160 = vpop.f32.mrb[0].mxu0
      %v1161 = vpop.f32.mrb[0].mxu0
      %v1162 = vadd.f32 %v410, %v1161
      %v1163 = vpop.f32.mrb[0].mxu0
      %1164 = vmatprep.mubr.bf16.mxu0 %v709
      %1165 = vmatmul.mubr.bf16.gmra.mrb[0].mxu0 %v708
      %v1166 = vpop.f32.mrb[0].mxu0
      %v1167 = vadd.f32 %v410, %v1166
      %v1168 = vpop.f32.mrb[0].mxu0
      %v1169 = vpop.f32.mrb[0].mxu0
      %v1170 = vadd.f32 %v410, %v1169
      %v1171 = vpop.f32.mrb[0].mxu0
      %1172 = vmatprep.mubr.bf16.mxu0 %v714
      %1173 = vmatmul.mubr.bf16.gmra.mrb[0].mxu0 %v713
      %v1174 = vpop.f32.mrb[0].mxu0
      %v1175 = vadd.f32 %v410, %v1174
      %v1176 = vpop.f32.mrb[0].mxu0
      %v1177 = vpop.f32.mrb[0].mxu0
      %v1178 = vadd.f32 %v410, %v1177
      %v1179 = vpop.f32.mrb[0].mxu0
      %1180 = vmatprep.mubr.bf16.mxu0 %v719
      %1181 = vmatmul.mubr.bf16.gmra.mrb[0].mxu0 %v718
      %v1182 = vpop.f32.mrb[0].mxu0
      %v1183 = vadd.f32 %v410, %v1182
      %v1184 = vpop.f32.mrb[0].mxu0
      %v1185 = vpop.f32.mrb[0].mxu0
      %v1186 = vadd.f32 %v410, %v1185
      %v1187 = vpop.f32.mrb[0].mxu0
      %1188 = vmatprep.mubr.bf16.mxu0 %v724
      %1189 = vmatmul.mubr.bf16.gmra.mrb[0].mxu0 %v723
      %v1190 = vpop.f32.mrb[0].mxu0
      %v1191 = vadd.f32 %v410, %v1190
      %v1192 = vpop.f32.mrb[0].mxu0
      %v1193 = vpop.f32.mrb[0].mxu0
      %v1194 = vadd.f32 %v410, %v1193
      %v1195 = vpop.f32.mrb[0].mxu0
      %1196 = vmatprep.mubr.bf16.mxu0 %v729
      %1197 = vmatmul.mubr.bf16.gmra.mrb[0].mxu0 %v728
      %v1198 = vpop.f32.mrb[0].mxu0
      %v1199 = vadd.f32 %v410, %v1198
      %v1200 = vpop.f32.mrb[0].mxu0
      %v1201 = vpop.f32.mrb[0].mxu0
      %v1202 = vadd.f32 %v410, %v1201
      %v1203 = vpop.f32.mrb[0].mxu0
      %1204 = vmatprep.mubr.bf16.mxu0 %v734
      %1205 = vmatmul.mubr.bf16.gmra.mrb[0].mxu0 %v733
      %v1206 = vpop.f32.mrb[0].mxu0
      %v1207 = vadd.f32 %v410, %v1206
      %v1208 = vpop.f32.mrb[0].mxu0
      %v1209 = vpop.f32.mrb[0].mxu0
      %v1210 = vadd.f32 %v410, %v1209
      %v1211 = vpop.f32.mrb[0].mxu0
      %1212 = vmatprep.mubr.bf16.mxu0 %v739
      %1213 = vmatmul.mubr.bf16.gmra.mrb[0].mxu0 %v738
      %v1214 = vpop.f32.mrb[0].mxu0
      %v1215 = vadd.f32 %v410, %v1214
      %v1216 = vpop.f32.mrb[0].mxu0
      %v1217 = vpop.f32.mrb[0].mxu0
      %v1218 = vadd.f32 %v410, %v1217
      %v1219 = vpop.f32.mrb[0].mxu0
      %1220 = vmatprep.mubr.bf16.mxu0 %v744
      %1221 = vmatmul.mubr.bf16.gmra.mrb[0].mxu0 %v743
      %v1222 = vpop.f32.mrb[0].mxu0
      %v1223 = vadd.f32 %v410, %v1222
      %v1224 = vpop.f32.mrb[0].mxu0
      %v1225 = vpop.f32.mrb[0].mxu0
      %v1226 = vadd.f32 %v410, %v1225
      %v1227 = vpop.f32.mrb[0].mxu0
      %1228 = vdwg.mxu0
      %1229 = vmatprep.subr.bf16.mxu0 0
      %1230 = vmatpush1.bf16.msra.mxu0 %v1004
      %1231 = vmatprep.subr.bf16.mxu0 0
      %1232 = vmatpush1.bf16.msra.mxu0 %v1005
      %1233 = vmatprep.subr.bf16.mxu0 0
      %1234 = vmatpush1.bf16.msra.mxu0 %v1006
      %1235 = vmatprep.subr.bf16.mxu0 0
      %1236 = vmatpush1.bf16.msra.mxu0 %v1007
      %1237 = vmatprep.subr.bf16.mxu0 0
      %1238 = vmatpush1.bf16.msra.mxu0 %v1008
      %1239 = vmatprep.subr.bf16.mxu0 0
      %1240 = vmatpush1.bf16.msra.mxu0 %v1009
      %1241 = vmatprep.subr.bf16.mxu0 0
      %1242 = vmatpush1.bf16.msra.mxu0 %v1010
      %1243 = vmatprep.subr.bf16.mxu0 0
      %1244 = vmatpush1.bf16.msra.mxu0 %v1011
      %1245 = vmatprep.subr.bf16.mxu0 0
      %1246 = vmatpush1.bf16.msra.mxu0 %v1012
      %1247 = vmatprep.subr.bf16.mxu0 0
      %1248 = vmatpush1.bf16.msra.mxu0 %v1013
      %1249 = vmatprep.subr.bf16.mxu0 0
      %1250 = vmatpush1.bf16.msra.mxu0 %v1014
      %1251 = vmatprep.subr.bf16.mxu0 0
      %1252 = vmatpush1.bf16.msra.mxu0 %v1015
      %1253 = vmatprep.subr.bf16.mxu0 0
      %1254 = vmatpush1.bf16.msra.mxu0 %v1016
      %1255 = vmatprep.subr.bf16.mxu0 0
      %1256 = vmatpush1.bf16.msra.mxu0 %v1017
      %1257 = vmatprep.subr.bf16.mxu0 0
      %1258 = vmatpush1.bf16.msra.mxu0 %v1018
      %1259 = vmatprep.subr.bf16.mxu0 0
      %1260 = vmatpush1.bf16.msra.mxu0 %v1019
      %1261 = vmatprep.mubr.bf16.mxu0 %v671
      %1262 = vmatmul.mubr.bf16.gmra.mrb[0].mxu0 %v670
      %v1263 = vpop.f32.mrb[0].mxu0
      %v1264 = vadd.f32 %v1103, %v1263
      %v1265 = vpop.f32.mrb[0].mxu0
      %v1266 = vpop.f32.mrb[0].mxu0
      %v1267 = vadd.f32 %v1106, %v1266
      %v1268 = vpop.f32.mrb[0].mxu0
      %1269 = vmatprep.mubr.bf16.mxu0 %v676
      %1270 = vmatmul.mubr.bf16.gmra.mrb[0].mxu0 %v675
      %v1271 = vpop.f32.mrb[0].mxu0
      %v1272 = vadd.f32 %v1111, %v1271
      %v1273 = vpop.f32.mrb[0].mxu0
      %v1274 = vpop.f32.mrb[0].mxu0
      %v1275 = vadd.f32 %v1114, %v1274
      %v1276 = vpop.f32.mrb[0].mxu0
      %1277 = vmatprep.mubr.bf16.mxu0 %v681
      %1278 = vmatmul.mubr.bf16.gmra.mrb[0].mxu0 %v680
      %v1279 = vpop.f32.mrb[0].mxu0
      %v1280 = vadd.f32 %v1119, %v1279
      %v1281 = vpop.f32.mrb[0].mxu0
      %v1282 = vpop.f32.mrb[0].mxu0
      %v1283 = vadd.f32 %v1122, %v1282
      %v1284 = vpop.f32.mrb[0].mxu0
      %1285 = vmatprep.mubr.bf16.mxu0 %v686
      %1286 = vmatmul.mubr.bf16.gmra.mrb[0].mxu0 %v685
      %v1287 = vpop.f32.mrb[0].mxu0
      %v1288 = vadd.f32 %v1127, %v1287
      %v1289 = vpop.f32.mrb[0].mxu0
      %v1290 = vpop.f32.mrb[0].mxu0
      %v1291 = vadd.f32 %v1130, %v1290
      %v1292 = vpop.f32.mrb[0].mxu0
      %1293 = vmatprep.mubr.bf16.mxu0 %v691
      %1294 = vmatmul.mubr.bf16.gmra.mrb[0].mxu0 %v690
      %v1295 = vpop.f32.mrb[0].mxu0
      %v1296 = vadd.f32 %v1135, %v1295
      %v1297 = vpop.f32.mrb[0].mxu0
      %v1298 = vpop.f32.mrb[0].mxu0
      %v1299 = vadd.f32 %v1138, %v1298
      %v1300 = vpop.f32.mrb[0].mxu0
      %1301 = vmatprep.mubr.bf16.mxu0 %v696
      %1302 = vmatmul.mubr.bf16.gmra.mrb[0].mxu0 %v695
      %v1303 = vpop.f32.mrb[0].mxu0
      %v1304 = vadd.f32 %v1143, %v1303
      %v1305 = vpop.f32.mrb[0].mxu0
      %v1306 = vpop.f32.mrb[0].mxu0
      %v1307 = vadd.f32 %v1146, %v1306
      %v1308 = vpop.f32.mrb[0].mxu0
      %1309 = vmatprep.mubr.bf16.mxu0 %v701
      %1310 = vmatmul.mubr.bf16.gmra.mrb[0].mxu0 %v700
      %v1311 = vpop.f32.mrb[0].mxu0
      %v1312 = vadd.f32 %v1151, %v1311
      %v1313 = vpop.f32.mrb[0].mxu0
      %v1314 = vpop.f32.mrb[0].mxu0
      %v1315 = vadd.f32 %v1154, %v1314
      %v1316 = vpop.f32.mrb[0].mxu0
      %1317 = vmatprep.mubr.bf16.mxu0 %v706
      %1318 = vmatmul.mubr.bf16.gmra.mrb[0].mxu0 %v705
      %v1319 = vpop.f32.mrb[0].mxu0
      %v1320 = vadd.f32 %v1159, %v1319
      %v1321 = vpop.f32.mrb[0].mxu0
      %v1322 = vpop.f32.mrb[0].mxu0
      %v1323 = vadd.f32 %v1162, %v1322
      %v1324 = vpop.f32.mrb[0].mxu0
      %1325 = vmatprep.mubr.bf16.mxu0 %v711
      %1326 = vmatmul.mubr.bf16.gmra.mrb[0].mxu0 %v710
      %v1327 = vpop.f32.mrb[0].mxu0
      %v1328 = vadd.f32 %v1167, %v1327
      %v1329 = vpop.f32.mrb[0].mxu0
      %v1330 = vpop.f32.mrb[0].mxu0
      %v1331 = vadd.f32 %v1170, %v1330
      %v1332 = vpop.f32.mrb[0].mxu0
      %1333 = vmatprep.mubr.bf16.mxu0 %v716
      %1334 = vmatmul.mubr.bf16.gmra.mrb[0].mxu0 %v715
      %v1335 = vpop.f32.mrb[0].mxu0
      %v1336 = vadd.f32 %v1175, %v1335
      %v1337 = vpop.f32.mrb[0].mxu0
      %v1338 = vpop.f32.mrb[0].mxu0
      %v1339 = vadd.f32 %v1178, %v1338
      %v1340 = vpop.f32.mrb[0].mxu0
      %1341 = vmatprep.mubr.bf16.mxu0 %v721
      %1342 = vmatmul.mubr.bf16.gmra.mrb[0].mxu0 %v720
      %v1343 = vpop.f32.mrb[0].mxu0
      %v1344 = vadd.f32 %v1183, %v1343
      %v1345 = vpop.f32.mrb[0].mxu0
      %v1346 = vpop.f32.mrb[0].mxu0
      %v1347 = vadd.f32 %v1186, %v1346
      %v1348 = vpop.f32.mrb[0].mxu0
      %1349 = vmatprep.mubr.bf16.mxu0 %v726
      %1350 = vmatmul.mubr.bf16.gmra.mrb[0].mxu0 %v725
      %v1351 = vpop.f32.mrb[0].mxu0
      %v1352 = vadd.f32 %v1191, %v1351
      %v1353 = vpop.f32.mrb[0].mxu0
      %v1354 = vpop.f32.mrb[0].mxu0
      %v1355 = vadd.f32 %v1194, %v1354
      %v1356 = vpop.f32.mrb[0].mxu0
      %1357 = vmatprep.mubr.bf16.mxu0 %v731
      %1358 = vmatmul.mubr.bf16.gmra.mrb[0].mxu0 %v730
      %v1359 = vpop.f32.mrb[0].mxu0
      %v1360 = vadd.f32 %v1199, %v1359
      %v1361 = vpop.f32.mrb[0].mxu0
      %v1362 = vpop.f32.mrb[0].mxu0
      %v1363 = vadd.f32 %v1202, %v1362
      %v1364 = vpop.f32.mrb[0].mxu0
      %1365 = vmatprep.mubr.bf16.mxu0 %v736
      %1366 = vmatmul.mubr.bf16.gmra.mrb[0].mxu0 %v735
      %v1367 = vpop.f32.mrb[0].mxu0
      %v1368 = vadd.f32 %v1207, %v1367
      %v1369 = vpop.f32.mrb[0].mxu0
      %v1370 = vpop.f32.mrb[0].mxu0
      %v1371 = vadd.f32 %v1210, %v1370
      %v1372 = vpop.f32.mrb[0].mxu0
      %1373 = vmatprep.mubr.bf16.mxu0 %v741
      %1374 = vmatmul.mubr.bf16.gmra.mrb[0].mxu0 %v740
      %v1375 = vpop.f32.mrb[0].mxu0
      %v1376 = vadd.f32 %v1215, %v1375
      %v1377 = vpop.f32.mrb[0].mxu0
      %v1378 = vpop.f32.mrb[0].mxu0
      %v1379 = vadd.f32 %v1218, %v1378
      %v1380 = vpop.f32.mrb[0].mxu0
      %1381 = vmatprep.mubr.bf16.mxu0 %v746
      %1382 = vmatmul.mubr.bf16.gmra.mrb[0].mxu0 %v745
      %v1383 = vpop.f32.mrb[0].mxu0
      %v1384 = vadd.f32 %v1223, %v1383
      %v1385 = vpop.f32.mrb[0].mxu0
      %v1386 = vpop.f32.mrb[0].mxu0
      %v1387 = vadd.f32 %v1226, %v1386
      %v1388 = vpop.f32.mrb[0].mxu0
      %1389 = vdwg.mxu0
      %1390 = vmatprep.subr.bf16.mxu0 0
      %1391 = vmatpush1.bf16.msra.mxu0 %v1020
      %1392 = vmatprep.subr.bf16.mxu0 0
      %1393 = vmatpush1.bf16.msra.mxu0 %v1021
      %1394 = vmatprep.subr.bf16.mxu0 0
      %1395 = vmatpush1.bf16.msra.mxu0 %v1022
      %1396 = vmatprep.subr.bf16.mxu0 0
      %1397 = vmatpush1.bf16.msra.mxu0 %v1023
      %1398 = vmatprep.subr.bf16.mxu0 0
      %1399 = vmatpush1.bf16.msra.mxu0 %v1024
      %1400 = vmatprep.subr.bf16.mxu0 0
      %1401 = vmatpush1.bf16.msra.mxu0 %v1025
      %1402 = vmatprep.subr.bf16.mxu0 0
      %1403 = vmatpush1.bf16.msra.mxu0 %v1026
      %1404 = vmatprep.subr.bf16.mxu0 0
      %1405 = vmatpush1.bf16.msra.mxu0 %v1027
      %1406 = vmatprep.subr.bf16.mxu0 0
      %1407 = vmatpush1.bf16.msra.mxu0 0
      %1408 = vmatprep.subr.bf16.mxu0 0
      %1409 = vmatpush1.bf16.msra.mxu0 0
      %1410 = vmatprep.subr.bf16.mxu0 0
      %1411 = vmatpush1.bf16.msra.mxu0 0
      %1412 = vmatprep.subr.bf16.mxu0 0
      %1413 = vmatpush1.bf16.msra.mxu0 0
      %1414 = vmatprep.subr.bf16.mxu0 0
      %1415 = vmatpush1.bf16.msra.mxu0 0
      %1416 = vmatprep.subr.bf16.mxu0 0
      %1417 = vmatpush1.bf16.msra.mxu0 0
      %1418 = vmatprep.subr.bf16.mxu0 0
      %1419 = vmatpush1.bf16.msra.mxu0 0
      %1420 = vmatprep.subr.bf16.mxu0 0
      %1421 = vmatpush1.bf16.msra.mxu0 0
      %1422 = vmatprep.mubr.bf16.mxu0 0
      %1423 = vmatmul.mubr.bf16.gmra.mrb[0].mxu0 %v672
      %v1424 = vpop.f32.mrb[0].mxu0
      %v1425 = vadd.f32 %v1264, %v1424
      %v1426 = vpop.f32.mrb[0].mxu0
      %v1427 = vpop.f32.mrb[0].mxu0
      %v1428 = vadd.f32 %v1267, %v1427
      %v1429 = vpop.f32.mrb[0].mxu0
      %1430 = vmatprep.mubr.bf16.mxu0 0
      %1431 = vmatmul.mubr.bf16.gmra.mrb[0].mxu0 %v677
      %v1432 = vpop.f32.mrb[0].mxu0
      %v1433 = vadd.f32 %v1272, %v1432
      %v1434 = vpop.f32.mrb[0].mxu0
      %v1435 = vpop.f32.mrb[0].mxu0
      %v1436 = vadd.f32 %v1275, %v1435
      %v1437 = vpop.f32.mrb[0].mxu0
      %1438 = vmatprep.mubr.bf16.mxu0 0
      %1439 = vmatmul.mubr.bf16.gmra.mrb[0].mxu0 %v682
      %v1440 = vpop.f32.mrb[0].mxu0
      %v1441 = vadd.f32 %v1280, %v1440
      %v1442 = vpop.f32.mrb[0].mxu0
      %v1443 = vpop.f32.mrb[0].mxu0
      %v1444 = vadd.f32 %v1283, %v1443
      %v1445 = vpop.f32.mrb[0].mxu0
      %1446 = vmatprep.mubr.bf16.mxu0 0
      %1447 = vmatmul.mubr.bf16.gmra.mrb[0].mxu0 %v687
      %v1448 = vpop.f32.mrb[0].mxu0
      %v1449 = vadd.f32 %v1288, %v1448
      %v1450 = vpop.f32.mrb[0].mxu0
      %v1451 = vpop.f32.mrb[0].mxu0
      %v1452 = vadd.f32 %v1291, %v1451
      %v1453 = vpop.f32.mrb[0].mxu0
      %1454 = vmatprep.mubr.bf16.mxu0 0
      %1455 = vmatmul.mubr.bf16.gmra.mrb[0].mxu0 %v692
      %v1456 = vpop.f32.mrb[0].mxu0
      %v1457 = vadd.f32 %v1296, %v1456
      %v1458 = vpop.f32.mrb[0].mxu0
      %v1459 = vpop.f32.mrb[0].mxu0
      %v1460 = vadd.f32 %v1299, %v1459
      %v1461 = vpop.f32.mrb[0].mxu0
      %1462 = vmatprep.mubr.bf16.mxu0 0
      %1463 = vmatmul.mubr.bf16.gmra.mrb[0].mxu0 %v697
      %v1464 = vpop.f32.mrb[0].mxu0
      %v1465 = vadd.f32 %v1304, %v1464
      %v1466 = vpop.f32.mrb[0].mxu0
      %v1467 = vpop.f32.mrb[0].mxu0
      %v1468 = vadd.f32 %v1307, %v1467
      %v1469 = vpop.f32.mrb[0].mxu0
      %1470 = vmatprep.mubr.bf16.mxu0 0
      %1471 = vmatmul.mubr.bf16.gmra.mrb[0].mxu0 %v702
      %v1472 = vpop.f32.mrb[0].mxu0
      %v1473 = vadd.f32 %v1312, %v1472
      %v1474 = vpop.f32.mrb[0].mxu0
      %v1475 = vpop.f32.mrb[0].mxu0
      %v1476 = vadd.f32 %v1315, %v1475
      %v1477 = vpop.f32.mrb[0].mxu0
      %1478 = vmatprep.mubr.bf16.mxu0 0
      %1479 = vmatmul.mubr.bf16.gmra.mrb[0].mxu0 %v707
      %v1480 = vpop.f32.mrb[0].mxu0
      %v1481 = vadd.f32 %v1320, %v1480
      %v1482 = vpop.f32.mrb[0].mxu0
      %v1483 = vpop.f32.mrb[0].mxu0
      %v1484 = vadd.f32 %v1323, %v1483
      %v1485 = vpop.f32.mrb[0].mxu0
      %1486 = vmatprep.mubr.bf16.mxu0 0
      %1487 = vmatmul.mubr.bf16.gmra.mrb[0].mxu0 %v712
      %v1488 = vpop.f32.mrb[0].mxu0
      %v1489 = vadd.f32 %v1328, %v1488
      %v1490 = vpop.f32.mrb[0].mxu0
      %v1491 = vpop.f32.mrb[0].mxu0
      %v1492 = vadd.f32 %v1331, %v1491
      %v1493 = vpop.f32.mrb[0].mxu0
      %1494 = vmatprep.mubr.bf16.mxu0 0
      %1495 = vmatmul.mubr.bf16.gmra.mrb[0].mxu0 %v717
      %v1496 = vpop.f32.mrb[0].mxu0
      %v1497 = vadd.f32 %v1336, %v1496
      %v1498 = vpop.f32.mrb[0].mxu0
      %v1499 = vpop.f32.mrb[0].mxu0
      %v1500 = vadd.f32 %v1339, %v1499
      %v1501 = vpop.f32.mrb[0].mxu0
      %1502 = vmatprep.mubr.bf16.mxu0 0
      %1503 = vmatmul.mubr.bf16.gmra.mrb[0].mxu0 %v722
      %v1504 = vpop.f32.mrb[0].mxu0
      %v1505 = vadd.f32 %v1344, %v1504
      %v1506 = vpop.f32.mrb[0].mxu0
      %v1507 = vpop.f32.mrb[0].mxu0
      %v1508 = vadd.f32 %v1347, %v1507
      %v1509 = vpop.f32.mrb[0].mxu0
      %1510 = vmatprep.mubr.bf16.mxu0 0
      %1511 = vmatmul.mubr.bf16.gmra.mrb[0].mxu0 %v727
      %v1512 = vpop.f32.mrb[0].mxu0
      %v1513 = vadd.f32 %v1352, %v1512
      %v1514 = vpop.f32.mrb[0].mxu0
      %v1515 = vpop.f32.mrb[0].mxu0
      %v1516 = vadd.f32 %v1355, %v1515
      %v1517 = vpop.f32.mrb[0].mxu0
      %1518 = vmatprep.mubr.bf16.mxu0 0
      %1519 = vmatmul.mubr.bf16.gmra.mrb[0].mxu0 %v732
      %v1520 = vpop.f32.mrb[0].mxu0
      %v1521 = vadd.f32 %v1360, %v1520
      %v1522 = vpop.f32.mrb[0].mxu0
      %v1523 = vpop.f32.mrb[0].mxu0
      %v1524 = vadd.f32 %v1363, %v1523
      %v1525 = vpop.f32.mrb[0].mxu0
      %1526 = vmatprep.mubr.bf16.mxu0 0
      %1527 = vmatmul.mubr.bf16.gmra.mrb[0].mxu0 %v737
      %v1528 = vpop.f32.mrb[0].mxu0
      %v1529 = vadd.f32 %v1368, %v1528
      %v1530 = vpop.f32.mrb[0].mxu0
      %v1531 = vpop.f32.mrb[0].mxu0
      %v1532 = vadd.f32 %v1371, %v1531
      %v1533 = vpop.f32.mrb[0].mxu0
      %1534 = vmatprep.mubr.bf16.mxu0 0
      %1535 = vmatmul.mubr.bf16.gmra.mrb[0].mxu0 %v742
      %v1536 = vpop.f32.mrb[0].mxu0
      %v1537 = vadd.f32 %v1376, %v1536
      %v1538 = vpop.f32.mrb[0].mxu0
      %v1539 = vpop.f32.mrb[0].mxu0
      %v1540 = vadd.f32 %v1379, %v1539
      %v1541 = vpop.f32.mrb[0].mxu0
      %1542 = vmatprep.mubr.bf16.mxu0 0
      %1543 = vmatmul.mubr.bf16.gmra.mrb[0].mxu0 %v747
      %v1544 = vpop.f32.mrb[0].mxu0
      %v1545 = vadd.f32 %v1384, %v1544
      %v1546 = vpop.f32.mrb[0].mxu0
      %v1547 = vpop.f32.mrb[0].mxu0
      %v1548 = vadd.f32 %v1387, %v1547
      %v1549 = vpop.f32.mrb[0].mxu0
      %1550 = vdwg.mxu0
      %v1551 = vmax.f32 %v1425, 0.0
      %v1552 = vmax.f32 %v1428, 0.0
      %v1553 = vmax.f32 %v1433, 0.0
      %v1554 = vmax.f32 %v1436, 0.0
      %v1555 = vmax.f32 %v1441, 0.0
      %v1556 = vmax.f32 %v1444, 0.0
      %v1557 = vmax.f32 %v1449, 0.0
      %v1558 = vmax.f32 %v1452, 0.0
      %v1559 = vmax.f32 %v1457, 0.0
      %v1560 = vmax.f32 %v1460, 0.0
      %v1561 = vmax.f32 %v1465, 0.0
      %v1562 = vmax.f32 %v1468, 0.0
      %v1563 = vmax.f32 %v1473, 0.0
      %v1564 = vmax.f32 %v1476, 0.0
      %v1565 = vmax.f32 %v1481, 0.0
      %v1566 = vmax.f32 %v1484, 0.0
      %v1567 = vmax.f32 %v1489, 0.0
      %v1568 = vmax.f32 %v1492, 0.0
      %v1569 = vmax.f32 %v1497, 0.0
      %v1570 = vmax.f32 %v1500, 0.0
      %v1571 = vmax.f32 %v1505, 0.0
      %v1572 = vmax.f32 %v1508, 0.0
      %v1573 = vmax.f32 %v1513, 0.0
      %v1574 = vmax.f32 %v1516, 0.0
      %v1575 = vmax.f32 %v1521, 0.0
      %v1576 = vmax.f32 %v1524, 0.0
      %v1577 = vmax.f32 %v1529, 0.0
      %v1578 = vmax.f32 %v1532, 0.0
      %v1579 = vmax.f32 %v1537, 0.0
      %v1580 = vmax.f32 %v1540, 0.0
      %v1581 = vmax.f32 %v1545, 0.0
      %v1582 = vmax.f32 %v1548, 0.0
      %v1583 = vpack.c.bf16 %v1552, %v1551
      %v1584 = vpack.c.bf16 %v1554, %v1553
      %v1585 = vpack.c.bf16 %v1556, %v1555
      %v1586 = vpack.c.bf16 %v1558, %v1557
      %v1587 = vpack.c.bf16 %v1560, %v1559
      %v1588 = vpack.c.bf16 %v1562, %v1561
      %v1589 = vpack.c.bf16 %v1564, %v1563
      %v1590 = vpack.c.bf16 %v1566, %v1565
      %v1591 = vpack.c.bf16 %v1568, %v1567
      %v1592 = vpack.c.bf16 %v1570, %v1569
      %v1593 = vpack.c.bf16 %v1572, %v1571
      %v1594 = vpack.c.bf16 %v1574, %v1573
      %v1595 = vpack.c.bf16 %v1576, %v1575
      %v1596 = vpack.c.bf16 %v1578, %v1577
      %v1597 = vpack.c.bf16 %v1580, %v1579
      %v1598 = vpack.c.bf16 %v1582, %v1581
      %v1615 = vunpack.c.l.b16 %v1583
      %v1616 = vunpack.c.h.b16 %v1583
      %v1617 = vunpack.c.l.b16 %v1584
      %v1618 = vunpack.c.h.b16 %v1584
      %v1619 = vunpack.c.l.b16 %v1585
      %v1620 = vunpack.c.h.b16 %v1585
      %v1621 = vunpack.c.l.b16 %v1586
      %v1622 = vunpack.c.h.b16 %v1586
      %v1623 = vunpack.c.l.b16 %v1587
      %v1624 = vunpack.c.h.b16 %v1587
      %v1625 = vunpack.c.l.b16 %v1588
      %v1626 = vunpack.c.h.b16 %v1588
      %v1627 = vunpack.c.l.b16 %v1589
      %v1628 = vunpack.c.h.b16 %v1589
      %v1629 = vunpack.c.l.b16 %v1590
      %v1630 = vunpack.c.h.b16 %v1590
      %v1631 = vunpack.c.l.b16 %v1591
      %v1632 = vunpack.c.h.b16 %v1591
      %v1633 = vunpack.c.l.b16 %v1592
      %v1634 = vunpack.c.h.b16 %v1592
      %v1635 = vunpack.c.l.b16 %v1593
      %v1636 = vunpack.c.h.b16 %v1593
      %v1637 = vunpack.c.l.b16 %v1594
      %v1638 = vunpack.c.h.b16 %v1594
      %v1639 = vunpack.c.l.b16 %v1595
      %v1640 = vunpack.c.h.b16 %v1595
      %v1641 = vunpack.c.l.b16 %v1596
      %v1642 = vunpack.c.h.b16 %v1596
      %v1643 = vunpack.c.l.b16 %v1597
      %v1644 = vunpack.c.h.b16 %v1597
      %v1645 = vunpack.c.l.b16 %v1598
      %v1646 = vunpack.c.h.b16 %v1598
      %v1647 = vpack.c.b16 %v1615, %v1615
      %v1648 = vpack.c.b16 %v1616, %v1616
      %v1649 = vpack.c.b16 %v1617, %v1617
      %v1650 = vpack.c.b16 %v1618, %v1618
      %v1651 = vpack.c.b16 %v1619, %v1619
      %v1652 = vpack.c.b16 %v1620, %v1620
      %v1653 = vpack.c.b16 %v1621, %v1621
      %v1654 = vpack.c.b16 %v1622, %v1622
      %v1655 = vpack.c.b16 %v1623, %v1623
      %v1656 = vpack.c.b16 %v1624, %v1624
      %v1657 = vpack.c.b16 %v1625, %v1625
      %v1658 = vpack.c.b16 %v1626, %v1626
      %v1659 = vpack.c.b16 %v1627, %v1627
      %v1660 = vpack.c.b16 %v1628, %v1628
      %v1661 = vpack.c.b16 %v1629, %v1629
      %v1662 = vpack.c.b16 %v1630, %v1630
      %v1663 = vpack.c.b16 %v1631, %v1631
      %v1664 = vpack.c.b16 %v1632, %v1632
      %v1665 = vpack.c.b16 %v1633, %v1633
      %v1666 = vpack.c.b16 %v1634, %v1634
      %v1667 = vpack.c.b16 %v1635, %v1635
      %v1668 = vpack.c.b16 %v1636, %v1636
      %v1669 = vpack.c.b16 %v1637, %v1637
      %v1670 = vpack.c.b16 %v1638, %v1638
      %v1671 = vpack.c.b16 %v1639, %v1639
      %v1672 = vpack.c.b16 %v1640, %v1640
      %v1673 = vpack.c.b16 %v1641, %v1641
      %v1674 = vpack.c.b16 %v1642, %v1642
      %v1675 = vpack.c.b16 %v1643, %v1643
      %v1676 = vpack.c.b16 %v1644, %v1644
      %v1677 = vpack.c.b16 %v1645, %v1645
      %v1678 = vpack.c.b16 %v1646, %v1646
      %1711 = vst [vmem:[%s226] sm:$0xf] %v1647
      %1712 = vst [vmem:[%s226 + $0x4] sm:$0xf] %v1648
      %1713 = vst [vmem:[%s226 + $0x8] sm:$0xf] %v1649
      %1714 = vst [vmem:[%s226 + $0xc] sm:$0xf] %v1650
      %1715 = vst [vmem:[%s226 + $0x10] sm:$0xf] %v1651
      %1716 = vst [vmem:[%s226 + $0x14] sm:$0xf] %v1652
      %1717 = vst [vmem:[%s226 + $0x18] sm:$0xf] %v1653
      %1718 = vst [vmem:[%s226 + $0x1c] sm:$0xf] %v1654
      %1719 = vst [vmem:[%s226 + $0x20] sm:$0xf] %v1655
      %1720 = vst [vmem:[%s226 + $0x24] sm:$0xf] %v1656
      %1721 = vst [vmem:[%s226 + $0x28] sm:$0xf] %v1657
      %1722 = vst [vmem:[%s226 + $0x2c] sm:$0xf] %v1658
      %1723 = vst [vmem:[%s226 + $0x30] sm:$0xf] %v1659
      %1724 = vst [vmem:[%s226 + $0x34] sm:$0xf] %v1660
      %1725 = vst [vmem:[%s226 + $0x38] sm:$0xf] %v1661
      %1726 = vst [vmem:[%s226 + $0x3c] sm:$0xf] %v1662
      %1727 = vst [vmem:[%s226 + $0x40] sm:$0xf] %v1663
      %1728 = vst [vmem:[%s226 + $0x44] sm:$0xf] %v1664
      %1729 = vst [vmem:[%s226 + $0x48] sm:$0xf] %v1665
      %1730 = vst [vmem:[%s226 + $0x4c] sm:$0xf] %v1666
      %1731 = vst [vmem:[%s226 + $0x50] sm:$0xf] %v1667
      %1732 = vst [vmem:[%s226 + $0x54] sm:$0xf] %v1668
      %1733 = vst [vmem:[%s226 + $0x58] sm:$0xf] %v1669
      %1734 = vst [vmem:[%s226 + $0x5c] sm:$0xf] %v1670
      %1735 = vst [vmem:[%s226 + $0x60] sm:$0xf] %v1671
      %1736 = vst [vmem:[%s226 + $0x64] sm:$0xf] %v1672
      %1737 = vst [vmem:[%s226 + $0x68] sm:$0xf] %v1673
      %1738 = vst [vmem:[%s226 + $0x6c] sm:$0xf] %v1674
      %1739 = vst [vmem:[%s226 + $0x70] sm:$0xf] %v1675
      %1740 = vst [vmem:[%s226 + $0x74] sm:$0xf] %v1676
      %1741 = vst [vmem:[%s226 + $0x78] sm:$0xf] %v1677
      %1742 = vst [vmem:[%s226 + $0x7c] sm:$0xf] %v1678
      %s1743 = smul.u32 32, %s18
      %p1744 = scmp.lt.s32.totalorder %s1743, 63
      %s1745 = scalar_select %p1744, %s1743, 63
      %p1746 = scmp.lt.s32.totalorder %s19, 0
      %s1747 = scalar_select %p1746, %s19, 0
      %s1748 = sadd.s32 %s1747, %s1745
      %s1749 = smul.addr %s1748, 4
      %s1750 = scalar_lea.vmem %s3, %s1749
      // Predicated region
      $region33: #{basic_block_forward.2} parent=31 // pred_check
        %p1751 = pneg %p124
      $region34: #{basic_block_forward.2} parent=31 // pred_check_branch
        %1753 = sbr.rel (%p1751) target = $region36
      $region35: #{basic_block_forward.2} parent=31 // pred_region
        %s1754 = smul.u32 32, %s18
      $region36: #{basic_block_forward.2} parent=31 // pred_fallthru
        _
    $region32: #{basic_block_forward.2} parent=5 // pred_fallthru
      _
    %p1755 = scmp.le.s32.totalorder 2, %s9
    // Predicated region
    $region37: #{basic_block_forward.2} parent=5 // pred_check
      %p1756 = pneg %p1755
    $region38: #{basic_block_forward.2} parent=5 // pred_check_branch
      %1758 = sbr.rel (%p1756) target = $region40
    $region39: #{basic_block_forward.2} parent=5 // pred_region
      %s1759 = ssub.s32 %s9, 2
      // Predicated region
      $region41: #{basic_block_forward.2} parent=39 // pred_check
        %p1760 = pneg %p130
      $region42: #{basic_block_forward.2} parent=39 // pred_check_branch
        %1762 = sbr.rel (%p1760) target = $region44
      $region43: #{basic_block_forward.2} parent=39 // pred_region
        %s1763 = smul.u32 32, %s20
        %p1764 = scmp.lt.s32.totalorder %s1763, 63
        %s1765 = scalar_select %p1764, %s1763, 63
        %p1766 = scmp.lt.s32.totalorder %s21, 0
        %s1767 = scalar_select %p1766, %s21, 0
        %s1768 = sadd.s32 %s1767, %s1765
        %s1769 = smul.addr %s1768, 4
        %s1770 = scalar_lea.vmem %s3, %s1769
      $region44: #{basic_block_forward.2} parent=39 // pred_fallthru
        _
    $region40: #{basic_block_forward.2} parent=5 // pred_fallthru
      _
  $region6: #{basic_block_forward.2} parent=0 // loop_footer
    %s13 = sadd.s32 1, %s9
  $region7: #{basic_block_forward.2} parent=0 // loop_footer_branch
    %8 = sbr.rel target = $region3
  $region8: #{basic_block_forward.2} parent=0 // loop_exit
    _

// kernel: basic_block_forward.3
$region0: #{basic_block_forward.3}
  #allocation0 [shape = 'u32[]', space=smem, size = 0x4, offset = 0x4, fixed_abs, tag = 'smem constant byte address 0x4 - core index']
  #allocation1 [shape = 'u32[144,128]{1,0:T(1,128)}', space=vmem, size = 0x12000, scoped, tag = 'internal scratch']
  %s0 = inlined_call_operand.vmem [shape: bf16[512,640], index: 0, kind: input, shape index: {}]
  %s1 = inlined_call_operand.vmem [shape: bf16[640,128], index: 1, kind: input, shape index: {}]
  %s2 = inlined_call_operand.vmem [shape: f32[1,128], index: 2, kind: input, shape index: {}]
  %s3 = inlined_call_operand.vmem [shape: bf16[512,128], index: 3, kind: input, shape index: {}]
  %s4 = inlined_call_operand.hbm [shape: f32[512,128], index: 4, kind: output, shape index: {}]
  %s5 = sld [smem:[#allocation0]]
  $region49: #{basic_block_forward.3} parent=0
    _
  %s7 = ssub.s32 1, %s5
  %s8 = scalar_select 0, %s7, %s5
  $region1: #{basic_block_forward.3} parent=0
    #allocation2 [shape = 'u8[262144]{0}', space=vmem, size = 0x40000, scoped, tag = 'output window, operand 0']
    #allocation3 [shape = 's32[2]{0}', space=sflag, size = 0x8, scoped, tag = 'scoped memory for basic_block_forward.3']
    %9 = vsyncpa [#allocation3], 0
    %s10 = scalar_lea.sflag [#allocation3], 1
    %11 = vsyncpa %s10, 0
    loop: start=0, step=1, limit=4
    $region2: #{basic_block_forward.3} parent=1 // loop_pre_header
      _
    $region3: #{basic_block_forward.3} parent=1 // loop_header
      %s13 = sphi 0, %s17
      %p14 = scmp.ge.s32.totalorder %s13, 4
      %s20 = sphi 0, %s32
      %s21 = sphi 0, %s28
      %s22 = sphi 0, %s20
      %s23 = sphi 0, %s21
      %s24 = sphi 0, %s22
      %s25 = sphi 0, %s23
      %s35 = sphi 0, %s37
      %s38 = sphi 0, %s35
      %s39 = sphi 0, %s38
      %s55 = sphi 0, %s39
      %s61 = sphi 0, %s63
      %s64 = sphi 0, %s61
      %s65 = sphi 0, %s64
      %s81 = sphi 0, %s65
      %s87 = sphi 0, %s89
      %s90 = sphi 0, %s87
      %s91 = sphi 0, %s90
      %s107 = sphi 0, %s91
      %s115 = sphi 0, %s117
      %s118 = sphi 0, %s115
      %s119 = sphi 0, %s118
      %s135 = sphi 0, %s119
      %s143 = sphi 0, %s145
      %s146 = sphi 0, %s143
      %s147 = sphi 0, %s146
      %s163 = sphi 0, %s147
    $region4: #{basic_block_forward.3} parent=1 // loop_header_branch
      %16 = sbr.rel (%p14) target = $region8
    $region5: #{basic_block_forward.3} parent=1 // loop_body
      %s18 = ssub.s32 %s13, 1
      %s19 = ssub.s32 %s13, 2
      %s26 = sadd.s32 1, %s21
      %p27 = scmp.ge.s32.totalorder %s26, 1
      %s28 = scalar_select %p27, 0, %s26
      %s29 = sadd.s32 1, %s20
      %s30 = scalar_select %p27, %s29, %s20
      %p31 = scmp.ge.s32.totalorder %s30, 2
      %s32 = scalar_select %p31, 0, %s30
      %s33 = ssub.s32 %s20, %s32
      %p34 = scmp.eq.s32.totalorder %s33, 0
      %s36 = sadd.s32 %s35, 1
      %s37 = scalar_select %p34, %s35, %s36
      %p40 = pneg %p34
      %p41 = scmp.eq.s32.totalorder %s13, 1
      %p42 = por %p40, %p41
      %p43 = scmp.ne.s32.totalorder %s35, %s38
      %p44 = scmp.eq.s32.totalorder %s13, 0
      %p45 = por %p43, %p44
      %p46 = scmp.ne.s32.totalorder %s35, %s38
      %p47 = scmp.eq.s32.totalorder %s18, 1
      %p48 = por %p46, %p47
      %p49 = scmp.ne.s32.totalorder %s38, %s39
      %p50 = scmp.eq.s32.totalorder %s18, 0
      %p51 = por %p49, %p50
      %p52 = scmp.ne.s32.totalorder %s38, %s39
      %p53 = scmp.eq.s32.totalorder %s19, 1
      %p54 = por %p52, %p53
      %p56 = scmp.ne.s32.totalorder %s39, %s55
      %p57 = scmp.eq.s32.totalorder %s19, 0
      %p58 = por %p56, %p57
      %s59 = ssub.s32 %s21, %s28
      %p60 = scmp.eq.s32.totalorder %s59, 0
      %s62 = sadd.s32 %s61, 1
      %s63 = scalar_select %p60, %s61, %s62
      %p66 = pneg %p60
      %p67 = scmp.eq.s32.totalorder %s13, 1
      %p68 = por %p66, %p67
      %p69 = scmp.ne.s32.totalorder %s61, %s64
      %p70 = scmp.eq.s32.totalorder %s13, 0
      %p71 = por %p69, %p70
      %p72 = scmp.ne.s32.totalorder %s61, %s64
      %p73 = scmp.eq.s32.totalorder %s18, 1
      %p74 = por %p72, %p73
      %p75 = scmp.ne.s32.totalorder %s64, %s65
      %p76 = scmp.eq.s32.totalorder %s18, 0
      %p77 = por %p75, %p76
      %p78 = scmp.ne.s32.totalorder %s64, %s65
      %p79 = scmp.eq.s32.totalorder %s19, 1
      %p80 = por %p78, %p79
      %p82 = scmp.ne.s32.totalorder %s65, %s81
      %p83 = scmp.eq.s32.totalorder %s19, 0
      %p84 = por %p82, %p83
      %s85 = ssub.s32 %s21, %s28
      %p86 = scmp.eq.s32.totalorder %s85, 0
      %s88 = sadd.s32 %s87, 1
      %s89 = scalar_select %p86, %s87, %s88
      %p92 = pneg %p86
      %p93 = scmp.eq.s32.totalorder %s13, 1
      %p94 = por %p92, %p93
      %p95 = scmp.ne.s32.totalorder %s87, %s90
      %p96 = scmp.eq.s32.totalorder %s13, 0
      %p97 = por %p95, %p96
      %p98 = scmp.ne.s32.totalorder %s87, %s90
      %p99 = scmp.eq.s32.totalorder %s18, 1
      %p100 = por %p98, %p99
      %p101 = scmp.ne.s32.totalorder %s90, %s91
      %p102 = scmp.eq.s32.totalorder %s18, 0
      %p103 = por %p101, %p102
      %p104 = scmp.ne.s32.totalorder %s90, %s91
      %p105 = scmp.eq.s32.totalorder %s19, 1
      %p106 = por %p104, %p105
      %p108 = scmp.ne.s32.totalorder %s91, %s107
      %p109 = scmp.eq.s32.totalorder %s19, 0
      %p110 = por %p108, %p109
      %s111 = ssub.s32 %s20, %s32
      %s112 = ssub.s32 %s21, %s28
      %s113 = sor.u32 %s111, %s112
      %p114 = scmp.eq.s32.totalorder %s113, 0
      %s116 = sadd.s32 %s115, 1
      %s117 = scalar_select %p114, %s115, %s116
      %p120 = pneg %p114
      %p121 = scmp.eq.s32.totalorder %s13, 1
      %p122 = por %p120, %p121
      %p123 = scmp.ne.s32.totalorder %s115, %s118
      %p124 = scmp.eq.s32.totalorder %s13, 0
      %p125 = por %p123, %p124
      %p126 = scmp.ne.s32.totalorder %s115, %s118
      %p127 = scmp.eq.s32.totalorder %s18, 1
      %p128 = por %p126, %p127
      %p129 = scmp.ne.s32.totalorder %s118, %s119
      %p130 = scmp.eq.s32.totalorder %s18, 0
      %p131 = por %p129, %p130
      %p132 = scmp.ne.s32.totalorder %s118, %s119
      %p133 = scmp.eq.s32.totalorder %s19, 1
      %p134 = por %p132, %p133
      %p136 = scmp.ne.s32.totalorder %s119, %s135
      %p137 = scmp.eq.s32.totalorder %s19, 0
      %p138 = por %p136, %p137
      %s139 = ssub.s32 %s20, %s32
      %s140 = ssub.s32 %s21, %s28
      %s141 = sor.u32 %s139, %s140
      %p142 = scmp.eq.s32.totalorder %s141, 0
      %s144 = sadd.s32 %s143, 1
      %s145 = scalar_select %p142, %s143, %s144
      %p148 = pneg %p142
      %p149 = scmp.eq.s32.totalorder %s13, 1
      %p150 = por %p148, %p149
      %p151 = scmp.ne.s32.totalorder %s143, %s146
      %p152 = scmp.eq.s32.totalorder %s13, 0
      %p153 = por %p151, %p152
      %p154 = scmp.ne.s32.totalorder %s143, %s146
      %p155 = scmp.eq.s32.totalorder %s18, 1
      %p156 = por %p154, %p155
      %p157 = scmp.ne.s32.totalorder %s146, %s147
      %p158 = scmp.eq.s32.totalorder %s18, 0
      %p159 = por %p157, %p158
      %p160 = scmp.ne.s32.totalorder %s146, %s147
      %p161 = scmp.eq.s32.totalorder %s19, 1
      %p162 = por %p160, %p161
      %p164 = scmp.ne.s32.totalorder %s147, %s163
      %p165 = scmp.eq.s32.totalorder %s19, 0
      %p166 = por %p164, %p165
      %p167 = scmp.le.s32.totalorder 1, %s13
      %p168 = scmp.lt.s32.totalorder %s13, 3
      %p169 = pnand %p167, %p168
      %p170 = pneg %p169
      // Predicated region
      $region9: #{basic_block_forward.3} parent=5 // pred_check
        _
      $region10: #{basic_block_forward.3} parent=5 // pred_check_branch
        %172 = sbr.rel (%p169) target = $region12
      $region11: #{basic_block_forward.3} parent=5 // pred_region
        %s173 = ssub.s32 %s13, 1
        // Predicated region
        $region13: #{basic_block_forward.3} parent=11 // pred_check
          %p174 = pneg %p77
        $region14: #{basic_block_forward.3} parent=11 // pred_check_branch
          %176 = sbr.rel (%p174) target = $region16
        $region15: #{basic_block_forward.3} parent=11 // pred_region
          %p177 = scmp.lt.s32.totalorder %s23, 0
          %s178 = scalar_select %p177, %s23, 0
          %s179 = smul.addr %s178, 4
          %s180 = scalar_lea.vmem %s1, %s179
        $region16: #{basic_block_forward.3} parent=11 // pred_fallthru
          _
        // Predicated region
        $region17: #{basic_block_forward.3} parent=11 // pred_check
          %p181 = pneg %p103
        $region18: #{basic_block_forward.3} parent=11 // pred_check_branch
          %183 = sbr.rel (%p181) target = $region20
        $region19: #{basic_block_forward.3} parent=11 // pred_region
          %p184 = scmp.lt.s32.totalorder %s23, 0
          %s185 = scalar_select %p184, %s23, 0
          %s186 = scalar_lea.vmem %s2, %s185
        $region20: #{basic_block_forward.3} parent=11 // pred_fallthru
          _
      $region12: #{basic_block_forward.3} parent=5 // pred_fallthru
        _
      %p187 = scmp.lt.s32.totalorder %s13, 2
      // Predicated region
      $region21: #{basic_block_forward.3} parent=5 // pred_check
        %p188 = pneg %p187
      $region22: #{basic_block_forward.3} parent=5 // pred_check_branch
        %190 = sbr.rel (%p188) target = $region24
      $region23: #{basic_block_forward.3} parent=5 // pred_region
        // Predicated region
        $region25: #{basic_block_forward.3} parent=23 // pred_check
          %p191 = pneg %p45
        $region26: #{basic_block_forward.3} parent=23 // pred_check_branch
          %193 = sbr.rel (%p191) target = $region28
        $region27: #{basic_block_forward.3} parent=23 // pred_region
          %s194 = smul.u32 32, %s20
          %p195 = scmp.lt.s32.totalorder %s194, 63
          %s196 = scalar_select %p195, %s194, 63
          %s197 = smul.addr %s196, 5
          %s198 = smul.addr %s197, 4
          %s199 = scalar_lea.vmem %s0, %s198
          %s200 = smul.u32 32, %s20
        $region28: #{basic_block_forward.3} parent=23 // pred_fallthru
          _
        // Predicated region
        $region29: #{basic_block_forward.3} parent=23 // pred_check
          %p201 = pneg %p125
        $region30: #{basic_block_forward.3} parent=23 // pred_check_branch
          %203 = sbr.rel (%p201) target = $region32
        $region31: #{basic_block_forward.3} parent=23 // pred_region
          %s204 = smul.u32 32, %s20
          %p205 = scmp.lt.s32.totalorder %s204, 63
          %s206 = scalar_select %p205, %s204, 63
          %p207 = scmp.lt.s32.totalorder %s21, 0
          %s208 = scalar_select %p207, %s21, 0
          %s209 = sadd.s32 %s208, %s206
          %s210 = smul.addr %s209, 4
          %s211 = scalar_lea.vmem %s3, %s210
          %s212 = smul.u32 32, %s20
        $region32: #{basic_block_forward.3} parent=23 // pred_fallthru
          _
      $region24: #{basic_block_forward.3} parent=5 // pred_fallthru
        _
      %p213 = scmp.le.s32.totalorder 1, %s13
      %p214 = scmp.lt.s32.totalorder %s13, 3
      %p215 = pnand %p213, %p214
      %p216 = pneg %p215
      // Predicated region
      $region33: #{basic_block_forward.3} parent=5 // pred_check
        _
      $region34: #{basic_block_forward.3} parent=5 // pred_check_branch
        %218 = sbr.rel (%p215) target = $region36
      $region35: #{basic_block_forward.3} parent=5 // pred_region
        %s219 = ssub.s32 %s13, 1
        %s220 = smul.u32 32, %s22
        %p221 = scmp.lt.s32.totalorder %s220, 63
        %s222 = scalar_select %p221, %s220, 63
        %s223 = smul.addr %s222, 5
        %s224 = smul.addr %s223, 4
        %s225 = scalar_lea.vmem %s0, %s224
        %p226 = pneg %p51
        %p227 = pneg %p48
        %p228 = scmp.lt.s32.totalorder %s23, 0
        %s229 = scalar_select %p228, %s23, 0
        %s230 = smul.addr %s229, 4
        %s231 = scalar_lea.vmem %s1, %s230
        %p232 = pneg %p77
        %p233 = pneg %p74
        %p234 = scmp.lt.s32.totalorder %s23, 0
        %s235 = scalar_select %p234, %s23, 0
        %s236 = scalar_lea.vmem %s2, %s235
        %p237 = pneg %p103
        %p238 = pneg %p100
        %s239 = smul.u32 32, %s22
        %p240 = scmp.lt.s32.totalorder %s239, 63
        %s241 = scalar_select %p240, %s239, 63
        %p242 = scmp.lt.s32.totalorder %s23, 0
        %s243 = scalar_select %p242, %s23, 0
        %s244 = sadd.s32 %s243, %s241
        %s245 = smul.addr %s244, 4
        %s246 = scalar_lea.vmem %s3, %s245
        %p247 = pneg %p131
        %p248 = pneg %p128
        %p249 = pneg %p159
        %p250 = pneg %p156
        %s251 = sand.u32 %s146, 1
        %s252 = scalar_lea.sflag [#allocation3], %s251
        %s253 = sand.u32 %s146, 1
        %s254 = smul.addr %s253, 256
        %s255 = scalar_lea.vmem [#allocation2], %s254
        %s256 = smul.u32 32, %s22
        %p257 = scmp.lt.s32.totalorder %s256, 63
        %s258 = scalar_select %p257, %s256, 63
        %s259 = smul.addr %s258, 5
        %s260 = smul.addr %s259, 4
        %s261 = scalar_lea.vmem %s0, %s260
        %s262 = smul.u32 32, %s22
        %p263 = scmp.lt.s32.totalorder %s23, 0
        %s264 = scalar_select %p263, %s23, 0
        %s265 = smul.addr %s264, 4
        %s266 = scalar_lea.vmem %s1, %s265
        %p267 = scmp.lt.s32.totalorder %s23, 0
        %s268 = scalar_select %p267, %s23, 0
        %s269 = scalar_lea.vmem %s2, %s268
        %s270 = smul.u32 32, %s22
        %p271 = scmp.lt.s32.totalorder %s270, 63
        %s272 = scalar_select %p271, %s270, 63
        %p273 = scmp.lt.s32.totalorder %s23, 0
        %s274 = scalar_select %p273, %s23, 0
        %s275 = sadd.s32 %s274, %s272
        %s276 = smul.addr %s275, 4
        %s277 = scalar_lea.vmem %s3, %s276
        %s278 = smul.u32 32, %s22
        %s279 = smul.u32 32, %s22
        %v281 = vld [vmem:[%s261] sm:$0xff]
        %v282 = vld [vmem:[%s261 + $0x8] sm:$0xff]
        %v283 = vld [vmem:[%s261 + $0x10] sm:$0xf]
        %v284 = vld [vmem:[%s261 + $0x14] sm:$0xff]
        %v285 = vld [vmem:[%s261 + $0x1c] sm:$0xff]
        %v286 = vld [vmem:[%s261 + $0x24] sm:$0xf]
        %v287 = vld [vmem:[%s261 + $0x28] sm:$0xff]
        %v288 = vld [vmem:[%s261 + $0x30] sm:$0xff]
        %v289 = vld [vmem:[%s261 + $0x38] sm:$0xf]
        %v290 = vld [vmem:[%s261 + $0x3c] sm:$0xff]
        %v291 = vld [vmem:[%s261 + $0x44] sm:$0xff]
        %v292 = vld [vmem:[%s261 + $0x4c] sm:$0xf]
        %v293 = vld [vmem:[%s261 + $0x50] sm:$0xff]
        %v294 = vld [vmem:[%s261 + $0x58] sm:$0xff]
        %v295 = vld [vmem:[%s261 + $0x60] sm:$0xf]
        %v296 = vld [vmem:[%s261 + $0x64] sm:$0xff]
        %v297 = vld [vmem:[%s261 + $0x6c] sm:$0xff]
        %v298 = vld [vmem:[%s261 + $0x74] sm:$0xf]
        %v299 = vld [vmem:[%s261 + $0x78] sm:$0xff]
        %v300 = vld [vmem:[%s261 + $0x80] sm:$0xff]
        %v301 = vld [vmem:[%s261 + $0x88] sm:$0xf]
        %v302 = vld [vmem:[%s261 + $0x8c] sm:$0xff]
        %v303 = vld [vmem:[%s261 + $0x94] sm:$0xff]
        %v304 = vld [vmem:[%s261 + $0x9c] sm:$0xf]
        %v305 = vld [vmem:[%s261 + $0xa0] sm:$0xff]
        %v306 = vld [vmem:[%s261 + $0xa8] sm:$0xff]
        %v307 = vld [vmem:[%s261 + $0xb0] sm:$0xf]
        %v308 = vld [vmem:[%s261 + $0xb4] sm:$0xff]
        %v309 = vld [vmem:[%s261 + $0xbc] sm:$0xff]
        %v310 = vld [vmem:[%s261 + $0xc4] sm:$0xf]
        %v311 = vld [vmem:[%s261 + $0xc8] sm:$0xff]
        %v312 = vld [vmem:[%s261 + $0xd0] sm:$0xff]
        %v313 = vld [vmem:[%s261 + $0xd8] sm:$0xf]
        %v314 = vld [vmem:[%s261 + $0xdc] sm:$0xff]
        %v315 = vld [vmem:[%s261 + $0xe4] sm:$0xff]
        %v316 = vld [vmem:[%s261 + $0xec] sm:$0xf]
        %v317 = vld [vmem:[%s261 + $0xf0] sm:$0xff]
        %v318 = vld [vmem:[%s261 + $0xf8] sm:$0xff]
        %v319 = vld [vmem:[%s261 + $0x100] sm:$0xf]
        %v320 = vld [vmem:[%s261 + $0x104] sm:$0xff]
        %v321 = vld [vmem:[%s261 + $0x10c] sm:$0xff]
        %v322 = vld [vmem:[%s261 + $0x114] sm:$0xf]
        %v323 = vld [vmem:[%s261 + $0x118] sm:$0xff]
        %v324 = vld [vmem:[%s261 + $0x120] sm:$0xff]
        %v325 = vld [vmem:[%s261 + $0x128] sm:$0xf]
        %v326 = vld [vmem:[%s261 + $0x12c] sm:$0xff]
        %v327 = vld [vmem:[%s261 + $0x134] sm:$0xff]
        %v328 = vld [vmem:[%s261 + $0x13c] sm:$0xf]
        %v329 = vld [vmem:[%s261 + $0x140] sm:$0xff]
        %v330 = vld [vmem:[%s261 + $0x148] sm:$0xff]
        %v331 = vld [vmem:[%s261 + $0x150] sm:$0xf]
        %v332 = vld [vmem:[%s261 + $0x154] sm:$0xff]
        %v333 = vld [vmem:[%s261 + $0x15c] sm:$0xff]
        %v334 = vld [vmem:[%s261 + $0x164] sm:$0xf]
        %v335 = vld [vmem:[%s261 + $0x168] sm:$0xff]
        %v336 = vld [vmem:[%s261 + $0x170] sm:$0xff]
        %v337 = vld [vmem:[%s261 + $0x178] sm:$0xf]
        %v338 = vld [vmem:[%s261 + $0x17c] sm:$0xff]
        %v339 = vld [vmem:[%s261 + $0x184] sm:$0xff]
        %v340 = vld [vmem:[%s261 + $0x18c] sm:$0xf]
        %v341 = vld [vmem:[%s261 + $0x190] sm:$0xff]
        %v342 = vld [vmem:[%s261 + $0x198] sm:$0xff]
        %v343 = vld [vmem:[%s261 + $0x1a0] sm:$0xf]
        %v344 = vld [vmem:[%s261 + $0x1a4] sm:$0xff]
        %v345 = vld [vmem:[%s261 + $0x1ac] sm:$0xff]
        %v346 = vld [vmem:[%s261 + $0x1b4] sm:$0xf]
        %v347 = vld [vmem:[%s261 + $0x1b8] sm:$0xff]
        %v348 = vld [vmem:[%s261 + $0x1c0] sm:$0xff]
        %v349 = vld [vmem:[%s261 + $0x1c8] sm:$0xf]
        %v350 = vld [vmem:[%s261 + $0x1cc] sm:$0xff]
        %v351 = vld [vmem:[%s261 + $0x1d4] sm:$0xff]
        %v352 = vld [vmem:[%s261 + $0x1dc] sm:$0xf]
        %v353 = vld [vmem:[%s261 + $0x1e0] sm:$0xff]
        %v354 = vld [vmem:[%s261 + $0x1e8] sm:$0xff]
        %v355 = vld [vmem:[%s261 + $0x1f0] sm:$0xf]
        %v356 = vld [vmem:[%s261 + $0x1f4] sm:$0xff]
        %v357 = vld [vmem:[%s261 + $0x1fc] sm:$0xff]
        %v358 = vld [vmem:[%s261 + $0x204] sm:$0xf]
        %v359 = vld [vmem:[%s261 + $0x208] sm:$0xff]
        %v360 = vld [vmem:[%s261 + $0x210] sm:$0xff]
        %v361 = vld [vmem:[%s261 + $0x218] sm:$0xf]
        %v362 = vld [vmem:[%s261 + $0x21c] sm:$0xff]
        %v363 = vld [vmem:[%s261 + $0x224] sm:$0xff]
        %v364 = vld [vmem:[%s261 + $0x22c] sm:$0xf]
        %v365 = vld [vmem:[%s261 + $0x230] sm:$0xff]
        %v366 = vld [vmem:[%s261 + $0x238] sm:$0xff]
        %v367 = vld [vmem:[%s261 + $0x240] sm:$0xf]
        %v368 = vld [vmem:[%s261 + $0x244] sm:$0xff]
        %v369 = vld [vmem:[%s261 + $0x24c] sm:$0xff]
        %v370 = vld [vmem:[%s261 + $0x254] sm:$0xf]
        %v371 = vld [vmem:[%s261 + $0x258] sm:$0xff]
        %v372 = vld [vmem:[%s261 + $0x260] sm:$0xff]
        %v373 = vld [vmem:[%s261 + $0x268] sm:$0xf]
        %v374 = vld [vmem:[%s261 + $0x26c] sm:$0xff]
        %v375 = vld [vmem:[%s261 + $0x274] sm:$0xff]
        %v376 = vld [vmem:[%s261 + $0x27c] sm:$0xf]
        %v377 = vld [vmem:[%s266] sm:$0xf]
        %v378 = vld [vmem:[%s266 + $0x4] sm:$0xf]
        %v379 = vld [vmem:[%s266 + $0x8] sm:$0xf]
        %v380 = vld [vmem:[%s266 + $0xc] sm:$0xf]
        %v381 = vld [vmem:[%s266 + $0x10] sm:$0xf]
        %v382 = vld [vmem:[%s266 + $0x14] sm:$0xf]
        %v383 = vld [vmem:[%s266 + $0x18] sm:$0xf]
        %v384 = vld [vmem:[%s266 + $0x1c] sm:$0xf]
        %v385 = vld [vmem:[%s266 + $0x20] sm:$0xf]
        %v386 = vld [vmem:[%s266 + $0x24] sm:$0xf]
        %v387 = vld [vmem:[%s266 + $0x28] sm:$0xf]
        %v388 = vld [vmem:[%s266 + $0x2c] sm:$0xf]
        %v389 = vld [vmem:[%s266 + $0x30] sm:$0xf]
        %v390 = vld [vmem:[%s266 + $0x34] sm:$0xf]
        %v391 = vld [vmem:[%s266 + $0x38] sm:$0xf]
        %v392 = vld [vmem:[%s266 + $0x3c] sm:$0xf]
        %v393 = vld [vmem:[%s266 + $0x40] sm:$0xf]
        %v394 = vld [vmem:[%s266 + $0x44] sm:$0xf]
        %v395 = vld [vmem:[%s266 + $0x48] sm:$0xf]
        %v396 = vld [vmem:[%s266 + $0x4c] sm:$0xf]
        %v397 = vld [vmem:[%s266 + $0x50] sm:$0xf]
        %v398 = vld [vmem:[%s266 + $0x54] sm:$0xf]
        %v399 = vld [vmem:[%s266 + $0x58] sm:$0xf]
        %v400 = vld [vmem:[%s266 + $0x5c] sm:$0xf]
        %v401 = vld [vmem:[%s266 + $0x60] sm:$0xf]
        %v402 = vld [vmem:[%s266 + $0x64] sm:$0xf]
        %v403 = vld [vmem:[%s266 + $0x68] sm:$0xf]
        %v404 = vld [vmem:[%s266 + $0x6c] sm:$0xf]
        %v405 = vld [vmem:[%s266 + $0x70] sm:$0xf]
        %v406 = vld [vmem:[%s266 + $0x74] sm:$0xf]
        %v407 = vld [vmem:[%s266 + $0x78] sm:$0xf]
        %v408 = vld [vmem:[%s266 + $0x7c] sm:$0xf]
        %v409 = vld [vmem:[%s266 + $0x80] sm:$0xf]
        %v410 = vld [vmem:[%s266 + $0x84] sm:$0xf]
        %v411 = vld [vmem:[%s266 + $0x88] sm:$0xf]
        %v412 = vld [vmem:[%s266 + $0x8c] sm:$0xf]
        %v413 = vld [vmem:[%s266 + $0x90] sm:$0xf]
        %v414 = vld [vmem:[%s266 + $0x94] sm:$0xf]
        %v415 = vld [vmem:[%s266 + $0x98] sm:$0xf]
        %v416 = vld [vmem:[%s266 + $0x9c] sm:$0xf]
        %v417 = vld [vmem:[%s266 + $0xa0] sm:$0xf]
        %v418 = vld [vmem:[%s266 + $0xa4] sm:$0xf]
        %v419 = vld [vmem:[%s266 + $0xa8] sm:$0xf]
        %v420 = vld [vmem:[%s266 + $0xac] sm:$0xf]
        %v421 = vld [vmem:[%s266 + $0xb0] sm:$0xf]
        %v422 = vld [vmem:[%s266 + $0xb4] sm:$0xf]
        %v423 = vld [vmem:[%s266 + $0xb8] sm:$0xf]
        %v424 = vld [vmem:[%s266 + $0xbc] sm:$0xf]
        %v425 = vld [vmem:[%s266 + $0xc0] sm:$0xf]
        %v426 = vld [vmem:[%s266 + $0xc4] sm:$0xf]
        %v427 = vld [vmem:[%s266 + $0xc8] sm:$0xf]
        %v428 = vld [vmem:[%s266 + $0xcc] sm:$0xf]
        %v429 = vld [vmem:[%s266 + $0xd0] sm:$0xf]
        %v430 = vld [vmem:[%s266 + $0xd4] sm:$0xf]
        %v431 = vld [vmem:[%s266 + $0xd8] sm:$0xf]
        %v432 = vld [vmem:[%s266 + $0xdc] sm:$0xf]
        %v433 = vld [vmem:[%s266 + $0xe0] sm:$0xf]
        %v434 = vld [vmem:[%s266 + $0xe4] sm:$0xf]
        %v435 = vld [vmem:[%s266 + $0xe8] sm:$0xf]
        %v436 = vld [vmem:[%s266 + $0xec] sm:$0xf]
        %v437 = vld [vmem:[%s266 + $0xf0] sm:$0xf]
        %v438 = vld [vmem:[%s266 + $0xf4] sm:$0xf]
        %v439 = vld [vmem:[%s266 + $0xf8] sm:$0xf]
        %v440 = vld [vmem:[%s266 + $0xfc] sm:$0xf]
        %v441 = vld [vmem:[%s266 + $0x100] sm:$0xf]
        %v442 = vld [vmem:[%s266 + $0x104] sm:$0xf]
        %v443 = vld [vmem:[%s266 + $0x108] sm:$0xf]
        %v444 = vld [vmem:[%s266 + $0x10c] sm:$0xf]
        %v445 = vld [vmem:[%s266 + $0x110] sm:$0xf]
        %v446 = vld [vmem:[%s266 + $0x114] sm:$0xf]
        %v447 = vld [vmem:[%s266 + $0x118] sm:$0xf]
        %v448 = vld [vmem:[%s266 + $0x11c] sm:$0xf]
        %v449 = vld [vmem:[%s266 + $0x120] sm:$0xf]
        %v450 = vld [vmem:[%s266 + $0x124] sm:$0xf]
        %v451 = vld [vmem:[%s266 + $0x128] sm:$0xf]
        %v452 = vld [vmem:[%s266 + $0x12c] sm:$0xf]
        %v453 = vld [vmem:[%s266 + $0x130] sm:$0xf]
        %v454 = vld [vmem:[%s266 + $0x134] sm:$0xf]
        %v455 = vld [vmem:[%s266 + $0x138] sm:$0xf]
        %v456 = vld [vmem:[%s266 + $0x13c] sm:$0xf]
        %v457 = vld [vmem:[%s269] sm:$0x1]
        %v459 = vlaneseq
        %v460 = vshrl.u32 %v459, 7
        %v461 = vsub.s32 0, %v460
        %v462 = vrot.slane %v457, %v461
        %v560 = vunpack.c.l.b16 %v281
        %v561 = vunpack.c.h.b16 %v281
        %v562 = vunpack.c.l.b16 %v282
        %v563 = vunpack.c.h.b16 %v282
        %v564 = vunpack.c.l.b16 %v283
        %v565 = vunpack.c.l.b16 %v284
        %v566 = vunpack.c.h.b16 %v284
        %v567 = vunpack.c.l.b16 %v285
        %v568 = vunpack.c.h.b16 %v285
        %v569 = vunpack.c.l.b16 %v286
        %v570 = vunpack.c.l.b16 %v287
        %v571 = vunpack.c.h.b16 %v287
        %v572 = vunpack.c.l.b16 %v288
        %v573 = vunpack.c.h.b16 %v288
        %v574 = vunpack.c.l.b16 %v289
        %v575 = vunpack.c.l.b16 %v290
        %v576 = vunpack.c.h.b16 %v290
        %v577 = vunpack.c.l.b16 %v291
        %v578 = vunpack.c.h.b16 %v291
        %v579 = vunpack.c.l.b16 %v292
        %v580 = vunpack.c.l.b16 %v293
        %v581 = vunpack.c.h.b16 %v293
        %v582 = vunpack.c.l.b16 %v294
        %v583 = vunpack.c.h.b16 %v294
        %v584 = vunpack.c.l.b16 %v295
        %v585 = vunpack.c.l.b16 %v296
        %v586 = vunpack.c.h.b16 %v296
        %v587 = vunpack.c.l.b16 %v297
        %v588 = vunpack.c.h.b16 %v297
        %v589 = vunpack.c.l.b16 %v298
        %v590 = vunpack.c.l.b16 %v299
        %v591 = vunpack.c.h.b16 %v299
        %v592 = vunpack.c.l.b16 %v300
        %v593 = vunpack.c.h.b16 %v300
        %v594 = vunpack.c.l.b16 %v301
        %v595 = vunpack.c.l.b16 %v302
        %v596 = vunpack.c.h.b16 %v302
        %v597 = vunpack.c.l.b16 %v303
        %v598 = vunpack.c.h.b16 %v303
        %v599 = vunpack.c.l.b16 %v304
        %v600 = vunpack.c.l.b16 %v305
        %v601 = vunpack.c.h.b16 %v305
        %v602 = vunpack.c.l.b16 %v306
        %v603 = vunpack.c.h.b16 %v306
        %v604 = vunpack.c.l.b16 %v307
        %v605 = vunpack.c.l.b16 %v308
        %v606 = vunpack.c.h.b16 %v308
        %v607 = vunpack.c.l.b16 %v309
        %v608 = vunpack.c.h.b16 %v309
        %v609 = vunpack.c.l.b16 %v310
        %v610 = vunpack.c.l.b16 %v311
        %v611 = vunpack.c.h.b16 %v311
        %v612 = vunpack.c.l.b16 %v312
        %v613 = vunpack.c.h.b16 %v312
        %v614 = vunpack.c.l.b16 %v313
        %v615 = vunpack.c.l.b16 %v314
        %v616 = vunpack.c.h.b16 %v314
        %v617 = vunpack.c.l.b16 %v315
        %v618 = vunpack.c.h.b16 %v315
        %v619 = vunpack.c.l.b16 %v316
        %v620 = vunpack.c.l.b16 %v317
        %v621 = vunpack.c.h.b16 %v317
        %v622 = vunpack.c.l.b16 %v318
        %v623 = vunpack.c.h.b16 %v318
        %v624 = vunpack.c.l.b16 %v319
        %v625 = vunpack.c.l.b16 %v320
        %v626 = vunpack.c.h.b16 %v320
        %v627 = vunpack.c.l.b16 %v321
        %v628 = vunpack.c.h.b16 %v321
        %v629 = vunpack.c.l.b16 %v322
        %v630 = vunpack.c.l.b16 %v323
        %v631 = vunpack.c.h.b16 %v323
        %v632 = vunpack.c.l.b16 %v324
        %v633 = vunpack.c.h.b16 %v324
        %v634 = vunpack.c.l.b16 %v325
        %v635 = vunpack.c.l.b16 %v326
        %v636 = vunpack.c.h.b16 %v326
        %v637 = vunpack.c.l.b16 %v327
        %v638 = vunpack.c.h.b16 %v327
        %v639 = vunpack.c.l.b16 %v328
        %v640 = vunpack.c.l.b16 %v329
        %v641 = vunpack.c.h.b16 %v329
        %v642 = vunpack.c.l.b16 %v330
        %v643 = vunpack.c.h.b16 %v330
        %v644 = vunpack.c.l.b16 %v331
        %v645 = vunpack.c.l.b16 %v332
        %v646 = vunpack.c.h.b16 %v332
        %v647 = vunpack.c.l.b16 %v333
        %v648 = vunpack.c.h.b16 %v333
        %v649 = vunpack.c.l.b16 %v334
        %v650 = vunpack.c.l.b16 %v335
        %v651 = vunpack.c.h.b16 %v335
        %v652 = vunpack.c.l.b16 %v336
        %v653 = vunpack.c.h.b16 %v336
        %v654 = vunpack.c.l.b16 %v337
        %v655 = vunpack.c.l.b16 %v338
        %v656 = vunpack.c.h.b16 %v338
        %v657 = vunpack.c.l.b16 %v339
        %v658 = vunpack.c.h.b16 %v339
        %v659 = vunpack.c.l.b16 %v340
        %v660 = vunpack.c.l.b16 %v341
        %v661 = vunpack.c.h.b16 %v341
        %v662 = vunpack.c.l.b16 %v342
        %v663 = vunpack.c.h.b16 %v342
        %v664 = vunpack.c.l.b16 %v343
        %v665 = vunpack.c.l.b16 %v344
        %v666 = vunpack.c.h.b16 %v344
        %v667 = vunpack.c.l.b16 %v345
        %v668 = vunpack.c.h.b16 %v345
        %v669 = vunpack.c.l.b16 %v346
        %v670 = vunpack.c.l.b16 %v347
        %v671 = vunpack.c.h.b16 %v347
        %v672 = vunpack.c.l.b16 %v348
        %v673 = vunpack.c.h.b16 %v348
        %v674 = vunpack.c.l.b16 %v349
        %v675 = vunpack.c.l.b16 %v350
        %v676 = vunpack.c.h.b16 %v350
        %v677 = vunpack.c.l.b16 %v351
        %v678 = vunpack.c.h.b16 %v351
        %v679 = vunpack.c.l.b16 %v352
        %v680 = vunpack.c.l.b16 %v353
        %v681 = vunpack.c.h.b16 %v353
        %v682 = vunpack.c.l.b16 %v354
        %v683 = vunpack.c.h.b16 %v354
        %v684 = vunpack.c.l.b16 %v355
        %v685 = vunpack.c.l.b16 %v356
        %v686 = vunpack.c.h.b16 %v356
        %v687 = vunpack.c.l.b16 %v357
        %v688 = vunpack.c.h.b16 %v357
        %v689 = vunpack.c.l.b16 %v358
        %v690 = vunpack.c.l.b16 %v359
        %v691 = vunpack.c.h.b16 %v359
        %v692 = vunpack.c.l.b16 %v360
        %v693 = vunpack.c.h.b16 %v360
        %v694 = vunpack.c.l.b16 %v361
        %v695 = vunpack.c.l.b16 %v362
        %v696 = vunpack.c.h.b16 %v362
        %v697 = vunpack.c.l.b16 %v363
        %v698 = vunpack.c.h.b16 %v363
        %v699 = vunpack.c.l.b16 %v364
        %v700 = vunpack.c.l.b16 %v365
        %v701 = vunpack.c.h.b16 %v365
        %v702 = vunpack.c.l.b16 %v366
        %v703 = vunpack.c.h.b16 %v366
        %v704 = vunpack.c.l.b16 %v367
        %v705 = vunpack.c.l.b16 %v368
        %v706 = vunpack.c.h.b16 %v368
        %v707 = vunpack.c.l.b16 %v369
        %v708 = vunpack.c.h.b16 %v369
        %v709 = vunpack.c.l.b16 %v370
        %v710 = vunpack.c.l.b16 %v371
        %v711 = vunpack.c.h.b16 %v371
        %v712 = vunpack.c.l.b16 %v372
        %v713 = vunpack.c.h.b16 %v372
        %v714 = vunpack.c.l.b16 %v373
        %v715 = vunpack.c.l.b16 %v374
        %v716 = vunpack.c.h.b16 %v374
        %v717 = vunpack.c.l.b16 %v375
        %v718 = vunpack.c.h.b16 %v375
        %v719 = vunpack.c.l.b16 %v376
        %v720 = vpack.c.b16 %v565, %v560
        %v721 = vpack.c.b16 %v566, %v561
        %v722 = vpack.c.b16 %v567, %v562
        %v723 = vpack.c.b16 %v568, %v563
        %v724 = vpack.c.b16 %v569, %v564
        %v725 = vpack.c.b16 %v575, %v570
        %v726 = vpack.c.b16 %v576, %v571
        %v727 = vpack.c.b16 %v577, %v572
        %v728 = vpack.c.b16 %v578, %v573
        %v729 = vpack.c.b16 %v579, %v574
        %v730 = vpack.c.b16 %v585, %v580
        %v731 = vpack.c.b16 %v586, %v581
        %v732 = vpack.c.b16 %v587, %v582
        %v733 = vpack.c.b16 %v588, %v583
        %v734 = vpack.c.b16 %v589, %v584
        %v735 = vpack.c.b16 %v595, %v590
        %v736 = vpack.c.b16 %v596, %v591
        %v737 = vpack.c.b16 %v597, %v592
        %v738 = vpack.c.b16 %v598, %v593
        %v739 = vpack.c.b16 %v599, %v594
        %v740 = vpack.c.b16 %v605, %v600
        %v741 = vpack.c.b16 %v606, %v601
        %v742 = vpack.c.b16 %v607, %v602
        %v743 = vpack.c.b16 %v608, %v603
        %v744 = vpack.c.b16 %v609, %v604
        %v745 = vpack.c.b16 %v615, %v610
        %v746 = vpack.c.b16 %v616, %v611
        %v747 = vpack.c.b16 %v617, %v612
        %v748 = vpack.c.b16 %v618, %v613
        %v749 = vpack.c.b16 %v619, %v614
        %v750 = vpack.c.b16 %v625, %v620
        %v751 = vpack.c.b16 %v626, %v621
        %v752 = vpack.c.b16 %v627, %v622
        %v753 = vpack.c.b16 %v628, %v623
        %v754 = vpack.c.b16 %v629, %v624
        %v755 = vpack.c.b16 %v635, %v630
        %v756 = vpack.c.b16 %v636, %v631
        %v757 = vpack.c.b16 %v637, %v632
        %v758 = vpack.c.b16 %v638, %v633
        %v759 = vpack.c.b16 %v639, %v634
        %v760 = vpack.c.b16 %v645, %v640
        %v761 = vpack.c.b16 %v646, %v641
        %v762 = vpack.c.b16 %v647, %v642
        %v763 = vpack.c.b16 %v648, %v643
        %v764 = vpack.c.b16 %v649, %v644
        %v765 = vpack.c.b16 %v655, %v650
        %v766 = vpack.c.b16 %v656, %v651
        %v767 = vpack.c.b16 %v657, %v652
        %v768 = vpack.c.b16 %v658, %v653
        %v769 = vpack.c.b16 %v659, %v654
        %v770 = vpack.c.b16 %v665, %v660
        %v771 = vpack.c.b16 %v666, %v661
        %v772 = vpack.c.b16 %v667, %v662
        %v773 = vpack.c.b16 %v668, %v663
        %v774 = vpack.c.b16 %v669, %v664
        %v775 = vpack.c.b16 %v675, %v670
        %v776 = vpack.c.b16 %v676, %v671
        %v777 = vpack.c.b16 %v677, %v672
        %v778 = vpack.c.b16 %v678, %v673
        %v779 = vpack.c.b16 %v679, %v674
        %v780 = vpack.c.b16 %v685, %v680
        %v781 = vpack.c.b16 %v686, %v681
        %v782 = vpack.c.b16 %v687, %v682
        %v783 = vpack.c.b16 %v688, %v683
        %v784 = vpack.c.b16 %v689, %v684
        %v785 = vpack.c.b16 %v695, %v690
        %v786 = vpack.c.b16 %v696, %v691
        %v787 = vpack.c.b16 %v697, %v692
        %v788 = vpack.c.b16 %v698, %v693
        %v789 = vpack.c.b16 %v699, %v694
        %v790 = vpack.c.b16 %v705, %v700
        %v791 = vpack.c.b16 %v706, %v701
        %v792 = vpack.c.b16 %v707, %v702
        %v793 = vpack.c.b16 %v708, %v703
        %v794 = vpack.c.b16 %v709, %v704
        %v795 = vpack.c.b16 %v715, %v710
        %v796 = vpack.c.b16 %v716, %v711
        %v797 = vpack.c.b16 %v717, %v712
        %v798 = vpack.c.b16 %v718, %v713
        %v799 = vpack.c.b16 %v719, %v714
        %v960 = vunpack.c.l.b16 %v377
        %v961 = vunpack.c.l.b16 %v378
        %v962 = vunpack.c.l.b16 %v379
        %v963 = vunpack.c.l.b16 %v380
        %v964 = vunpack.c.l.b16 %v381
        %v965 = vunpack.c.l.b16 %v382
        %v966 = vunpack.c.l.b16 %v383
        %v967 = vunpack.c.l.b16 %v384
        %v968 = vunpack.c.l.b16 %v385
        %v969 = vunpack.c.l.b16 %v386
        %v970 = vunpack.c.l.b16 %v387
        %v971 = vunpack.c.l.b16 %v388
        %v972 = vunpack.c.l.b16 %v389
        %v973 = vunpack.c.l.b16 %v390
        %v974 = vunpack.c.l.b16 %v391
        %v975 = vunpack.c.l.b16 %v392
        %v976 = vunpack.c.l.b16 %v393
        %v977 = vunpack.c.l.b16 %v394
        %v978 = vunpack.c.l.b16 %v395
        %v979 = vunpack.c.l.b16 %v396
        %v980 = vunpack.c.l.b16 %v397
        %v981 = vunpack.c.l.b16 %v398
        %v982 = vunpack.c.l.b16 %v399
        %v983 = vunpack.c.l.b16 %v400
        %v984 = vunpack.c.l.b16 %v401
        %v985 = vunpack.c.l.b16 %v402
        %v986 = vunpack.c.l.b16 %v403
        %v987 = vunpack.c.l.b16 %v404
        %v988 = vunpack.c.l.b16 %v405
        %v989 = vunpack.c.l.b16 %v406
        %v990 = vunpack.c.l.b16 %v407
        %v991 = vunpack.c.l.b16 %v408
        %v992 = vunpack.c.l.b16 %v409
        %v993 = vunpack.c.l.b16 %v410
        %v994 = vunpack.c.l.b16 %v411
        %v995 = vunpack.c.l.b16 %v412
        %v996 = vunpack.c.l.b16 %v413
        %v997 = vunpack.c.l.b16 %v414
        %v998 = vunpack.c.l.b16 %v415
        %v999 = vunpack.c.l.b16 %v416
        %v1000 = vunpack.c.l.b16 %v417
        %v1001 = vunpack.c.l.b16 %v418
        %v1002 = vunpack.c.l.b16 %v419
        %v1003 = vunpack.c.l.b16 %v420
        %v1004 = vunpack.c.l.b16 %v421
        %v1005 = vunpack.c.l.b16 %v422
        %v1006 = vunpack.c.l.b16 %v423
        %v1007 = vunpack.c.l.b16 %v424
        %v1008 = vunpack.c.l.b16 %v425
        %v1009 = vunpack.c.l.b16 %v426
        %v1010 = vunpack.c.l.b16 %v427
        %v1011 = vunpack.c.l.b16 %v428
        %v1012 = vunpack.c.l.b16 %v429
        %v1013 = vunpack.c.l.b16 %v430
        %v1014 = vunpack.c.l.b16 %v431
        %v1015 = vunpack.c.l.b16 %v432
        %v1016 = vunpack.c.l.b16 %v433
        %v1017 = vunpack.c.l.b16 %v434
        %v1018 = vunpack.c.l.b16 %v435
        %v1019 = vunpack.c.l.b16 %v436
        %v1020 = vunpack.c.l.b16 %v437
        %v1021 = vunpack.c.l.b16 %v438
        %v1022 = vunpack.c.l.b16 %v439
        %v1023 = vunpack.c.l.b16 %v440
        %v1024 = vunpack.c.l.b16 %v441
        %v1025 = vunpack.c.l.b16 %v442
        %v1026 = vunpack.c.l.b16 %v443
        %v1027 = vunpack.c.l.b16 %v444
        %v1028 = vunpack.c.l.b16 %v445
        %v1029 = vunpack.c.l.b16 %v446
        %v1030 = vunpack.c.l.b16 %v447
        %v1031 = vunpack.c.l.b16 %v448
        %v1032 = vunpack.c.l.b16 %v449
        %v1033 = vunpack.c.l.b16 %v450
        %v1034 = vunpack.c.l.b16 %v451
        %v1035 = vunpack.c.l.b16 %v452
        %v1036 = vunpack.c.l.b16 %v453
        %v1037 = vunpack.c.l.b16 %v454
        %v1038 = vunpack.c.l.b16 %v455
        %v1039 = vunpack.c.l.b16 %v456
        %v1040 = vpack.c.b16 %v961, %v960
        %v1041 = vpack.c.b16 %v963, %v962
        %v1042 = vpack.c.b16 %v965, %v964
        %v1043 = vpack.c.b16 %v967, %v966
        %v1044 = vpack.c.b16 %v969, %v968
        %v1045 = vpack.c.b16 %v971, %v970
        %v1046 = vpack.c.b16 %v973, %v972
        %v1047 = vpack.c.b16 %v975, %v974
        %v1048 = vpack.c.b16 %v977, %v976
        %v1049 = vpack.c.b16 %v979, %v978
        %v1050 = vpack.c.b16 %v981, %v980
        %v1051 = vpack.c.b16 %v983, %v982
        %v1052 = vpack.c.b16 %v985, %v984
        %v1053 = vpack.c.b16 %v987, %v986
        %v1054 = vpack.c.b16 %v989, %v988
        %v1055 = vpack.c.b16 %v991, %v990
        %v1056 = vpack.c.b16 %v993, %v992
        %v1057 = vpack.c.b16 %v995, %v994
        %v1058 = vpack.c.b16 %v997, %v996
        %v1059 = vpack.c.b16 %v999, %v998
        %v1060 = vpack.c.b16 %v1001, %v1000
        %v1061 = vpack.c.b16 %v1003, %v1002
        %v1062 = vpack.c.b16 %v1005, %v1004
        %v1063 = vpack.c.b16 %v1007, %v1006
        %v1064 = vpack.c.b16 %v1009, %v1008
        %v1065 = vpack.c.b16 %v1011, %v1010
        %v1066 = vpack.c.b16 %v1013, %v1012
        %v1067 = vpack.c.b16 %v1015, %v1014
        %v1068 = vpack.c.b16 %v1017, %v1016
        %v1069 = vpack.c.b16 %v1019, %v1018
        %v1070 = vpack.c.b16 %v1021, %v1020
        %v1071 = vpack.c.b16 %v1023, %v1022
        %v1072 = vpack.c.b16 %v1025, %v1024
        %v1073 = vpack.c.b16 %v1027, %v1026
        %v1074 = vpack.c.b16 %v1029, %v1028
        %v1075 = vpack.c.b16 %v1031, %v1030
        %v1076 = vpack.c.b16 %v1033, %v1032
        %v1077 = vpack.c.b16 %v1035, %v1034
        %v1078 = vpack.c.b16 %v1037, %v1036
        %v1079 = vpack.c.b16 %v1039, %v1038
        %1120 = vmatprep.subr.bf16.mxu0 0
        %1121 = vmatpush1.bf16.msra.mxu0 %v1040
        %1122 = vmatprep.subr.bf16.mxu0 0
        %1123 = vmatpush1.bf16.msra.mxu0 %v1041
        %1124 = vmatprep.subr.bf16.mxu0 0
        %1125 = vmatpush1.bf16.msra.mxu0 %v1042
        %1126 = vmatprep.subr.bf16.mxu0 0
        %1127 = vmatpush1.bf16.msra.mxu0 %v1043
        %1128 = vmatprep.subr.bf16.mxu0 0
        %1129 = vmatpush1.bf16.msra.mxu0 %v1044
        %1130 = vmatprep.subr.bf16.mxu0 0
        %1131 = vmatpush1.bf16.msra.mxu0 %v1045
        %1132 = vmatprep.subr.bf16.mxu0 0
        %1133 = vmatpush1.bf16.msra.mxu0 %v1046
        %1134 = vmatprep.subr.bf16.mxu0 0
        %1135 = vmatpush1.bf16.msra.mxu0 %v1047
        %1136 = vmatprep.subr.bf16.mxu0 0
        %1137 = vmatpush1.bf16.msra.mxu0 %v1048
        %1138 = vmatprep.subr.bf16.mxu0 0
        %1139 = vmatpush1.bf16.msra.mxu0 %v1049
        %1140 = vmatprep.subr.bf16.mxu0 0
        %1141 = vmatpush1.bf16.msra.mxu0 %v1050
        %1142 = vmatprep.subr.bf16.mxu0 0
        %1143 = vmatpush1.bf16.msra.mxu0 %v1051
        %1144 = vmatprep.subr.bf16.mxu0 0
        %1145 = vmatpush1.bf16.msra.mxu0 %v1052
        %1146 = vmatprep.subr.bf16.mxu0 0
        %1147 = vmatpush1.bf16.msra.mxu0 %v1053
        %1148 = vmatprep.subr.bf16.mxu0 0
        %1149 = vmatpush1.bf16.msra.mxu0 %v1054
        %1150 = vmatprep.subr.bf16.mxu0 0
        %1151 = vmatpush1.bf16.msra.mxu0 %v1055
        %1152 = vmatprep.mubr.bf16.mxu0 %v721
        %1153 = vmatmul.mubr.bf16.gmra.mrb[0].mxu0 %v720
        %v1154 = vpop.f32.mrb[0].mxu0
        %v1155 = vadd.f32 %v462, %v1154
        %v1156 = vpop.f32.mrb[0].mxu0
        %v1157 = vpop.f32.mrb[0].mxu0
        %v1158 = vadd.f32 %v462, %v1157
        %v1159 = vpop.f32.mrb[0].mxu0
        %1160 = vmatprep.mubr.bf16.mxu0 %v726
        %1161 = vmatmul.mubr.bf16.gmra.mrb[0].mxu0 %v725
        %v1162 = vpop.f32.mrb[0].mxu0
        %v1163 = vadd.f32 %v462, %v1162
        %v1164 = vpop.f32.mrb[0].mxu0
        %v1165 = vpop.f32.mrb[0].mxu0
        %v1166 = vadd.f32 %v462, %v1165
        %v1167 = vpop.f32.mrb[0].mxu0
        %1168 = vmatprep.mubr.bf16.mxu0 %v731
        %1169 = vmatmul.mubr.bf16.gmra.mrb[0].mxu0 %v730
        %v1170 = vpop.f32.mrb[0].mxu0
        %v1171 = vadd.f32 %v462, %v1170
        %v1172 = vpop.f32.mrb[0].mxu0
        %v1173 = vpop.f32.mrb[0].mxu0
        %v1174 = vadd.f32 %v462, %v1173
        %v1175 = vpop.f32.mrb[0].mxu0
        %1176 = vmatprep.mubr.bf16.mxu0 %v736
        %1177 = vmatmul.mubr.bf16.gmra.mrb[0].mxu0 %v735
        %v1178 = vpop.f32.mrb[0].mxu0
        %v1179 = vadd.f32 %v462, %v1178
        %v1180 = vpop.f32.mrb[0].mxu0
        %v1181 = vpop.f32.mrb[0].mxu0
        %v1182 = vadd.f32 %v462, %v1181
        %v1183 = vpop.f32.mrb[0].mxu0
        %1184 = vmatprep.mubr.bf16.mxu0 %v741
        %1185 = vmatmul.mubr.bf16.gmra.mrb[0].mxu0 %v740
        %v1186 = vpop.f32.mrb[0].mxu0
        %v1187 = vadd.f32 %v462, %v1186
        %v1188 = vpop.f32.mrb[0].mxu0
        %v1189 = vpop.f32.mrb[0].mxu0
        %v1190 = vadd.f32 %v462, %v1189
        %v1191 = vpop.f32.mrb[0].mxu0
        %1192 = vmatprep.mubr.bf16.mxu0 %v746
        %1193 = vmatmul.mubr.bf16.gmra.mrb[0].mxu0 %v745
        %v1194 = vpop.f32.mrb[0].mxu0
        %v1195 = vadd.f32 %v462, %v1194
        %v1196 = vpop.f32.mrb[0].mxu0
        %v1197 = vpop.f32.mrb[0].mxu0
        %v1198 = vadd.f32 %v462, %v1197
        %v1199 = vpop.f32.mrb[0].mxu0
        %1200 = vmatprep.mubr.bf16.mxu0 %v751
        %1201 = vmatmul.mubr.bf16.gmra.mrb[0].mxu0 %v750
        %v1202 = vpop.f32.mrb[0].mxu0
        %v1203 = vadd.f32 %v462, %v1202
        %v1204 = vpop.f32.mrb[0].mxu0
        %v1205 = vpop.f32.mrb[0].mxu0
        %v1206 = vadd.f32 %v462, %v1205
        %v1207 = vpop.f32.mrb[0].mxu0
        %1208 = vmatprep.mubr.bf16.mxu0 %v756
        %1209 = vmatmul.mubr.bf16.gmra.mrb[0].mxu0 %v755
        %v1210 = vpop.f32.mrb[0].mxu0
        %v1211 = vadd.f32 %v462, %v1210
        %v1212 = vpop.f32.mrb[0].mxu0
        %v1213 = vpop.f32.mrb[0].mxu0
        %v1214 = vadd.f32 %v462, %v1213
        %v1215 = vpop.f32.mrb[0].mxu0
        %1216 = vmatprep.mubr.bf16.mxu0 %v761
        %1217 = vmatmul.mubr.bf16.gmra.mrb[0].mxu0 %v760
        %v1218 = vpop.f32.mrb[0].mxu0
        %v1219 = vadd.f32 %v462, %v1218
        %v1220 = vpop.f32.mrb[0].mxu0
        %v1221 = vpop.f32.mrb[0].mxu0
        %v1222 = vadd.f32 %v462, %v1221
        %v1223 = vpop.f32.mrb[0].mxu0
        %1224 = vmatprep.mubr.bf16.mxu0 %v766
        %1225 = vmatmul.mubr.bf16.gmra.mrb[0].mxu0 %v765
        %v1226 = vpop.f32.mrb[0].mxu0
        %v1227 = vadd.f32 %v462, %v1226
        %v1228 = vpop.f32.mrb[0].mxu0
        %v1229 = vpop.f32.mrb[0].mxu0
        %v1230 = vadd.f32 %v462, %v1229
        %v1231 = vpop.f32.mrb[0].mxu0
        %1232 = vmatprep.mubr.bf16.mxu0 %v771
        %1233 = vmatmul.mubr.bf16.gmra.mrb[0].mxu0 %v770
        %v1234 = vpop.f32.mrb[0].mxu0
        %v1235 = vadd.f32 %v462, %v1234
        %v1236 = vpop.f32.mrb[0].mxu0
        %v1237 = vpop.f32.mrb[0].mxu0
        %v1238 = vadd.f32 %v462, %v1237
        %v1239 = vpop.f32.mrb[0].mxu0
        %1240 = vmatprep.mubr.bf16.mxu0 %v776
        %1241 = vmatmul.mubr.bf16.gmra.mrb[0].mxu0 %v775
        %v1242 = vpop.f32.mrb[0].mxu0
        %v1243 = vadd.f32 %v462, %v1242
        %v1244 = vpop.f32.mrb[0].mxu0
        %v1245 = vpop.f32.mrb[0].mxu0
        %v1246 = vadd.f32 %v462, %v1245
        %v1247 = vpop.f32.mrb[0].mxu0
        %1248 = vmatprep.mubr.bf16.mxu0 %v781
        %1249 = vmatmul.mubr.bf16.gmra.mrb[0].mxu0 %v780
        %v1250 = vpop.f32.mrb[0].mxu0
        %v1251 = vadd.f32 %v462, %v1250
        %v1252 = vpop.f32.mrb[0].mxu0
        %v1253 = vpop.f32.mrb[0].mxu0
        %v1254 = vadd.f32 %v462, %v1253
        %v1255 = vpop.f32.mrb[0].mxu0
        %1256 = vmatprep.mubr.bf16.mxu0 %v786
        %1257 = vmatmul.mubr.bf16.gmra.mrb[0].mxu0 %v785
        %v1258 = vpop.f32.mrb[0].mxu0
        %v1259 = vadd.f32 %v462, %v1258
        %v1260 = vpop.f32.mrb[0].mxu0
        %v1261 = vpop.f32.mrb[0].mxu0
        %v1262 = vadd.f32 %v462, %v1261
        %v1263 = vpop.f32.mrb[0].mxu0
        %1264 = vmatprep.mubr.bf16.mxu0 %v791
        %1265 = vmatmul.mubr.bf16.gmra.mrb[0].mxu0 %v790
        %v1266 = vpop.f32.mrb[0].mxu0
        %v1267 = vadd.f32 %v462, %v1266
        %v1268 = vpop.f32.mrb[0].mxu0
        %v1269 = vpop.f32.mrb[0].mxu0
        %v1270 = vadd.f32 %v462, %v1269
        %v1271 = vpop.f32.mrb[0].mxu0
        %1272 = vmatprep.mubr.bf16.mxu0 %v796
        %1273 = vmatmul.mubr.bf16.gmra.mrb[0].mxu0 %v795
        %v1274 = vpop.f32.mrb[0].mxu0
        %v1275 = vadd.f32 %v462, %v1274
        %v1276 = vpop.f32.mrb[0].mxu0
        %v1277 = vpop.f32.mrb[0].mxu0
        %v1278 = vadd.f32 %v462, %v1277
        %v1279 = vpop.f32.mrb[0].mxu0
        %1280 = vdwg.mxu0
        %1281 = vmatprep.subr.bf16.mxu0 0
        %1282 = vmatpush1.bf16.msra.mxu0 %v1056
        %1283 = vmatprep.subr.bf16.mxu0 0
        %1284 = vmatpush1.bf16.msra.mxu0 %v1057
        %1285 = vmatprep.subr.bf16.mxu0 0
        %1286 = vmatpush1.bf16.msra.mxu0 %v1058
        %1287 = vmatprep.subr.bf16.mxu0 0
        %1288 = vmatpush1.bf16.msra.mxu0 %v1059
        %1289 = vmatprep.subr.bf16.mxu0 0
        %1290 = vmatpush1.bf16.msra.mxu0 %v1060
        %1291 = vmatprep.subr.bf16.mxu0 0
        %1292 = vmatpush1.bf16.msra.mxu0 %v1061
        %1293 = vmatprep.subr.bf16.mxu0 0
        %1294 = vmatpush1.bf16.msra.mxu0 %v1062
        %1295 = vmatprep.subr.bf16.mxu0 0
        %1296 = vmatpush1.bf16.msra.mxu0 %v1063
        %1297 = vmatprep.subr.bf16.mxu0 0
        %1298 = vmatpush1.bf16.msra.mxu0 %v1064
        %1299 = vmatprep.subr.bf16.mxu0 0
        %1300 = vmatpush1.bf16.msra.mxu0 %v1065
        %1301 = vmatprep.subr.bf16.mxu0 0
        %1302 = vmatpush1.bf16.msra.mxu0 %v1066
        %1303 = vmatprep.subr.bf16.mxu0 0
        %1304 = vmatpush1.bf16.msra.mxu0 %v1067
        %1305 = vmatprep.subr.bf16.mxu0 0
        %1306 = vmatpush1.bf16.msra.mxu0 %v1068
        %1307 = vmatprep.subr.bf16.mxu0 0
        %1308 = vmatpush1.bf16.msra.mxu0 %v1069
        %1309 = vmatprep.subr.bf16.mxu0 0
        %1310 = vmatpush1.bf16.msra.mxu0 %v1070
        %1311 = vmatprep.subr.bf16.mxu0 0
        %1312 = vmatpush1.bf16.msra.mxu0 %v1071
        %1313 = vmatprep.mubr.bf16.mxu0 %v723
        %1314 = vmatmul.mubr.bf16.gmra.mrb[0].mxu0 %v722
        %v1315 = vpop.f32.mrb[0].mxu0
        %v1316 = vadd.f32 %v1155, %v1315
        %v1317 = vpop.f32.mrb[0].mxu0
        %v1318 = vpop.f32.mrb[0].mxu0
        %v1319 = vadd.f32 %v1158, %v1318
        %v1320 = vpop.f32.mrb[0].mxu0
        %1321 = vmatprep.mubr.bf16.mxu0 %v728
        %1322 = vmatmul.mubr.bf16.gmra.mrb[0].mxu0 %v727
        %v1323 = vpop.f32.mrb[0].mxu0
        %v1324 = vadd.f32 %v1163, %v1323
        %v1325 = vpop.f32.mrb[0].mxu0
        %v1326 = vpop.f32.mrb[0].mxu0
        %v1327 = vadd.f32 %v1166, %v1326
        %v1328 = vpop.f32.mrb[0].mxu0
        %1329 = vmatprep.mubr.bf16.mxu0 %v733
        %1330 = vmatmul.mubr.bf16.gmra.mrb[0].mxu0 %v732
        %v1331 = vpop.f32.mrb[0].mxu0
        %v1332 = vadd.f32 %v1171, %v1331
        %v1333 = vpop.f32.mrb[0].mxu0
        %v1334 = vpop.f32.mrb[0].mxu0
        %v1335 = vadd.f32 %v1174, %v1334
        %v1336 = vpop.f32.mrb[0].mxu0
        %1337 = vmatprep.mubr.bf16.mxu0 %v738
        %1338 = vmatmul.mubr.bf16.gmra.mrb[0].mxu0 %v737
        %v1339 = vpop.f32.mrb[0].mxu0
        %v1340 = vadd.f32 %v1179, %v1339
        %v1341 = vpop.f32.mrb[0].mxu0
        %v1342 = vpop.f32.mrb[0].mxu0
        %v1343 = vadd.f32 %v1182, %v1342
        %v1344 = vpop.f32.mrb[0].mxu0
        %1345 = vmatprep.mubr.bf16.mxu0 %v743
        %1346 = vmatmul.mubr.bf16.gmra.mrb[0].mxu0 %v742
        %v1347 = vpop.f32.mrb[0].mxu0
        %v1348 = vadd.f32 %v1187, %v1347
        %v1349 = vpop.f32.mrb[0].mxu0
        %v1350 = vpop.f32.mrb[0].mxu0
        %v1351 = vadd.f32 %v1190, %v1350
        %v1352 = vpop.f32.mrb[0].mxu0
        %1353 = vmatprep.mubr.bf16.mxu0 %v748
        %1354 = vmatmul.mubr.bf16.gmra.mrb[0].mxu0 %v747
        %v1355 = vpop.f32.mrb[0].mxu0
        %v1356 = vadd.f32 %v1195, %v1355
        %v1357 = vpop.f32.mrb[0].mxu0
        %v1358 = vpop.f32.mrb[0].mxu0
        %v1359 = vadd.f32 %v1198, %v1358
        %v1360 = vpop.f32.mrb[0].mxu0
        %1361 = vmatprep.mubr.bf16.mxu0 %v753
        %1362 = vmatmul.mubr.bf16.gmra.mrb[0].mxu0 %v752
        %v1363 = vpop.f32.mrb[0].mxu0
        %v1364 = vadd.f32 %v1203, %v1363
        %v1365 = vpop.f32.mrb[0].mxu0
        %v1366 = vpop.f32.mrb[0].mxu0
        %v1367 = vadd.f32 %v1206, %v1366
        %v1368 = vpop.f32.mrb[0].mxu0
        %1369 = vmatprep.mubr.bf16.mxu0 %v758
        %1370 = vmatmul.mubr.bf16.gmra.mrb[0].mxu0 %v757
        %v1371 = vpop.f32.mrb[0].mxu0
        %v1372 = vadd.f32 %v1211, %v1371
        %v1373 = vpop.f32.mrb[0].mxu0
        %v1374 = vpop.f32.mrb[0].mxu0
        %v1375 = vadd.f32 %v1214, %v1374
        %v1376 = vpop.f32.mrb[0].mxu0
        %1377 = vmatprep.mubr.bf16.mxu0 %v763
        %1378 = vmatmul.mubr.bf16.gmra.mrb[0].mxu0 %v762
        %v1379 = vpop.f32.mrb[0].mxu0
        %v1380 = vadd.f32 %v1219, %v1379
        %v1381 = vpop.f32.mrb[0].mxu0
        %v1382 = vpop.f32.mrb[0].mxu0
        %v1383 = vadd.f32 %v1222, %v1382
        %v1384 = vpop.f32.mrb[0].mxu0
        %1385 = vmatprep.mubr.bf16.mxu0 %v768
        %1386 = vmatmul.mubr.bf16.gmra.mrb[0].mxu0 %v767
        %v1387 = vpop.f32.mrb[0].mxu0
        %v1388 = vadd.f32 %v1227, %v1387
        %v1389 = vpop.f32.mrb[0].mxu0
        %v1390 = vpop.f32.mrb[0].mxu0
        %v1391 = vadd.f32 %v1230, %v1390
        %v1392 = vpop.f32.mrb[0].mxu0
        %1393 = vmatprep.mubr.bf16.mxu0 %v773
        %1394 = vmatmul.mubr.bf16.gmra.mrb[0].mxu0 %v772
        %v1395 = vpop.f32.mrb[0].mxu0
        %v1396 = vadd.f32 %v1235, %v1395
        %v1397 = vpop.f32.mrb[0].mxu0
        %v1398 = vpop.f32.mrb[0].mxu0
        %v1399 = vadd.f32 %v1238, %v1398
        %v1400 = vpop.f32.mrb[0].mxu0
        %1401 = vmatprep.mubr.bf16.mxu0 %v778
        %1402 = vmatmul.mubr.bf16.gmra.mrb[0].mxu0 %v777
        %v1403 = vpop.f32.mrb[0].mxu0
        %v1404 = vadd.f32 %v1243, %v1403
        %v1405 = vpop.f32.mrb[0].mxu0
        %v1406 = vpop.f32.mrb[0].mxu0
        %v1407 = vadd.f32 %v1246, %v1406
        %v1408 = vpop.f32.mrb[0].mxu0
        %1409 = vmatprep.mubr.bf16.mxu0 %v783
        %1410 = vmatmul.mubr.bf16.gmra.mrb[0].mxu0 %v782
        %v1411 = vpop.f32.mrb[0].mxu0
        %v1412 = vadd.f32 %v1251, %v1411
        %v1413 = vpop.f32.mrb[0].mxu0
        %v1414 = vpop.f32.mrb[0].mxu0
        %v1415 = vadd.f32 %v1254, %v1414
        %v1416 = vpop.f32.mrb[0].mxu0
        %1417 = vmatprep.mubr.bf16.mxu0 %v788
        %1418 = vmatmul.mubr.bf16.gmra.mrb[0].mxu0 %v787
        %v1419 = vpop.f32.mrb[0].mxu0
        %v1420 = vadd.f32 %v1259, %v1419
        %v1421 = vpop.f32.mrb[0].mxu0
        %v1422 = vpop.f32.mrb[0].mxu0
        %v1423 = vadd.f32 %v1262, %v1422
        %v1424 = vpop.f32.mrb[0].mxu0
        %1425 = vmatprep.mubr.bf16.mxu0 %v793
        %1426 = vmatmul.mubr.bf16.gmra.mrb[0].mxu0 %v792
        %v1427 = vpop.f32.mrb[0].mxu0
        %v1428 = vadd.f32 %v1267, %v1427
        %v1429 = vpop.f32.mrb[0].mxu0
        %v1430 = vpop.f32.mrb[0].mxu0
        %v1431 = vadd.f32 %v1270, %v1430
        %v1432 = vpop.f32.mrb[0].mxu0
        %1433 = vmatprep.mubr.bf16.mxu0 %v798
        %1434 = vmatmul.mubr.bf16.gmra.mrb[0].mxu0 %v797
        %v1435 = vpop.f32.mrb[0].mxu0
        %v1436 = vadd.f32 %v1275, %v1435
        %v1437 = vpop.f32.mrb[0].mxu0
        %v1438 = vpop.f32.mrb[0].mxu0
        %v1439 = vadd.f32 %v1278, %v1438
        %v1440 = vpop.f32.mrb[0].mxu0
        %1441 = vdwg.mxu0
        %1442 = vmatprep.subr.bf16.mxu0 0
        %1443 = vmatpush1.bf16.msra.mxu0 %v1072
        %1444 = vmatprep.subr.bf16.mxu0 0
        %1445 = vmatpush1.bf16.msra.mxu0 %v1073
        %1446 = vmatprep.subr.bf16.mxu0 0
        %1447 = vmatpush1.bf16.msra.mxu0 %v1074
        %1448 = vmatprep.subr.bf16.mxu0 0
        %1449 = vmatpush1.bf16.msra.mxu0 %v1075
        %1450 = vmatprep.subr.bf16.mxu0 0
        %1451 = vmatpush1.bf16.msra.mxu0 %v1076
        %1452 = vmatprep.subr.bf16.mxu0 0
        %1453 = vmatpush1.bf16.msra.mxu0 %v1077
        %1454 = vmatprep.subr.bf16.mxu0 0
        %1455 = vmatpush1.bf16.msra.mxu0 %v1078
        %1456 = vmatprep.subr.bf16.mxu0 0
        %1457 = vmatpush1.bf16.msra.mxu0 %v1079
        %1458 = vmatprep.subr.bf16.mxu0 0
        %1459 = vmatpush1.bf16.msra.mxu0 0
        %1460 = vmatprep.subr.bf16.mxu0 0
        %1461 = vmatpush1.bf16.msra.mxu0 0
        %1462 = vmatprep.subr.bf16.mxu0 0
        %1463 = vmatpush1.bf16.msra.mxu0 0
        %1464 = vmatprep.subr.bf16.mxu0 0
        %1465 = vmatpush1.bf16.msra.mxu0 0
        %1466 = vmatprep.subr.bf16.mxu0 0
        %1467 = vmatpush1.bf16.msra.mxu0 0
        %1468 = vmatprep.subr.bf16.mxu0 0
        %1469 = vmatpush1.bf16.msra.mxu0 0
        %1470 = vmatprep.subr.bf16.mxu0 0
        %1471 = vmatpush1.bf16.msra.mxu0 0
        %1472 = vmatprep.subr.bf16.mxu0 0
        %1473 = vmatpush1.bf16.msra.mxu0 0
        %1474 = vmatprep.mubr.bf16.mxu0 0
        %1475 = vmatmul.mubr.bf16.gmra.mrb[0].mxu0 %v724
        %v1476 = vpop.f32.mrb[0].mxu0
        %v1477 = vadd.f32 %v1316, %v1476
        %v1478 = vpop.f32.mrb[0].mxu0
        %v1479 = vpop.f32.mrb[0].mxu0
        %v1480 = vadd.f32 %v1319, %v1479
        %v1481 = vpop.f32.mrb[0].mxu0
        %1482 = vmatprep.mubr.bf16.mxu0 0
        %1483 = vmatmul.mubr.bf16.gmra.mrb[0].mxu0 %v729
        %v1484 = vpop.f32.mrb[0].mxu0
        %v1485 = vadd.f32 %v1324, %v1484
        %v1486 = vpop.f32.mrb[0].mxu0
        %v1487 = vpop.f32.mrb[0].mxu0
        %v1488 = vadd.f32 %v1327, %v1487
        %v1489 = vpop.f32.mrb[0].mxu0
        %1490 = vmatprep.mubr.bf16.mxu0 0
        %1491 = vmatmul.mubr.bf16.gmra.mrb[0].mxu0 %v734
        %v1492 = vpop.f32.mrb[0].mxu0
        %v1493 = vadd.f32 %v1332, %v1492
        %v1494 = vpop.f32.mrb[0].mxu0
        %v1495 = vpop.f32.mrb[0].mxu0
        %v1496 = vadd.f32 %v1335, %v1495
        %v1497 = vpop.f32.mrb[0].mxu0
        %1498 = vmatprep.mubr.bf16.mxu0 0
        %1499 = vmatmul.mubr.bf16.gmra.mrb[0].mxu0 %v739
        %v1500 = vpop.f32.mrb[0].mxu0
        %v1501 = vadd.f32 %v1340, %v1500
        %v1502 = vpop.f32.mrb[0].mxu0
        %v1503 = vpop.f32.mrb[0].mxu0
        %v1504 = vadd.f32 %v1343, %v1503
        %v1505 = vpop.f32.mrb[0].mxu0
        %1506 = vmatprep.mubr.bf16.mxu0 0
        %1507 = vmatmul.mubr.bf16.gmra.mrb[0].mxu0 %v744
        %v1508 = vpop.f32.mrb[0].mxu0
        %v1509 = vadd.f32 %v1348, %v1508
        %v1510 = vpop.f32.mrb[0].mxu0
        %v1511 = vpop.f32.mrb[0].mxu0
        %v1512 = vadd.f32 %v1351, %v1511
        %v1513 = vpop.f32.mrb[0].mxu0
        %1514 = vmatprep.mubr.bf16.mxu0 0
        %1515 = vmatmul.mubr.bf16.gmra.mrb[0].mxu0 %v749
        %v1516 = vpop.f32.mrb[0].mxu0
        %v1517 = vadd.f32 %v1356, %v1516
        %v1518 = vpop.f32.mrb[0].mxu0
        %v1519 = vpop.f32.mrb[0].mxu0
        %v1520 = vadd.f32 %v1359, %v1519
        %v1521 = vpop.f32.mrb[0].mxu0
        %1522 = vmatprep.mubr.bf16.mxu0 0
        %1523 = vmatmul.mubr.bf16.gmra.mrb[0].mxu0 %v754
        %v1524 = vpop.f32.mrb[0].mxu0
        %v1525 = vadd.f32 %v1364, %v1524
        %v1526 = vpop.f32.mrb[0].mxu0
        %v1527 = vpop.f32.mrb[0].mxu0
        %v1528 = vadd.f32 %v1367, %v1527
        %v1529 = vpop.f32.mrb[0].mxu0
        %1530 = vmatprep.mubr.bf16.mxu0 0
        %1531 = vmatmul.mubr.bf16.gmra.mrb[0].mxu0 %v759
        %v1532 = vpop.f32.mrb[0].mxu0
        %v1533 = vadd.f32 %v1372, %v1532
        %v1534 = vpop.f32.mrb[0].mxu0
        %v1535 = vpop.f32.mrb[0].mxu0
        %v1536 = vadd.f32 %v1375, %v1535
        %v1537 = vpop.f32.mrb[0].mxu0
        %1538 = vmatprep.mubr.bf16.mxu0 0
        %1539 = vmatmul.mubr.bf16.gmra.mrb[0].mxu0 %v764
        %v1540 = vpop.f32.mrb[0].mxu0
        %v1541 = vadd.f32 %v1380, %v1540
        %v1542 = vpop.f32.mrb[0].mxu0
        %v1543 = vpop.f32.mrb[0].mxu0
        %v1544 = vadd.f32 %v1383, %v1543
        %v1545 = vpop.f32.mrb[0].mxu0
        %1546 = vmatprep.mubr.bf16.mxu0 0
        %1547 = vmatmul.mubr.bf16.gmra.mrb[0].mxu0 %v769
        %v1548 = vpop.f32.mrb[0].mxu0
        %v1549 = vadd.f32 %v1388, %v1548
        %v1550 = vpop.f32.mrb[0].mxu0
        %v1551 = vpop.f32.mrb[0].mxu0
        %v1552 = vadd.f32 %v1391, %v1551
        %v1553 = vpop.f32.mrb[0].mxu0
        %1554 = vmatprep.mubr.bf16.mxu0 0
        %1555 = vmatmul.mubr.bf16.gmra.mrb[0].mxu0 %v774
        %v1556 = vpop.f32.mrb[0].mxu0
        %v1557 = vadd.f32 %v1396, %v1556
        %v1558 = vpop.f32.mrb[0].mxu0
        %v1559 = vpop.f32.mrb[0].mxu0
        %v1560 = vadd.f32 %v1399, %v1559
        %v1561 = vpop.f32.mrb[0].mxu0
        %1562 = vmatprep.mubr.bf16.mxu0 0
        %1563 = vmatmul.mubr.bf16.gmra.mrb[0].mxu0 %v779
        %v1564 = vpop.f32.mrb[0].mxu0
        %v1565 = vadd.f32 %v1404, %v1564
        %v1566 = vpop.f32.mrb[0].mxu0
        %v1567 = vpop.f32.mrb[0].mxu0
        %v1568 = vadd.f32 %v1407, %v1567
        %v1569 = vpop.f32.mrb[0].mxu0
        %1570 = vmatprep.mubr.bf16.mxu0 0
        %1571 = vmatmul.mubr.bf16.gmra.mrb[0].mxu0 %v784
        %v1572 = vpop.f32.mrb[0].mxu0
        %v1573 = vadd.f32 %v1412, %v1572
        %v1574 = vpop.f32.mrb[0].mxu0
        %v1575 = vpop.f32.mrb[0].mxu0
        %v1576 = vadd.f32 %v1415, %v1575
        %v1577 = vpop.f32.mrb[0].mxu0
        %1578 = vmatprep.mubr.bf16.mxu0 0
        %1579 = vmatmul.mubr.bf16.gmra.mrb[0].mxu0 %v789
        %v1580 = vpop.f32.mrb[0].mxu0
        %v1581 = vadd.f32 %v1420, %v1580
        %v1582 = vpop.f32.mrb[0].mxu0
        %v1583 = vpop.f32.mrb[0].mxu0
        %v1584 = vadd.f32 %v1423, %v1583
        %v1585 = vpop.f32.mrb[0].mxu0
        %1586 = vmatprep.mubr.bf16.mxu0 0
        %1587 = vmatmul.mubr.bf16.gmra.mrb[0].mxu0 %v794
        %v1588 = vpop.f32.mrb[0].mxu0
        %v1589 = vadd.f32 %v1428, %v1588
        %v1590 = vpop.f32.mrb[0].mxu0
        %v1591 = vpop.f32.mrb[0].mxu0
        %v1592 = vadd.f32 %v1431, %v1591
        %v1593 = vpop.f32.mrb[0].mxu0
        %1594 = vmatprep.mubr.bf16.mxu0 0
        %1595 = vmatmul.mubr.bf16.gmra.mrb[0].mxu0 %v799
        %v1596 = vpop.f32.mrb[0].mxu0
        %v1597 = vadd.f32 %v1436, %v1596
        %v1598 = vpop.f32.mrb[0].mxu0
        %v1599 = vpop.f32.mrb[0].mxu0
        %v1600 = vadd.f32 %v1439, %v1599
        %v1601 = vpop.f32.mrb[0].mxu0
        %1602 = vdwg.mxu0
        %v1603 = vld [vmem:[%s277] sm:$0xf]
        %v1604 = vld [vmem:[%s277 + $0x4] sm:$0xf]
        %v1605 = vld [vmem:[%s277 + $0x8] sm:$0xf]
        %v1606 = vld [vmem:[%s277 + $0xc] sm:$0xf]
        %v1607 = vld [vmem:[%s277 + $0x10] sm:$0xf]
        %v1608 = vld [vmem:[%s277 + $0x14] sm:$0xf]
        %v1609 = vld [vmem:[%s277 + $0x18] sm:$0xf]
        %v1610 = vld [vmem:[%s277 + $0x1c] sm:$0xf]
        %v1611 = vld [vmem:[%s277 + $0x20] sm:$0xf]
        %v1612 = vld [vmem:[%s277 + $0x24] sm:$0xf]
        %v1613 = vld [vmem:[%s277 + $0x28] sm:$0xf]
        %v1614 = vld [vmem:[%s277 + $0x2c] sm:$0xf]
        %v1615 = vld [vmem:[%s277 + $0x30] sm:$0xf]
        %v1616 = vld [vmem:[%s277 + $0x34] sm:$0xf]
        %v1617 = vld [vmem:[%s277 + $0x38] sm:$0xf]
        %v1618 = vld [vmem:[%s277 + $0x3c] sm:$0xf]
        %v1619 = vld [vmem:[%s277 + $0x40] sm:$0xf]
        %v1620 = vld [vmem:[%s277 + $0x44] sm:$0xf]
        %v1621 = vld [vmem:[%s277 + $0x48] sm:$0xf]
        %v1622 = vld [vmem:[%s277 + $0x4c] sm:$0xf]
        %v1623 = vld [vmem:[%s277 + $0x50] sm:$0xf]
        %v1624 = vld [vmem:[%s277 + $0x54] sm:$0xf]
        %v1625 = vld [vmem:[%s277 + $0x58] sm:$0xf]
        %v1626 = vld [vmem:[%s277 + $0x5c] sm:$0xf]
        %v1627 = vld [vmem:[%s277 + $0x60] sm:$0xf]
        %v1628 = vld [vmem:[%s277 + $0x64] sm:$0xf]
        %v1629 = vld [vmem:[%s277 + $0x68] sm:$0xf]
        %v1630 = vld [vmem:[%s277 + $0x6c] sm:$0xf]
        %v1631 = vld [vmem:[%s277 + $0x70] sm:$0xf]
        %v1632 = vld [vmem:[%s277 + $0x74] sm:$0xf]
        %v1633 = vld [vmem:[%s277 + $0x78] sm:$0xf]
        %v1634 = vld [vmem:[%s277 + $0x7c] sm:$0xf]
        %v1635 = vunpack.c.l.bf16 %v1603
        %v1636 = vunpack.c.l.bf16 %v1604
        %v1637 = vunpack.c.l.bf16 %v1605
        %v1638 = vunpack.c.l.bf16 %v1606
        %v1639 = vunpack.c.l.bf16 %v1607
        %v1640 = vunpack.c.l.bf16 %v1608
        %v1641 = vunpack.c.l.bf16 %v1609
        %v1642 = vunpack.c.l.bf16 %v1610
        %v1643 = vunpack.c.l.bf16 %v1611
        %v1644 = vunpack.c.l.bf16 %v1612
        %v1645 = vunpack.c.l.bf16 %v1613
        %v1646 = vunpack.c.l.bf16 %v1614
        %v1647 = vunpack.c.l.bf16 %v1615
        %v1648 = vunpack.c.l.bf16 %v1616
        %v1649 = vunpack.c.l.bf16 %v1617
        %v1650 = vunpack.c.l.bf16 %v1618
        %v1651 = vunpack.c.l.bf16 %v1619
        %v1652 = vunpack.c.l.bf16 %v1620
        %v1653 = vunpack.c.l.bf16 %v1621
        %v1654 = vunpack.c.l.bf16 %v1622
        %v1655 = vunpack.c.l.bf16 %v1623
        %v1656 = vunpack.c.l.bf16 %v1624
        %v1657 = vunpack.c.l.bf16 %v1625
        %v1658 = vunpack.c.l.bf16 %v1626
        %v1659 = vunpack.c.l.bf16 %v1627
        %v1660 = vunpack.c.l.bf16 %v1628
        %v1661 = vunpack.c.l.bf16 %v1629
        %v1662 = vunpack.c.l.bf16 %v1630
        %v1663 = vunpack.c.l.bf16 %v1631
        %v1664 = vunpack.c.l.bf16 %v1632
        %v1665 = vunpack.c.l.bf16 %v1633
        %v1666 = vunpack.c.l.bf16 %v1634
        %v1667 = vadd.f32 %v1477, %v1635
        %v1668 = vadd.f32 %v1480, %v1636
        %v1669 = vadd.f32 %v1485, %v1637
        %v1670 = vadd.f32 %v1488, %v1638
        %v1671 = vadd.f32 %v1493, %v1639
        %v1672 = vadd.f32 %v1496, %v1640
        %v1673 = vadd.f32 %v1501, %v1641
        %v1674 = vadd.f32 %v1504, %v1642
        %v1675 = vadd.f32 %v1509, %v1643
        %v1676 = vadd.f32 %v1512, %v1644
        %v1677 = vadd.f32 %v1517, %v1645
        %v1678 = vadd.f32 %v1520, %v1646
        %v1679 = vadd.f32 %v1525, %v1647
        %v1680 = vadd.f32 %v1528, %v1648
        %v1681 = vadd.f32 %v1533, %v1649
        %v1682 = vadd.f32 %v1536, %v1650
        %v1683 = vadd.f32 %v1541, %v1651
        %v1684 = vadd.f32 %v1544, %v1652
        %v1685 = vadd.f32 %v1549, %v1653
        %v1686 = vadd.f32 %v1552, %v1654
        %v1687 = vadd.f32 %v1557, %v1655
        %v1688 = vadd.f32 %v1560, %v1656
        %v1689 = vadd.f32 %v1565, %v1657
        %v1690 = vadd.f32 %v1568, %v1658
        %v1691 = vadd.f32 %v1573, %v1659
        %v1692 = vadd.f32 %v1576, %v1660
        %v1693 = vadd.f32 %v1581, %v1661
        %v1694 = vadd.f32 %v1584, %v1662
        %v1695 = vadd.f32 %v1589, %v1663
        %v1696 = vadd.f32 %v1592, %v1664
        %v1697 = vadd.f32 %v1597, %v1665
        %v1698 = vadd.f32 %v1600, %v1666
        %v1699 = vmax.f32 %v1667, 0.0
        %v1700 = vmax.f32 %v1668, 0.0
        %v1701 = vmax.f32 %v1669, 0.0
        %v1702 = vmax.f32 %v1670, 0.0
        %v1703 = vmax.f32 %v1671, 0.0
        %v1704 = vmax.f32 %v1672, 0.0
        %v1705 = vmax.f32 %v1673, 0.0
        %v1706 = vmax.f32 %v1674, 0.0
        %v1707 = vmax.f32 %v1675, 0.0
        %v1708 = vmax.f32 %v1676, 0.0
        %v1709 = vmax.f32 %v1677, 0.0
        %v1710 = vmax.f32 %v1678, 0.0
        %v1711 = vmax.f32 %v1679, 0.0
        %v1712 = vmax.f32 %v1680, 0.0
        %v1713 = vmax.f32 %v1681, 0.0
        %v1714 = vmax.f32 %v1682, 0.0
        %v1715 = vmax.f32 %v1683, 0.0
        %v1716 = vmax.f32 %v1684, 0.0
        %v1717 = vmax.f32 %v1685, 0.0
        %v1718 = vmax.f32 %v1686, 0.0
        %v1719 = vmax.f32 %v1687, 0.0
        %v1720 = vmax.f32 %v1688, 0.0
        %v1721 = vmax.f32 %v1689, 0.0
        %v1722 = vmax.f32 %v1690, 0.0
        %v1723 = vmax.f32 %v1691, 0.0
        %v1724 = vmax.f32 %v1692, 0.0
        %v1725 = vmax.f32 %v1693, 0.0
        %v1726 = vmax.f32 %v1694, 0.0
        %v1727 = vmax.f32 %v1695, 0.0
        %v1728 = vmax.f32 %v1696, 0.0
        %v1729 = vmax.f32 %v1697, 0.0
        %v1730 = vmax.f32 %v1698, 0.0
        %1731 = vst [vmem:[%s255] sm:$0xff] %v1699
        %1732 = vst [vmem:[%s255 + $0x8] sm:$0xff] %v1700
        %1733 = vst [vmem:[%s255 + $0x10] sm:$0xff] %v1701
        %1734 = vst [vmem:[%s255 + $0x18] sm:$0xff] %v1702
        %1735 = vst [vmem:[%s255 + $0x20] sm:$0xff] %v1703
        %1736 = vst [vmem:[%s255 + $0x28] sm:$0xff] %v1704
        %1737 = vst [vmem:[%s255 + $0x30] sm:$0xff] %v1705
        %1738 = vst [vmem:[%s255 + $0x38] sm:$0xff] %v1706
        %1739 = vst [vmem:[%s255 + $0x40] sm:$0xff] %v1707
        %1740 = vst [vmem:[%s255 + $0x48] sm:$0xff] %v1708
        %1741 = vst [vmem:[%s255 + $0x50] sm:$0xff] %v1709
        %1742 = vst [vmem:[%s255 + $0x58] sm:$0xff] %v1710
        %1743 = vst [vmem:[%s255 + $0x60] sm:$0xff] %v1711
        %1744 = vst [vmem:[%s255 + $0x68] sm:$0xff] %v1712
        %1745 = vst [vmem:[%s255 + $0x70] sm:$0xff] %v1713
        %1746 = vst [vmem:[%s255 + $0x78] sm:$0xff] %v1714
        %1747 = vst [vmem:[%s255 + $0x80] sm:$0xff] %v1715
        %1748 = vst [vmem:[%s255 + $0x88] sm:$0xff] %v1716
        %1749 = vst [vmem:[%s255 + $0x90] sm:$0xff] %v1717
        %1750 = vst [vmem:[%s255 + $0x98] sm:$0xff] %v1718
        %1751 = vst [vmem:[%s255 + $0xa0] sm:$0xff] %v1719
        %1752 = vst [vmem:[%s255 + $0xa8] sm:$0xff] %v1720
        %1753 = vst [vmem:[%s255 + $0xb0] sm:$0xff] %v1721
        %1754 = vst [vmem:[%s255 + $0xb8] sm:$0xff] %v1722
        %1755 = vst [vmem:[%s255 + $0xc0] sm:$0xff] %v1723
        %1756 = vst [vmem:[%s255 + $0xc8] sm:$0xff] %v1724
        %1757 = vst [vmem:[%s255 + $0xd0] sm:$0xff] %v1725
        %1758 = vst [vmem:[%s255 + $0xd8] sm:$0xff] %v1726
        %1759 = vst [vmem:[%s255 + $0xe0] sm:$0xff] %v1727
        %1760 = vst [vmem:[%s255 + $0xe8] sm:$0xff] %v1728
        %1761 = vst [vmem:[%s255 + $0xf0] sm:$0xff] %v1729
        %1762 = vst [vmem:[%s255 + $0xf8] sm:$0xff] %v1730
        %s1763 = sand.u32 %s146, 1
        %s1764 = scalar_lea.sflag [#allocation3], %s1763
        %s1765 = sand.u32 %s146, 1
        %s1766 = smul.addr %s1765, 256
        %s1767 = scalar_lea.vmem [#allocation2], %s1766
        // Predicated region
        $region37: #{basic_block_forward.3} parent=35 // pred_check
          %p1768 = pneg %p156
        $region38: #{basic_block_forward.3} parent=35 // pred_check_branch
          %1770 = sbr.rel (%p1768) target = $region40
        $region39: #{basic_block_forward.3} parent=35 // pred_region
          %s1771 = smul.u32 32, %s22
          %s1773 = ssub.s32 4096, 4096
          %1774 = vsyncadd %s1764, %s1773
          %s1775 = sadd.s32 %s23, %s1771
          %s1776 = smul.addr %s1775, 128
          %s1777 = scalar_lea.hbm %s4, %s1776
          %s1778 = sshll.u32 %s1767, 4
          %s1779 = int_to_ptr.vmem [resolvable:$true] %s1778
          %1784 = dma.vmem_to_hbm [thread:$0]  %s1779, 4096, %s1777, %s1764, 128, 128, 8
        $region40: #{basic_block_forward.3} parent=35 // pred_fallthru
          _
      $region36: #{basic_block_forward.3} parent=5 // pred_fallthru
        _
      %p1785 = scmp.le.s32.totalorder 2, %s13
      // Predicated region
      $region41: #{basic_block_forward.3} parent=5 // pred_check
        %p1786 = pneg %p1785
      $region42: #{basic_block_forward.3} parent=5 // pred_check_branch
        %1788 = sbr.rel (%p1786) target = $region44
      $region43: #{basic_block_forward.3} parent=5 // pred_region
        %s1789 = ssub.s32 %s13, 2
        // Predicated region
        $region45: #{basic_block_forward.3} parent=43 // pred_check
          %p1790 = pneg %p162
        $region46: #{basic_block_forward.3} parent=43 // pred_check_branch
          %1792 = sbr.rel (%p1790) target = $region48
        $region47: #{basic_block_forward.3} parent=43 // pred_region
          %s1793 = sand.u32 %s147, 1
          %s1794 = scalar_lea.sflag [#allocation3], %s1793
          %s1795 = sand.u32 %s147, 1
          %s1796 = smul.addr %s1795, 256
          %s1797 = scalar_lea.vmem [#allocation2], %s1796
          %1798 = dma.done %s1794, 4096
        $region48: #{basic_block_forward.3} parent=43 // pred_fallthru
          _
      $region44: #{basic_block_forward.3} parent=5 // pred_fallthru
        _
    $region6: #{basic_block_forward.3} parent=1 // loop_footer
      %s17 = sadd.s32 1, %s13
    $region7: #{basic_block_forward.3} parent=1 // loop_footer_branch
      %12 = sbr.rel target = $region3
    $region8: #{basic_block_forward.3} parent=1 // loop_exit
      _
    %1799 = vsyncpa [#allocation3], 1
    %s1800 = scalar_lea.sflag [#allocation3], 1
    %1801 = vsyncpa %s1800, 1

</llo_original>
